<compile_context>
chip_gen: v7x
topology: tpu7x:2x2x1
jax: 0.10.0
libtpu: 0.0.40
codegen_flags: <defaults>
</compile_context>

<pallas_src>
import functools

import jax
import jax.numpy as jnp
from jax.experimental import pallas as pl
from jax.experimental.pallas import tpu as pltpu

LRELU_SLOPE = 0.1
_VMEM = pltpu.MemorySpace.VMEM


def _compute_vmem_limit():
    try:
        cap = int(pltpu.get_tpu_info().vmem_capacity_bytes)
        if cap > 0:
            return max(32 << 20, min((cap * 3) // 4, 100 << 20))
    except Exception:
        pass
    return 48 << 20          # v7x-safe fallback (64 MiB physical)


_VMEM_LIMIT_BYTES = _compute_vmem_limit()


def _mosaic_params(semantics):
    return pltpu.CompilerParams(dimension_semantics=tuple(semantics),
                                vmem_limit_bytes=_VMEM_LIMIT_BYTES)


def _choose_th(H, row_width, target=4096):
    """Largest divisor TH of H with TH*row_width <= target rows of M per dot."""
    th = 1
    for cand in range(1, H + 1):
        if H % cand == 0 and cand * row_width <= target:
            th = cand
    return th


def _choose_tm(M, cap):
    """M tile for flattened matmul kernels: multiple of 8, divisor of M when
    possible (no pad round-trip), >=2 grid steps so both v7x cores get work."""
    divs = [t for t in range(8, min(M, cap) + 1, 8) if M % t == 0]
    for t in reversed(divs):
        if M // t >= 2:
            return t, M
    if M <= cap:
        return M, M
    if divs:
        return divs[-1], M
    return cap, cap * (-(-M // cap))


# ----------------------------- Pallas kernels --------------------------------
def _conv3x3_kernel(*refs, d, TH, W, apply_lrelu, slope, has_residual):
    if has_residual:
        x_ref, w_ref, r_ref, o_ref = refs
    else:
        x_ref, w_ref, o_ref = refs
    C = x_ref.shape[-1]
    Cout = o_ref.shape[-1]
    row0 = pl.program_id(1) * TH
    acc = jnp.zeros((TH * W, Cout), jnp.float32)
    for ky in range(3):
        rows = x_ref[0, pl.ds(row0 + ky * d, TH), :, :]           # (TH, Wp, C)
        for kx in range(3):
            tap = rows[:, kx * d:kx * d + W, :].reshape(TH * W, C)
            acc = acc + jnp.dot(tap, w_ref[ky * 3 + kx],
                                preferred_element_type=jnp.float32)
    if apply_lrelu:
        acc = jnp.where(acc >= 0, acc, acc * slope)
    if has_residual:
        acc = acc + r_ref[0, :, :, :].reshape(TH * W, Cout).astype(jnp.float32)
    o_ref[...] = acc.reshape(1, TH, W, Cout).astype(o_ref.dtype)


def _epi_kernel(x_ref, w1_ref, w2_ref, o_ref, *, a, Wo, C, slope):
    # In-kernel a*a tap gather: input arrives as (1, TH, Wo+a-1, a*C); tap
    # (q, r) is a static slice, so no patch tensor is ever written to HBM.
    TH = o_ref.shape[1]
    EpiC = w1_ref.shape[-1]
    acc = jnp.zeros((TH * Wo, EpiC), jnp.float32)
    for q in range(a):
        cols = x_ref[0, :, pl.ds(q, Wo), :]                       # (TH, Wo, a*C)
        for r in range(a):
            tap = cols[:, :, r * C:(r + 1) * C].reshape(TH * Wo, C)
            acc = acc + jnp.dot(tap, w1_ref[q * a + r],
                                preferred_element_type=jnp.float32)
    acc = jnp.where(acc >= 0, acc, acc * slope)
    y = jnp.dot(acc.astype(w2_ref.dtype), w2_ref[...],
                preferred_element_type=jnp.float32)
    y = jnp.where(y >= 0, y, y * slope)
    o_ref[...] = y.reshape(o_ref.shape).astype(o_ref.dtype)


def _mm2_kernel(x_ref, w1_ref, w2_ref, o_ref, *, slope):
    # conv -> LReLU -> 1x1 -> LReLU fused; the intermediate never hits HBM.
    h = jnp.dot(x_ref[...], w1_ref[...], preferred_element_type=jnp.float32)
    h = jnp.where(h >= 0, h, h * slope)
    h = jnp.dot(h.astype(w2_ref.dtype), w2_ref[...],
                preferred_element_type=jnp.float32)
    h = jnp.where(h >= 0, h, h * slope)
    o_ref[...] = h.astype(o_ref.dtype)


def _fuse_kernel(spa_ref, ang_ref, eh_ref, ev_ref, ws_ref, wa_ref, wh_ref,
                 wv_ref, o_ref, *, slope):
    # concat(spa, ang, epiH, epiV) @ W1 without the concat: 4 accumulated dots.
    acc = jnp.dot(spa_ref[...], ws_ref[...], preferred_element_type=jnp.float32)
    acc = acc + jnp.dot(ang_ref[...], wa_ref[...], preferred_element_type=jnp.float32)
    acc = acc + jnp.dot(eh_ref[...], wh_ref[...], preferred_element_type=jnp.float32)
    acc = acc + jnp.dot(ev_ref[...], wv_ref[...], preferred_element_type=jnp.float32)
    acc = jnp.where(acc >= 0, acc, acc * slope)
    o_ref[...] = acc.astype(o_ref.dtype)


# ------------------------------ call wrappers ---------------------------------
def conv_dil3x3(x, w, d, lrelu, residual=None):
    """3x3 conv, stride 1, dilation=padding=d, no bias, NHWC input.  Optionally
    fuses LeakyReLU and/or a residual add; bf16 output unless residual-fused."""
    B, H, W, C = x.shape
    Cout = w.shape[0]
    TH = _choose_th(H, W)
    # TODO(synk): fold the zero padding into the kernel with edge-tile masking
    # to drop this XLA pad pass over the activation.
    xp = jnp.pad(x.astype(jnp.bfloat16), ((0, 0), (d, d), (d, d), (0, 0)))
    wt = jnp.transpose(w, (2, 3, 1, 0)).reshape(9, C, Cout).astype(jnp.bfloat16)

    in_specs = [
        # Whole padded image stays VMEM-resident across the H-tile axis: all
        # nine taps come from one block (no per-tap DMA, no overlap re-reads).
        pl.BlockSpec((1, H + 2 * d, W + 2 * d, C), lambda b, h: (b, 0, 0, 0)),
        pl.BlockSpec(memory_space=_VMEM),
    ]
    args = [xp, wt]
    if residual is not None:
        in_specs.append(pl.BlockSpec((1, TH, W, Cout), lambda b, h: (b, h, 0, 0)))
        args.append(residual)
    out_dtype = jnp.float32 if residual is not None else jnp.bfloat16
    return pl.pallas_call(
        functools.partial(_conv3x3_kernel, d=d, TH=TH, W=W, apply_lrelu=lrelu,
                          slope=LRELU_SLOPE, has_residual=residual is not None),
        out_shape=jax.ShapeDtypeStruct((B, H, W, Cout), out_dtype),
        grid=(B, H // TH),
        in_specs=in_specs,
        out_specs=pl.BlockSpec((1, TH, W, Cout), lambda b, h: (b, h, 0, 0)),
        compiler_params=_mosaic_params(("parallel", "parallel")),
    )(*args)


def epi_branch(xb, w1, w2, a):
    """EPIConv (k=[1,a*a], s=[1,a]) + LReLU + 1x1 + LReLU + PixelShuffle1D(a)."""
    B, H, W, C = xb.shape
    EpiC = w1.shape[0]
    Wo = W // a
    padw = a * (a - 1) // 2
    xp = jnp.pad(xb, ((0, 0), (0, 0), (padw, padw), (0, 0)))
    xp = xp.reshape(B, H, Wo + a - 1, a * C)                     # free reshape
    w1m = jnp.transpose(w1[:, :, 0, :], (2, 1, 0)).astype(jnp.bfloat16)   # (a*a,C,EpiC)
    w2m = w2.reshape(a * EpiC, EpiC).T.astype(jnp.bfloat16)               # (EpiC,a*EpiC)
    TH = _choose_th(H, Wo)
    out = pl.pallas_call(
        functools.partial(_epi_kernel, a=a, Wo=Wo, C=C, slope=LRELU_SLOPE),
        out_shape=jax.ShapeDtypeStruct((B, H, Wo, a * EpiC), jnp.bfloat16),
        grid=(B, H // TH),
        in_specs=[pl.BlockSpec((1, TH, Wo + a - 1, a * C),
                               lambda b, h: (b, h, 0, 0)),
                  pl.BlockSpec(memory_space=_VMEM),
                  pl.BlockSpec(memory_space=_VMEM)],
        out_specs=pl.BlockSpec((1, TH, Wo, a * EpiC), lambda b, h: (b, h, 0, 0)),
        compiler_params=_mosaic_params(("parallel", "parallel")),
    )(xp, w1m, w2m)
    return out.reshape(B, H, W, EpiC)     # PixelShuffle1D == free NHWC reshape


def pallas_matmul2(x, w1, w2, tm_cap=512):
    """y = LReLU(LReLU(x @ w1) @ w2), both dots fused; bf16 in/out, f32 acc."""
    M, K = x.shape
    N2 = w2.shape[1]
    tm, Mp = _choose_tm(M, tm_cap)
    xb = x.astype(jnp.bfloat16)
    if Mp != M:
        xb = jnp.pad(xb, ((0, Mp - M), (0, 0)))
    out = pl.pallas_call(
        functools.partial(_mm2_kernel, slope=LRELU_SLOPE),
        out_shape=jax.ShapeDtypeStruct((Mp, N2), jnp.bfloat16),
        grid=(Mp // tm,),
        in_specs=[pl.BlockSpec((tm, K), lambda i: (i, 0)),
                  pl.BlockSpec(memory_space=_VMEM),
                  pl.BlockSpec(memory_space=_VMEM)],
        out_specs=pl.BlockSpec((tm, N2), lambda i: (i, 0)),
        compiler_params=_mosaic_params(("parallel",)),
    )(xb, w1.astype(jnp.bfloat16), w2.astype(jnp.bfloat16))
    return out if Mp == M else out[:M]


def ang_branch(xb, w1, w2, a):
    """AngConv (k=a, s=a) + LReLU + 1x1 + LReLU fused, then PixelShuffle(a)."""
    B, H, W, C = xb.shape
    Ho, Wo = H // a, W // a
    AngC = w1.shape[0]
    # TODO(synk): move the a x a patch gather + pixel shuffle in-kernel (same
    # pattern as _epi_kernel) to drop these two wrapper-level XLA transposes.
    p = xb.reshape(B, Ho, a, Wo, a, C).transpose(0, 1, 3, 2, 4, 5)
    p = p.reshape(B * Ho * Wo, a * a * C)
    wm1 = jnp.transpose(w1, (2, 3, 1, 0)).reshape(a * a * C, AngC)
    wm2 = w2.reshape(a * a * AngC, AngC).T
    y = pallas_matmul2(p, wm1, wm2)                      # (B*Ho*Wo, a*a*AngC)
    y = y.reshape(B, Ho, Wo, AngC, a, a).transpose(0, 1, 4, 2, 5, 3)
    return y.reshape(B, H, W, AngC)


def fuse_1x1(spa, ang, eh, ev, w1):
    """LReLU(concat(spa, ang, epiH, epiV) @ fuse_w1) without the HBM concat."""
    B, H, W, SpaC = spa.shape
    AngC, EpiC = ang.shape[-1], eh.shape[-1]
    Cout = w1.shape[0]
    w1m = w1.reshape(Cout, SpaC + AngC + 2 * EpiC).T.astype(jnp.bfloat16)
    ws = w1m[:SpaC]
    wa = w1m[SpaC:SpaC + AngC]
    wh = w1m[SpaC + AngC:SpaC + AngC + EpiC]
    wv = w1m[SpaC + AngC + EpiC:]
    M = B * H * W
    tm, Mp = _choose_tm(M, 1024)

    def prep(t):
        t2 = t.reshape(M, t.shape[-1]).astype(jnp.bfloat16)
        if Mp != M:
            t2 = jnp.pad(t2, ((0, Mp - M), (0, 0)))
        return t2

    out = pl.pallas_call(
        functools.partial(_fuse_kernel, slope=LRELU_SLOPE),
        out_shape=jax.ShapeDtypeStruct((Mp, Cout), jnp.bfloat16),
        grid=(Mp // tm,),
        in_specs=[pl.BlockSpec((tm, SpaC), lambda i: (i, 0)),
                  pl.BlockSpec((tm, AngC), lambda i: (i, 0)),
                  pl.BlockSpec((tm, EpiC), lambda i: (i, 0)),
                  pl.BlockSpec((tm, EpiC), lambda i: (i, 0)),
                  pl.BlockSpec(memory_space=_VMEM),
                  pl.BlockSpec(memory_space=_VMEM),
                  pl.BlockSpec(memory_space=_VMEM),
                  pl.BlockSpec(memory_space=_VMEM)],
        out_specs=pl.BlockSpec((tm, Cout), lambda i: (i, 0)),
        compiler_params=_mosaic_params(("parallel",)),
    )(prep(spa), prep(ang), prep(eh), prep(ev), ws, wa, wh, wv)
    if Mp != M:
        out = out[:M]
    return out.reshape(B, H, W, Cout)


# ------------------------------ model forward ---------------------------------
def disentg_block(x, p, a):
    xb = x.astype(jnp.bfloat16)          # one shared cast per block for branches
    feaSpa = conv_dil3x3(xb, p["spa_w1"], a, True)
    feaSpa = conv_dil3x3(feaSpa, p["spa_w2"], a, True)
    feaAng = ang_branch(xb, p["ang_w1"], p["ang_w2"], a)
    feaEpiH = epi_branch(xb, p["epi_w1"], p["epi_w2"], a)
    # TODO(synk): dedicated vertical-EPI kernel to drop these two transposes.
    feaEpiV = jnp.swapaxes(
        epi_branch(jnp.swapaxes(xb, 1, 2), p["epi_w1"], p["epi_w2"], a), 1, 2)
    buf = fuse_1x1(feaSpa, feaAng, feaEpiH, feaEpiV, p["fuse_w1"])
    # fuse_w2 3x3 conv with the residual add fused in-kernel (f32 chain).
    return conv_dil3x3(buf, p["fuse_w2"], a, False, residual=x)


def disentg_group(x, gp, a):
    buf = x
    for bp in gp["blocks"]:
        buf = disentg_block(buf, bp, a)
    return conv_dil3x3(buf, gp["conv"], a, False, residual=x)


def cascade_forward(x_nchw, params, a):
    # NCHW <-> NHWC only at the model boundary.
    x = jnp.transpose(x_nchw, (0, 2, 3, 1))
    buf = x
    for gp in params["groups"]:
        buf = disentg_group(buf, gp, a)
    out = conv_dil3x3(buf, params["conv"], a, False, residual=x)
    return jnp.transpose(out, (0, 3, 1, 2))


# ------------------------------ params init -----------------------------------
def init_params(key, n_group, n_block, a, C):
    SpaC, AngC, EpiC = C, C // 4, C // 2
    fuse_in = SpaC + AngC + 2 * EpiC

    def w(k, shape):
        return (jax.random.normal(k, shape, jnp.float32) * 0.05).astype(jnp.float32)

    n_keys = n_group * (n_block * 8 + 1) + 1
    keys = iter(jax.random.split(key, n_keys))

    groups = []
    for _ in range(n_group):
        blocks = []
        for _ in range(n_block):
            blocks.append({
                "spa_w1": w(next(keys), (SpaC, C, 3, 3)),
                "spa_w2": w(next(keys), (SpaC, SpaC, 3, 3)),
                "ang_w1": w(next(keys), (AngC, C, a, a)),
                "ang_w2": w(next(keys), (a * a * AngC, AngC, 1, 1)),
                "epi_w1": w(next(keys), (EpiC, C, 1, a * a)),
                "epi_w2": w(next(keys), (a * EpiC, EpiC, 1, 1)),
                "fuse_w1": w(next(keys), (C, fuse_in, 1, 1)),
                "fuse_w2": w(next(keys), (C, C, 3, 3)),
            })
        groups.append({"blocks": blocks, "conv": w(next(keys), (C, C, 3, 3))})
    return {"groups": groups, "conv": w(next(keys), (C, C, 3, 3))}


# ----------------------------------- main --------------------------------------
if __name__ == "__main__":
    N_GROUP, N_BLOCK, ANG_RES, CHANNELS = 2, 2, 2, 8
    B, H, W = 2, 8, 8          # H, W must be multiples of angRes

    key = jax.random.PRNGKey(0)
    kx, kp = jax.random.split(key)
    x = jax.random.normal(kx, (B, CHANNELS, H, W), jnp.float32)
    params = init_params(kp, N_GROUP, N_BLOCK, ANG_RES, CHANNELS)

    fwd = jax.jit(lambda xx, pp: cascade_forward(xx, pp, ANG_RES))
    out = fwd(x, params)
    jax.block_until_ready(out)
    assert out.shape == (B, CHANNELS, H, W)
    print("KERNEL_OK")
</pallas_src>

<mosaic_0001>
module attributes {stable_mosaic.version = 11 : i64} {
  func.func @_epi_kernel(%arg0: i32, %arg1: i32, %arg2: memref<1x8x5x16xbf16, #tpu.memory_space<vmem>>, %arg3: memref<4x8x4xbf16, #tpu.memory_space<vmem>>, %arg4: memref<4x8xbf16, #tpu.memory_space<vmem>>, %arg5: memref<1x8x4x8xbf16, #tpu.memory_space<vmem>>) attributes {dimension_semantics = [#tpu.dimension_semantics<parallel>, #tpu.dimension_semantics<parallel>], iteration_bounds = array<i64: 2, 1>, scalar_prefetch = 0 : i64, scratch_operands = 0 : i64, tpu.core_type = #tpu.core_type<tc>, window_params = [{transform_indices = @transform_0, window_bounds = array<i64: 1, 8, 5, 16>}, {pipeline_mode = #tpu.pipeline_mode<synchronous>, transform_indices = @transform_1, window_bounds = array<i64: 4, 8, 4>}, {pipeline_mode = #tpu.pipeline_mode<synchronous>, transform_indices = @transform_2, window_bounds = array<i64: 4, 8>}, {transform_indices = @transform_3, window_bounds = array<i64: 1, 8, 4, 8>}]} {
    %cst = arith.constant 0.000000e+00 : f32
    %0 = vector.broadcast %cst : f32 to vector<32x4xf32>
    %c0 = arith.constant 0 : index
    %c0_0 = arith.constant 0 : index
    %c0_1 = arith.constant 0 : index
    %c0_2 = arith.constant 0 : index
    %1 = vector.load %arg2[%c0, %c0_0, %c0_1, %c0_2] : memref<1x8x5x16xbf16, #tpu.memory_space<vmem>>, vector<1x8x4x16xbf16>
    %2 = vector.shape_cast %1 : vector<1x8x4x16xbf16> to vector<8x4x16xbf16>
    %3 = vector.extract_strided_slice %2 {offsets = [0, 0, 0], sizes = [8, 4, 8], strides = [1, 1, 1]} : vector<8x4x16xbf16> to vector<8x4x8xbf16>
    %4 = vector.shape_cast %3 : vector<8x4x8xbf16> to vector<32x8xbf16>
    %c0_3 = arith.constant 0 : index
    %c0_4 = arith.constant 0 : index
    %c0_5 = arith.constant 0 : index
    %5 = vector.load %arg3[%c0_3, %c0_4, %c0_5] : memref<4x8x4xbf16, #tpu.memory_space<vmem>>, vector<1x8x4xbf16>
    %6 = vector.shape_cast %5 : vector<1x8x4xbf16> to vector<8x4xbf16>
    %cst_6 = arith.constant dense<0.000000e+00> : vector<32x4xf32>
    %7 = tpu.matmul %4, %6, %cst_6 {dimension_numbers = #tpu.dot_dimension_numbers<[1], [0], [0], [1], [0, 0, 1, 1], [], []>} : vector<32x8xbf16>, vector<8x4xbf16>, vector<32x4xf32> -> vector<32x4xf32>
    %8 = arith.addf %0, %7 : vector<32x4xf32>
    %9 = vector.extract_strided_slice %2 {offsets = [0, 0, 8], sizes = [8, 4, 8], strides = [1, 1, 1]} : vector<8x4x16xbf16> to vector<8x4x8xbf16>
    %10 = vector.shape_cast %9 : vector<8x4x8xbf16> to vector<32x8xbf16>
    %c1 = arith.constant 1 : index
    %c0_7 = arith.constant 0 : index
    %c0_8 = arith.constant 0 : index
    %11 = vector.load %arg3[%c1, %c0_7, %c0_8] : memref<4x8x4xbf16, #tpu.memory_space<vmem>>, vector<1x8x4xbf16>
    %12 = vector.shape_cast %11 : vector<1x8x4xbf16> to vector<8x4xbf16>
    %cst_9 = arith.constant dense<0.000000e+00> : vector<32x4xf32>
    %13 = tpu.matmul %10, %12, %cst_9 {dimension_numbers = #tpu.dot_dimension_numbers<[1], [0], [0], [1], [0, 0, 1, 1], [], []>} : vector<32x8xbf16>, vector<8x4xbf16>, vector<32x4xf32> -> vector<32x4xf32>
    %14 = arith.addf %8, %13 : vector<32x4xf32>
    %c0_10 = arith.constant 0 : index
    %c0_11 = arith.constant 0 : index
    %c1_12 = arith.constant 1 : index
    %c0_13 = arith.constant 0 : index
    %15 = vector.load %arg2[%c0_10, %c0_11, %c1_12, %c0_13] : memref<1x8x5x16xbf16, #tpu.memory_space<vmem>>, vector<1x8x4x16xbf16>
    %16 = vector.shape_cast %15 : vector<1x8x4x16xbf16> to vector<8x4x16xbf16>
    %17 = vector.extract_strided_slice %16 {offsets = [0, 0, 0], sizes = [8, 4, 8], strides = [1, 1, 1]} : vector<8x4x16xbf16> to vector<8x4x8xbf16>
    %18 = vector.shape_cast %17 : vector<8x4x8xbf16> to vector<32x8xbf16>
    %c2 = arith.constant 2 : index
    %c0_14 = arith.constant 0 : index
    %c0_15 = arith.constant 0 : index
    %19 = vector.load %arg3[%c2, %c0_14, %c0_15] : memref<4x8x4xbf16, #tpu.memory_space<vmem>>, vector<1x8x4xbf16>
    %20 = vector.shape_cast %19 : vector<1x8x4xbf16> to vector<8x4xbf16>
    %cst_16 = arith.constant dense<0.000000e+00> : vector<32x4xf32>
    %21 = tpu.matmul %18, %20, %cst_16 {dimension_numbers = #tpu.dot_dimension_numbers<[1], [0], [0], [1], [0, 0, 1, 1], [], []>} : vector<32x8xbf16>, vector<8x4xbf16>, vector<32x4xf32> -> vector<32x4xf32>
    %22 = arith.addf %14, %21 : vector<32x4xf32>
    %23 = vector.extract_strided_slice %16 {offsets = [0, 0, 8], sizes = [8, 4, 8], strides = [1, 1, 1]} : vector<8x4x16xbf16> to vector<8x4x8xbf16>
    %24 = vector.shape_cast %23 : vector<8x4x8xbf16> to vector<32x8xbf16>
    %c3 = arith.constant 3 : index
    %c0_17 = arith.constant 0 : index
    %c0_18 = arith.constant 0 : index
    %25 = vector.load %arg3[%c3, %c0_17, %c0_18] : memref<4x8x4xbf16, #tpu.memory_space<vmem>>, vector<1x8x4xbf16>
    %26 = vector.shape_cast %25 : vector<1x8x4xbf16> to vector<8x4xbf16>
    %cst_19 = arith.constant dense<0.000000e+00> : vector<32x4xf32>
    %27 = tpu.matmul %24, %26, %cst_19 {dimension_numbers = #tpu.dot_dimension_numbers<[1], [0], [0], [1], [0, 0, 1, 1], [], []>} : vector<32x8xbf16>, vector<8x4xbf16>, vector<32x4xf32> -> vector<32x4xf32>
    %28 = arith.addf %22, %27 : vector<32x4xf32>
    %cst_20 = arith.constant 0.000000e+00 : f32
    %29 = vector.broadcast %cst_20 : f32 to vector<32x4xf32>
    %30 = arith.cmpf oge, %28, %29 : vector<32x4xf32>
    %cst_21 = arith.constant 1.000000e-01 : f32
    %31 = vector.broadcast %cst_21 : f32 to vector<32x4xf32>
    %32 = arith.mulf %28, %31 : vector<32x4xf32>
    %33 = arith.select %30, %28, %32 : vector<32x4xi1>, vector<32x4xf32>
    %34 = arith.truncf %33 : vector<32x4xf32> to vector<32x4xbf16>
    %c0_22 = arith.constant 0 : index
    %c0_23 = arith.constant 0 : index
    %35 = vector.load %arg4[%c0_22, %c0_23] : memref<4x8xbf16, #tpu.memory_space<vmem>>, vector<4x8xbf16>
    %cst_24 = arith.constant dense<0.000000e+00> : vector<32x8xf32>
    %36 = tpu.matmul %34, %35, %cst_24 {dimension_numbers = #tpu.dot_dimension_numbers<[1], [0], [0], [1], [0, 0, 1, 1], [], []>} : vector<32x4xbf16>, vector<4x8xbf16>, vector<32x8xf32> -> vector<32x8xf32>
    %cst_25 = arith.constant 0.000000e+00 : f32
    %37 = vector.broadcast %cst_25 : f32 to vector<32x8xf32>
    %38 = arith.cmpf oge, %36, %37 : vector<32x8xf32>
    %cst_26 = arith.constant 1.000000e-01 : f32
    %39 = vector.broadcast %cst_26 : f32 to vector<32x8xf32>
    %40 = arith.mulf %36, %39 : vector<32x8xf32>
    %41 = arith.select %38, %36, %40 : vector<32x8xi1>, vector<32x8xf32>
    %42 = vector.shape_cast %41 : vector<32x8xf32> to vector<1x8x4x8xf32>
    %43 = arith.truncf %42 : vector<1x8x4x8xf32> to vector<1x8x4x8xbf16>
    %c0_27 = arith.constant 0 : index
    %c0_28 = arith.constant 0 : index
    %c0_29 = arith.constant 0 : index
    %c0_30 = arith.constant 0 : index
    %44 = vector.load %arg5[%c0_27, %c0_28, %c0_29, %c0_30] : memref<1x8x4x8xbf16, #tpu.memory_space<vmem>>, vector<1x8x4x8xbf16>
    tpu.vector_store %arg5[%c0_27, %c0_28, %c0_29, %c0_30], %43 {strides = array<i32>} : memref<1x8x4x8xbf16, #tpu.memory_space<vmem>>, vector<1x8x4x8xbf16>,
    return
  }
  func.func @transform_0(%arg0: i32, %arg1: i32) -> (i32, i32, i32, i32) {
    %c0_i32 = arith.constant 0 : i32
    %c0_i32_0 = arith.constant 0 : i32
    %c0_i32_1 = arith.constant 0 : i32
    return %arg0, %arg1, %c0_i32, %c0_i32_0 : i32, i32, i32, i32
  }
  func.func @transform_1(%arg0: i32, %arg1: i32) -> (i32, i32, i32) {
    %c0_i32 = arith.constant 0 : i32
    %c0_i32_0 = arith.constant 0 : i32
    %c0_i32_1 = arith.constant 0 : i32
    %c0_i32_2 = arith.constant 0 : i32
    return %c0_i32, %c0_i32_0, %c0_i32_1 : i32, i32, i32
  }
  func.func @transform_2(%arg0: i32, %arg1: i32) -> (i32, i32) {
    %c0_i32 = arith.constant 0 : i32
    %c0_i32_0 = arith.constant 0 : i32
    %c0_i32_1 = arith.constant 0 : i32
    return %c0_i32, %c0_i32_0 : i32, i32
  }
  func.func @transform_3(%arg0: i32, %arg1: i32) -> (i32, i32, i32, i32) {
    %c0_i32 = arith.constant 0 : i32
    %c0_i32_0 = arith.constant 0 : i32
    %c0_i32_1 = arith.constant 0 : i32
    return %arg0, %arg1, %c0_i32, %c0_i32_0 : i32, i32, i32, i32
  }
}

module attributes {stable_mosaic.version = 11 : i64} {
  func.func @_conv3x3_kernel(%arg0: i32, %arg1: i32, %arg2: memref<1x12x12x8xbf16, #tpu.memory_space<vmem>>, %arg3: memref<9x8x8xbf16, #tpu.memory_space<vmem>>, %arg4: memref<1x8x8x8xbf16, #tpu.memory_space<vmem>>) attributes {dimension_semantics = [#tpu.dimension_semantics<parallel>, #tpu.dimension_semantics<parallel>], iteration_bounds = array<i64: 2, 1>, scalar_prefetch = 0 : i64, scratch_operands = 0 : i64, tpu.core_type = #tpu.core_type<tc>, window_params = [{transform_indices = @transform_0, window_bounds = array<i64: 1, 12, 12, 8>}, {pipeline_mode = #tpu.pipeline_mode<synchronous>, transform_indices = @transform_1, window_bounds = array<i64: 9, 8, 8>}, {transform_indices = @transform_2, window_bounds = array<i64: 1, 8, 8, 8>}]} {
    %c8_i32 = arith.constant 8 : i32
    %0 = arith.muli %arg1, %c8_i32 : i32
    %cst = arith.constant 0.000000e+00 : f32
    %1 = vector.broadcast %cst : f32 to vector<64x8xf32>
    %c0_i32 = arith.constant 0 : i32
    %2 = arith.addi %0, %c0_i32 : i32
    %c0 = arith.constant 0 : index
    %3 = arith.index_cast %2 : i32 to index
    %c0_0 = arith.constant 0 : index
    %c0_1 = arith.constant 0 : index
    %4 = vector.load %arg2[%c0, %3, %c0_0, %c0_1] : memref<1x12x12x8xbf16, #tpu.memory_space<vmem>>, vector<1x8x12x8xbf16>
    %5 = vector.shape_cast %4 : vector<1x8x12x8xbf16> to vector<8x12x8xbf16>
    %6 = vector.extract_strided_slice %5 {offsets = [0, 0, 0], sizes = [8, 8, 8], strides = [1, 1, 1]} : vector<8x12x8xbf16> to vector<8x8x8xbf16>
    %7 = vector.shape_cast %6 : vector<8x8x8xbf16> to vector<64x8xbf16>
    %c0_2 = arith.constant 0 : index
    %c0_3 = arith.constant 0 : index
    %c0_4 = arith.constant 0 : index
    %8 = vector.load %arg3[%c0_2, %c0_3, %c0_4] : memref<9x8x8xbf16, #tpu.memory_space<vmem>>, vector<1x8x8xbf16>
    %9 = vector.shape_cast %8 : vector<1x8x8xbf16> to vector<8x8xbf16>
    %cst_5 = arith.constant dense<0.000000e+00> : vector<64x8xf32>
    %10 = tpu.matmul %7, %9, %cst_5 {dimension_numbers = #tpu.dot_dimension_numbers<[1], [0], [0], [1], [0, 0, 1, 1], [], []>} : vector<64x8xbf16>, vector<8x8xbf16>, vector<64x8xf32> -> vector<64x8xf32>
    %11 = arith.addf %1, %10 : vector<64x8xf32>
    %12 = vector.extract_strided_slice %5 {offsets = [0, 2, 0], sizes = [8, 8, 8], strides = [1, 1, 1]} : vector<8x12x8xbf16> to vector<8x8x8xbf16>
    %13 = vector.shape_cast %12 : vector<8x8x8xbf16> to vector<64x8xbf16>
    %c1 = arith.constant 1 : index
    %c0_6 = arith.constant 0 : index
    %c0_7 = arith.constant 0 : index
    %14 = vector.load %arg3[%c1, %c0_6, %c0_7] : memref<9x8x8xbf16, #tpu.memory_space<vmem>>, vector<1x8x8xbf16>
    %15 = vector.shape_cast %14 : vector<1x8x8xbf16> to vector<8x8xbf16>
    %cst_8 = arith.constant dense<0.000000e+00> : vector<64x8xf32>
    %16 = tpu.matmul %13, %15, %cst_8 {dimension_numbers = #tpu.dot_dimension_numbers<[1], [0], [0], [1], [0, 0, 1, 1], [], []>} : vector<64x8xbf16>, vector<8x8xbf16>, vector<64x8xf32> -> vector<64x8xf32>
    %17 = arith.addf %11, %16 : vector<64x8xf32>
    %18 = vector.extract_strided_slice %5 {offsets = [0, 4, 0], sizes = [8, 8, 8], strides = [1, 1, 1]} : vector<8x12x8xbf16> to vector<8x8x8xbf16>
    %19 = vector.shape_cast %18 : vector<8x8x8xbf16> to vector<64x8xbf16>
    %c2 = arith.constant 2 : index
    %c0_9 = arith.constant 0 : index
    %c0_10 = arith.constant 0 : index
    %20 = vector.load %arg3[%c2, %c0_9, %c0_10] : memref<9x8x8xbf16, #tpu.memory_space<vmem>>, vector<1x8x8xbf16>
    %21 = vector.shape_cast %20 : vector<1x8x8xbf16> to vector<8x8xbf16>
    %cst_11 = arith.constant dense<0.000000e+00> : vector<64x8xf32>
    %22 = tpu.matmul %19, %21, %cst_11 {dimension_numbers = #tpu.dot_dimension_numbers<[1], [0], [0], [1], [0, 0, 1, 1], [], []>} : vector<64x8xbf16>, vector<8x8xbf16>, vector<64x8xf32> -> vector<64x8xf32>
    %23 = arith.addf %17, %22 : vector<64x8xf32>
    %c2_i32 = arith.constant 2 : i32
    %24 = arith.addi %0, %c2_i32 : i32
    %c0_12 = arith.constant 0 : index
    %25 = arith.index_cast %24 : i32 to index
    %c0_13 = arith.constant 0 : index
    %c0_14 = arith.constant 0 : index
    %26 = vector.load %arg2[%c0_12, %25, %c0_13, %c0_14] : memref<1x12x12x8xbf16, #tpu.memory_space<vmem>>, vector<1x8x12x8xbf16>
    %27 = vector.shape_cast %26 : vector<1x8x12x8xbf16> to vector<8x12x8xbf16>
    %28 = vector.extract_strided_slice %27 {offsets = [0, 0, 0], sizes = [8, 8, 8], strides = [1, 1, 1]} : vector<8x12x8xbf16> to vector<8x8x8xbf16>
    %29 = vector.shape_cast %28 : vector<8x8x8xbf16> to vector<64x8xbf16>
    %c3 = arith.constant 3 : index
    %c0_15 = arith.constant 0 : index
    %c0_16 = arith.constant 0 : index
    %30 = vector.load %arg3[%c3, %c0_15, %c0_16] : memref<9x8x8xbf16, #tpu.memory_space<vmem>>, vector<1x8x8xbf16>
    %31 = vector.shape_cast %30 : vector<1x8x8xbf16> to vector<8x8xbf16>
    %cst_17 = arith.constant dense<0.000000e+00> : vector<64x8xf32>
    %32 = tpu.matmul %29, %31, %cst_17 {dimension_numbers = #tpu.dot_dimension_numbers<[1], [0], [0], [1], [0, 0, 1, 1], [], []>} : vector<64x8xbf16>, vector<8x8xbf16>, vector<64x8xf32> -> vector<64x8xf32>
    %33 = arith.addf %23, %32 : vector<64x8xf32>
    %34 = vector.extract_strided_slice %27 {offsets = [0, 2, 0], sizes = [8, 8, 8], strides = [1, 1, 1]} : vector<8x12x8xbf16> to vector<8x8x8xbf16>
    %35 = vector.shape_cast %34 : vector<8x8x8xbf16> to vector<64x8xbf16>
    %c4 = arith.constant 4 : index
    %c0_18 = arith.constant 0 : index
    %c0_19 = arith.constant 0 : index
    %36 = vector.load %arg3[%c4, %c0_18, %c0_19] : memref<9x8x8xbf16, #tpu.memory_space<vmem>>, vector<1x8x8xbf16>
    %37 = vector.shape_cast %36 : vector<1x8x8xbf16> to vector<8x8xbf16>
    %cst_20 = arith.constant dense<0.000000e+00> : vector<64x8xf32>
    %38 = tpu.matmul %35, %37, %cst_20 {dimension_numbers = #tpu.dot_dimension_numbers<[1], [0], [0], [1], [0, 0, 1, 1], [], []>} : vector<64x8xbf16>, vector<8x8xbf16>, vector<64x8xf32> -> vector<64x8xf32>
    %39 = arith.addf %33, %38 : vector<64x8xf32>
    %40 = vector.extract_strided_slice %27 {offsets = [0, 4, 0], sizes = [8, 8, 8], strides = [1, 1, 1]} : vector<8x12x8xbf16> to vector<8x8x8xbf16>
    %41 = vector.shape_cast %40 : vector<8x8x8xbf16> to vector<64x8xbf16>
    %c5 = arith.constant 5 : index
    %c0_21 = arith.constant 0 : index
    %c0_22 = arith.constant 0 : index
    %42 = vector.load %arg3[%c5, %c0_21, %c0_22] : memref<9x8x8xbf16, #tpu.memory_space<vmem>>, vector<1x8x8xbf16>
    %43 = vector.shape_cast %42 : vector<1x8x8xbf16> to vector<8x8xbf16>
    %cst_23 = arith.constant dense<0.000000e+00> : vector<64x8xf32>
    %44 = tpu.matmul %41, %43, %cst_23 {dimension_numbers = #tpu.dot_dimension_numbers<[1], [0], [0], [1], [0, 0, 1, 1], [], []>} : vector<64x8xbf16>, vector<8x8xbf16>, vector<64x8xf32> -> vector<64x8xf32>
    %45 = arith.addf %39, %44 : vector<64x8xf32>
    %c4_i32 = arith.constant 4 : i32
    %46 = arith.addi %0, %c4_i32 : i32
    %c0_24 = arith.constant 0 : index
    %47 = arith.index_cast %46 : i32 to index
    %c0_25 = arith.constant 0 : index
    %c0_26 = arith.constant 0 : index
    %48 = vector.load %arg2[%c0_24, %47, %c0_25, %c0_26] : memref<1x12x12x8xbf16, #tpu.memory_space<vmem>>, vector<1x8x12x8xbf16>
    %49 = vector.shape_cast %48 : vector<1x8x12x8xbf16> to vector<8x12x8xbf16>
    %50 = vector.extract_strided_slice %49 {offsets = [0, 0, 0], sizes = [8, 8, 8], strides = [1, 1, 1]} : vector<8x12x8xbf16> to vector<8x8x8xbf16>
    %51 = vector.shape_cast %50 : vector<8x8x8xbf16> to vector<64x8xbf16>
    %c6 = arith.constant 6 : index
    %c0_27 = arith.constant 0 : index
    %c0_28 = arith.constant 0 : index
    %52 = vector.load %arg3[%c6, %c0_27, %c0_28] : memref<9x8x8xbf16, #tpu.memory_space<vmem>>, vector<1x8x8xbf16>
    %53 = vector.shape_cast %52 : vector<1x8x8xbf16> to vector<8x8xbf16>
    %cst_29 = arith.constant dense<0.000000e+00> : vector<64x8xf32>
    %54 = tpu.matmul %51, %53, %cst_29 {dimension_numbers = #tpu.dot_dimension_numbers<[1], [0], [0], [1], [0, 0, 1, 1], [], []>} : vector<64x8xbf16>, vector<8x8xbf16>, vector<64x8xf32> -> vector<64x8xf32>
    %55 = arith.addf %45, %54 : vector<64x8xf32>
    %56 = vector.extract_strided_slice %49 {offsets = [0, 2, 0], sizes = [8, 8, 8], strides = [1, 1, 1]} : vector<8x12x8xbf16> to vector<8x8x8xbf16>
    %57 = vector.shape_cast %56 : vector<8x8x8xbf16> to vector<64x8xbf16>
    %c7 = arith.constant 7 : index
    %c0_30 = arith.constant 0 : index
    %c0_31 = arith.constant 0 : index
    %58 = vector.load %arg3[%c7, %c0_30, %c0_31] : memref<9x8x8xbf16, #tpu.memory_space<vmem>>, vector<1x8x8xbf16>
    %59 = vector.shape_cast %58 : vector<1x8x8xbf16> to vector<8x8xbf16>
    %cst_32 = arith.constant dense<0.000000e+00> : vector<64x8xf32>
    %60 = tpu.matmul %57, %59, %cst_32 {dimension_numbers = #tpu.dot_dimension_numbers<[1], [0], [0], [1], [0, 0, 1, 1], [], []>} : vector<64x8xbf16>, vector<8x8xbf16>, vector<64x8xf32> -> vector<64x8xf32>
    %61 = arith.addf %55, %60 : vector<64x8xf32>
    %62 = vector.extract_strided_slice %49 {offsets = [0, 4, 0], sizes = [8, 8, 8], strides = [1, 1, 1]} : vector<8x12x8xbf16> to vector<8x8x8xbf16>
    %63 = vector.shape_cast %62 : vector<8x8x8xbf16> to vector<64x8xbf16>
    %c8 = arith.constant 8 : index
    %c0_33 = arith.constant 0 : index
    %c0_34 = arith.constant 0 : index
    %64 = vector.load %arg3[%c8, %c0_33, %c0_34] : memref<9x8x8xbf16, #tpu.memory_space<vmem>>, vector<1x8x8xbf16>
    %65 = vector.shape_cast %64 : vector<1x8x8xbf16> to vector<8x8xbf16>
    %cst_35 = arith.constant dense<0.000000e+00> : vector<64x8xf32>
    %66 = tpu.matmul %63, %65, %cst_35 {dimension_numbers = #tpu.dot_dimension_numbers<[1], [0], [0], [1], [0, 0, 1, 1], [], []>} : vector<64x8xbf16>, vector<8x8xbf16>, vector<64x8xf32> -> vector<64x8xf32>
    %67 = arith.addf %61, %66 : vector<64x8xf32>
    %cst_36 = arith.constant 0.000000e+00 : f32
    %68 = vector.broadcast %cst_36 : f32 to vector<64x8xf32>
    %69 = arith.cmpf oge, %67, %68 : vector<64x8xf32>
    %cst_37 = arith.constant 1.000000e-01 : f32
    %70 = vector.broadcast %cst_37 : f32 to vector<64x8xf32>
    %71 = arith.mulf %67, %70 : vector<64x8xf32>
    %72 = arith.select %69, %67, %71 : vector<64x8xi1>, vector<64x8xf32>
    %73 = vector.shape_cast %72 : vector<64x8xf32> to vector<1x8x8x8xf32>
    %74 = arith.truncf %73 : vector<1x8x8x8xf32> to vector<1x8x8x8xbf16>
    %c0_38 = arith.constant 0 : index
    %c0_39 = arith.constant 0 : index
    %c0_40 = arith.constant 0 : index
    %c0_41 = arith.constant 0 : index
    %75 = vector.load %arg4[%c0_38, %c0_39, %c0_40, %c0_41] : memref<1x8x8x8xbf16, #tpu.memory_space<vmem>>, vector<1x8x8x8xbf16>
    tpu.vector_store %arg4[%c0_38, %c0_39, %c0_40, %c0_41], %74 {strides = array<i32>} : memref<1x8x8x8xbf16, #tpu.memory_space<vmem>>, vector<1x8x8x8xbf16>,
    return
  }
  func.func @transform_0(%arg0: i32, %arg1: i32) -> (i32, i32, i32, i32) {
    %c0_i32 = arith.constant 0 : i32
    %c0_i32_0 = arith.constant 0 : i32
    %c0_i32_1 = arith.constant 0 : i32
    %c0_i32_2 = arith.constant 0 : i32
    return %arg0, %c0_i32, %c0_i32_0, %c0_i32_1 : i32, i32, i32, i32
  }
  func.func @transform_1(%arg0: i32, %arg1: i32) -> (i32, i32, i32) {
    %c0_i32 = arith.constant 0 : i32
    %c0_i32_0 = arith.constant 0 : i32
    %c0_i32_1 = arith.constant 0 : i32
    %c0_i32_2 = arith.constant 0 : i32
    return %c0_i32, %c0_i32_0, %c0_i32_1 : i32, i32, i32
  }
  func.func @transform_2(%arg0: i32, %arg1: i32) -> (i32, i32, i32, i32) {
    %c0_i32 = arith.constant 0 : i32
    %c0_i32_0 = arith.constant 0 : i32
    %c0_i32_1 = arith.constant 0 : i32
    return %arg0, %arg1, %c0_i32, %c0_i32_0 : i32, i32, i32, i32
  }
}

module attributes {stable_mosaic.version = 11 : i64} {
  func.func @_mm2_kernel(%arg0: i32, %arg1: memref<16x32xbf16, #tpu.memory_space<vmem>>, %arg2: memref<32x2xbf16, #tpu.memory_space<vmem>>, %arg3: memref<2x8xbf16, #tpu.memory_space<vmem>>, %arg4: memref<16x8xbf16, #tpu.memory_space<vmem>>) attributes {dimension_semantics = [#tpu.dimension_semantics<parallel>], iteration_bounds = array<i64: 2>, scalar_prefetch = 0 : i64, scratch_operands = 0 : i64, tpu.core_type = #tpu.core_type<tc>, window_params = [{transform_indices = @transform_0, window_bounds = array<i64: 16, 32>}, {pipeline_mode = #tpu.pipeline_mode<synchronous>, transform_indices = @transform_1, window_bounds = array<i64: 32, 2>}, {pipeline_mode = #tpu.pipeline_mode<synchronous>, transform_indices = @transform_2, window_bounds = array<i64: 2, 8>}, {transform_indices = @transform_3, window_bounds = array<i64: 16, 8>}]} {
    %c0 = arith.constant 0 : index
    %c0_0 = arith.constant 0 : index
    %0 = vector.load %arg1[%c0, %c0_0] : memref<16x32xbf16, #tpu.memory_space<vmem>>, vector<16x32xbf16>
    %c0_1 = arith.constant 0 : index
    %c0_2 = arith.constant 0 : index
    %1 = vector.load %arg2[%c0_1, %c0_2] : memref<32x2xbf16, #tpu.memory_space<vmem>>, vector<32x2xbf16>
    %cst = arith.constant dense<0.000000e+00> : vector<16x2xf32>
    %2 = tpu.matmul %0, %1, %cst {dimension_numbers = #tpu.dot_dimension_numbers<[1], [0], [0], [1], [0, 0, 1, 1], [], []>} : vector<16x32xbf16>, vector<32x2xbf16>, vector<16x2xf32> -> vector<16x2xf32>
    %cst_3 = arith.constant 0.000000e+00 : f32
    %3 = vector.broadcast %cst_3 : f32 to vector<16x2xf32>
    %4 = arith.cmpf oge, %2, %3 : vector<16x2xf32>
    %cst_4 = arith.constant 1.000000e-01 : f32
    %5 = vector.broadcast %cst_4 : f32 to vector<16x2xf32>
    %6 = arith.mulf %2, %5 : vector<16x2xf32>
    %7 = arith.select %4, %2, %6 : vector<16x2xi1>, vector<16x2xf32>
    %8 = arith.truncf %7 : vector<16x2xf32> to vector<16x2xbf16>
    %c0_5 = arith.constant 0 : index
    %c0_6 = arith.constant 0 : index
    %9 = vector.load %arg3[%c0_5, %c0_6] : memref<2x8xbf16, #tpu.memory_space<vmem>>, vector<2x8xbf16>
    %cst_7 = arith.constant dense<0.000000e+00> : vector<16x8xf32>
    %10 = tpu.matmul %8, %9, %cst_7 {dimension_numbers = #tpu.dot_dimension_numbers<[1], [0], [0], [1], [0, 0, 1, 1], [], []>} : vector<16x2xbf16>, vector<2x8xbf16>, vector<16x8xf32> -> vector<16x8xf32>
    %cst_8 = arith.constant 0.000000e+00 : f32
    %11 = vector.broadcast %cst_8 : f32 to vector<16x8xf32>
    %12 = arith.cmpf oge, %10, %11 : vector<16x8xf32>
    %cst_9 = arith.constant 1.000000e-01 : f32
    %13 = vector.broadcast %cst_9 : f32 to vector<16x8xf32>
    %14 = arith.mulf %10, %13 : vector<16x8xf32>
    %15 = arith.select %12, %10, %14 : vector<16x8xi1>, vector<16x8xf32>
    %16 = arith.truncf %15 : vector<16x8xf32> to vector<16x8xbf16>
    %c0_10 = arith.constant 0 : index
    %c0_11 = arith.constant 0 : index
    %17 = vector.load %arg4[%c0_10, %c0_11] : memref<16x8xbf16, #tpu.memory_space<vmem>>, vector<16x8xbf16>
    tpu.vector_store %arg4[%c0_10, %c0_11], %16 {strides = array<i32>} : memref<16x8xbf16, #tpu.memory_space<vmem>>, vector<16x8xbf16>,
    return
  }
  func.func @transform_0(%arg0: i32) -> (i32, i32) {
    %c0_i32 = arith.constant 0 : i32
    %c0_i32_0 = arith.constant 0 : i32
    return %arg0, %c0_i32 : i32, i32
  }
  func.func @transform_1(%arg0: i32) -> (i32, i32) {
    %c0_i32 = arith.constant 0 : i32
    %c0_i32_0 = arith.constant 0 : i32
    %c0_i32_1 = arith.constant 0 : i32
    return %c0_i32, %c0_i32_0 : i32, i32
  }
  func.func @transform_2(%arg0: i32) -> (i32, i32) {
    %c0_i32 = arith.constant 0 : i32
    %c0_i32_0 = arith.constant 0 : i32
    %c0_i32_1 = arith.constant 0 : i32
    return %c0_i32, %c0_i32_0 : i32, i32
  }
  func.func @transform_3(%arg0: i32) -> (i32, i32) {
    %c0_i32 = arith.constant 0 : i32
    %c0_i32_0 = arith.constant 0 : i32
    return %arg0, %c0_i32 : i32, i32
  }
}

module attributes {stable_mosaic.version = 11 : i64} {
  func.func @_fuse_kernel(%arg0: i32, %arg1: memref<64x8xbf16, #tpu.memory_space<vmem>>, %arg2: memref<64x2xbf16, #tpu.memory_space<vmem>>, %arg3: memref<64x4xbf16, #tpu.memory_space<vmem>>, %arg4: memref<64x4xbf16, #tpu.memory_space<vmem>>, %arg5: memref<8x8xbf16, #tpu.memory_space<vmem>>, %arg6: memref<2x8xbf16, #tpu.memory_space<vmem>>, %arg7: memref<4x8xbf16, #tpu.memory_space<vmem>>, %arg8: memref<4x8xbf16, #tpu.memory_space<vmem>>, %arg9: memref<64x8xbf16, #tpu.memory_space<vmem>>) attributes {dimension_semantics = [#tpu.dimension_semantics<parallel>], iteration_bounds = array<i64: 2>, scalar_prefetch = 0 : i64, scratch_operands = 0 : i64, tpu.core_type = #tpu.core_type<tc>, window_params = [{transform_indices = @transform_0, window_bounds = array<i64: 64, 8>}, {transform_indices = @transform_1, window_bounds = array<i64: 64, 2>}, {transform_indices = @transform_2, window_bounds = array<i64: 64, 4>}, {transform_indices = @transform_3, window_bounds = array<i64: 64, 4>}, {pipeline_mode = #tpu.pipeline_mode<synchronous>, transform_indices = @transform_4, window_bounds = array<i64: 8, 8>}, {pipeline_mode = #tpu.pipeline_mode<synchronous>, transform_indices = @transform_5, window_bounds = array<i64: 2, 8>}, {pipeline_mode = #tpu.pipeline_mode<synchronous>, transform_indices = @transform_6, window_bounds = array<i64: 4, 8>}, {pipeline_mode = #tpu.pipeline_mode<synchronous>, transform_indices = @transform_7, window_bounds = array<i64: 4, 8>}, {transform_indices = @transform_8, window_bounds = array<i64: 64, 8>}]} {
    %c0 = arith.constant 0 : index
    %c0_0 = arith.constant 0 : index
    %0 = vector.load %arg1[%c0, %c0_0] : memref<64x8xbf16, #tpu.memory_space<vmem>>, vector<64x8xbf16>
    %c0_1 = arith.constant 0 : index
    %c0_2 = arith.constant 0 : index
    %1 = vector.load %arg5[%c0_1, %c0_2] : memref<8x8xbf16, #tpu.memory_space<vmem>>, vector<8x8xbf16>
    %cst = arith.constant dense<0.000000e+00> : vector<64x8xf32>
    %2 = tpu.matmul %0, %1, %cst {dimension_numbers = #tpu.dot_dimension_numbers<[1], [0], [0], [1], [0, 0, 1, 1], [], []>} : vector<64x8xbf16>, vector<8x8xbf16>, vector<64x8xf32> -> vector<64x8xf32>
    %c0_3 = arith.constant 0 : index
    %c0_4 = arith.constant 0 : index
    %3 = vector.load %arg2[%c0_3, %c0_4] : memref<64x2xbf16, #tpu.memory_space<vmem>>, vector<64x2xbf16>
    %c0_5 = arith.constant 0 : index
    %c0_6 = arith.constant 0 : index
    %4 = vector.load %arg6[%c0_5, %c0_6] : memref<2x8xbf16, #tpu.memory_space<vmem>>, vector<2x8xbf16>
    %cst_7 = arith.constant dense<0.000000e+00> : vector<64x8xf32>
    %5 = tpu.matmul %3, %4, %cst_7 {dimension_numbers = #tpu.dot_dimension_numbers<[1], [0], [0], [1], [0, 0, 1, 1], [], []>} : vector<64x2xbf16>, vector<2x8xbf16>, vector<64x8xf32> -> vector<64x8xf32>
    %6 = arith.addf %2, %5 : vector<64x8xf32>
    %c0_8 = arith.constant 0 : index
    %c0_9 = arith.constant 0 : index
    %7 = vector.load %arg3[%c0_8, %c0_9] : memref<64x4xbf16, #tpu.memory_space<vmem>>, vector<64x4xbf16>
    %c0_10 = arith.constant 0 : index
    %c0_11 = arith.constant 0 : index
    %8 = vector.load %arg7[%c0_10, %c0_11] : memref<4x8xbf16, #tpu.memory_space<vmem>>, vector<4x8xbf16>
    %cst_12 = arith.constant dense<0.000000e+00> : vector<64x8xf32>
    %9 = tpu.matmul %7, %8, %cst_12 {dimension_numbers = #tpu.dot_dimension_numbers<[1], [0], [0], [1], [0, 0, 1, 1], [], []>} : vector<64x4xbf16>, vector<4x8xbf16>, vector<64x8xf32> -> vector<64x8xf32>
    %10 = arith.addf %6, %9 : vector<64x8xf32>
    %c0_13 = arith.constant 0 : index
    %c0_14 = arith.constant 0 : index
    %11 = vector.load %arg4[%c0_13, %c0_14] : memref<64x4xbf16, #tpu.memory_space<vmem>>, vector<64x4xbf16>
    %c0_15 = arith.constant 0 : index
    %c0_16 = arith.constant 0 : index
    %12 = vector.load %arg8[%c0_15, %c0_16] : memref<4x8xbf16, #tpu.memory_space<vmem>>, vector<4x8xbf16>
    %cst_17 = arith.constant dense<0.000000e+00> : vector<64x8xf32>
    %13 = tpu.matmul %11, %12, %cst_17 {dimension_numbers = #tpu.dot_dimension_numbers<[1], [0], [0], [1], [0, 0, 1, 1], [], []>} : vector<64x4xbf16>, vector<4x8xbf16>, vector<64x8xf32> -> vector<64x8xf32>
    %14 = arith.addf %10, %13 : vector<64x8xf32>
    %cst_18 = arith.constant 0.000000e+00 : f32
    %15 = vector.broadcast %cst_18 : f32 to vector<64x8xf32>
    %16 = arith.cmpf oge, %14, %15 : vector<64x8xf32>
    %cst_19 = arith.constant 1.000000e-01 : f32
    %17 = vector.broadcast %cst_19 : f32 to vector<64x8xf32>
    %18 = arith.mulf %14, %17 : vector<64x8xf32>
    %19 = arith.select %16, %14, %18 : vector<64x8xi1>, vector<64x8xf32>
    %20 = arith.truncf %19 : vector<64x8xf32> to vector<64x8xbf16>
    %c0_20 = arith.constant 0 : index
    %c0_21 = arith.constant 0 : index
    %21 = vector.load %arg9[%c0_20, %c0_21] : memref<64x8xbf16, #tpu.memory_space<vmem>>, vector<64x8xbf16>
    tpu.vector_store %arg9[%c0_20, %c0_21], %20 {strides = array<i32>} : memref<64x8xbf16, #tpu.memory_space<vmem>>, vector<64x8xbf16>,
    return
  }
  func.func @transform_0(%arg0: i32) -> (i32, i32) {
    %c0_i32 = arith.constant 0 : i32
    %c0_i32_0 = arith.constant 0 : i32
    return %arg0, %c0_i32 : i32, i32
  }
  func.func @transform_1(%arg0: i32) -> (i32, i32) {
    %c0_i32 = arith.constant 0 : i32
    %c0_i32_0 = arith.constant 0 : i32
    return %arg0, %c0_i32 : i32, i32
  }
  func.func @transform_2(%arg0: i32) -> (i32, i32) {
    %c0_i32 = arith.constant 0 : i32
    %c0_i32_0 = arith.constant 0 : i32
    return %arg0, %c0_i32 : i32, i32
  }
  func.func @transform_3(%arg0: i32) -> (i32, i32) {
    %c0_i32 = arith.constant 0 : i32
    %c0_i32_0 = arith.constant 0 : i32
    return %arg0, %c0_i32 : i32, i32
  }
  func.func @transform_4(%arg0: i32) -> (i32, i32) {
    %c0_i32 = arith.constant 0 : i32
    %c0_i32_0 = arith.constant 0 : i32
    %c0_i32_1 = arith.constant 0 : i32
    return %c0_i32, %c0_i32_0 : i32, i32
  }
  func.func @transform_5(%arg0: i32) -> (i32, i32) {
    %c0_i32 = arith.constant 0 : i32
    %c0_i32_0 = arith.constant 0 : i32
    %c0_i32_1 = arith.constant 0 : i32
    return %c0_i32, %c0_i32_0 : i32, i32
  }
  func.func @transform_6(%arg0: i32) -> (i32, i32) {
    %c0_i32 = arith.constant 0 : i32
    %c0_i32_0 = arith.constant 0 : i32
    %c0_i32_1 = arith.constant 0 : i32
    return %c0_i32, %c0_i32_0 : i32, i32
  }
  func.func @transform_7(%arg0: i32) -> (i32, i32) {
    %c0_i32 = arith.constant 0 : i32
    %c0_i32_0 = arith.constant 0 : i32
    %c0_i32_1 = arith.constant 0 : i32
    return %c0_i32, %c0_i32_0 : i32, i32
  }
  func.func @transform_8(%arg0: i32) -> (i32, i32) {
    %c0_i32 = arith.constant 0 : i32
    %c0_i32_0 = arith.constant 0 : i32
    return %arg0, %c0_i32 : i32, i32
  }
}

module attributes {stable_mosaic.version = 11 : i64} {
  func.func @_conv3x3_kernel(%arg0: i32, %arg1: i32, %arg2: memref<1x12x12x8xbf16, #tpu.memory_space<vmem>>, %arg3: memref<9x8x8xbf16, #tpu.memory_space<vmem>>, %arg4: memref<1x8x8x8xf32, #tpu.memory_space<vmem>>, %arg5: memref<1x8x8x8xf32, #tpu.memory_space<vmem>>) attributes {dimension_semantics = [#tpu.dimension_semantics<parallel>, #tpu.dimension_semantics<parallel>], iteration_bounds = array<i64: 2, 1>, scalar_prefetch = 0 : i64, scratch_operands = 0 : i64, tpu.core_type = #tpu.core_type<tc>, window_params = [{transform_indices = @transform_0, window_bounds = array<i64: 1, 12, 12, 8>}, {pipeline_mode = #tpu.pipeline_mode<synchronous>, transform_indices = @transform_1, window_bounds = array<i64: 9, 8, 8>}, {transform_indices = @transform_2, window_bounds = array<i64: 1, 8, 8, 8>}, {transform_indices = @transform_3, window_bounds = array<i64: 1, 8, 8, 8>}]} {
    %c8_i32 = arith.constant 8 : i32
    %0 = arith.muli %arg1, %c8_i32 : i32
    %cst = arith.constant 0.000000e+00 : f32
    %1 = vector.broadcast %cst : f32 to vector<64x8xf32>
    %c0_i32 = arith.constant 0 : i32
    %2 = arith.addi %0, %c0_i32 : i32
    %c0 = arith.constant 0 : index
    %3 = arith.index_cast %2 : i32 to index
    %c0_0 = arith.constant 0 : index
    %c0_1 = arith.constant 0 : index
    %4 = vector.load %arg2[%c0, %3, %c0_0, %c0_1] : memref<1x12x12x8xbf16, #tpu.memory_space<vmem>>, vector<1x8x12x8xbf16>
    %5 = vector.shape_cast %4 : vector<1x8x12x8xbf16> to vector<8x12x8xbf16>
    %6 = vector.extract_strided_slice %5 {offsets = [0, 0, 0], sizes = [8, 8, 8], strides = [1, 1, 1]} : vector<8x12x8xbf16> to vector<8x8x8xbf16>
    %7 = vector.shape_cast %6 : vector<8x8x8xbf16> to vector<64x8xbf16>
    %c0_2 = arith.constant 0 : index
    %c0_3 = arith.constant 0 : index
    %c0_4 = arith.constant 0 : index
    %8 = vector.load %arg3[%c0_2, %c0_3, %c0_4] : memref<9x8x8xbf16, #tpu.memory_space<vmem>>, vector<1x8x8xbf16>
    %9 = vector.shape_cast %8 : vector<1x8x8xbf16> to vector<8x8xbf16>
    %cst_5 = arith.constant dense<0.000000e+00> : vector<64x8xf32>
    %10 = tpu.matmul %7, %9, %cst_5 {dimension_numbers = #tpu.dot_dimension_numbers<[1], [0], [0], [1], [0, 0, 1, 1], [], []>} : vector<64x8xbf16>, vector<8x8xbf16>, vector<64x8xf32> -> vector<64x8xf32>
    %11 = arith.addf %1, %10 : vector<64x8xf32>
    %12 = vector.extract_strided_slice %5 {offsets = [0, 2, 0], sizes = [8, 8, 8], strides = [1, 1, 1]} : vector<8x12x8xbf16> to vector<8x8x8xbf16>
    %13 = vector.shape_cast %12 : vector<8x8x8xbf16> to vector<64x8xbf16>
    %c1 = arith.constant 1 : index
    %c0_6 = arith.constant 0 : index
    %c0_7 = arith.constant 0 : index
    %14 = vector.load %arg3[%c1, %c0_6, %c0_7] : memref<9x8x8xbf16, #tpu.memory_space<vmem>>, vector<1x8x8xbf16>
    %15 = vector.shape_cast %14 : vector<1x8x8xbf16> to vector<8x8xbf16>
    %cst_8 = arith.constant dense<0.000000e+00> : vector<64x8xf32>
    %16 = tpu.matmul %13, %15, %cst_8 {dimension_numbers = #tpu.dot_dimension_numbers<[1], [0], [0], [1], [0, 0, 1, 1], [], []>} : vector<64x8xbf16>, vector<8x8xbf16>, vector<64x8xf32> -> vector<64x8xf32>
    %17 = arith.addf %11, %16 : vector<64x8xf32>
    %18 = vector.extract_strided_slice %5 {offsets = [0, 4, 0], sizes = [8, 8, 8], strides = [1, 1, 1]} : vector<8x12x8xbf16> to vector<8x8x8xbf16>
    %19 = vector.shape_cast %18 : vector<8x8x8xbf16> to vector<64x8xbf16>
    %c2 = arith.constant 2 : index
    %c0_9 = arith.constant 0 : index
    %c0_10 = arith.constant 0 : index
    %20 = vector.load %arg3[%c2, %c0_9, %c0_10] : memref<9x8x8xbf16, #tpu.memory_space<vmem>>, vector<1x8x8xbf16>
    %21 = vector.shape_cast %20 : vector<1x8x8xbf16> to vector<8x8xbf16>
    %cst_11 = arith.constant dense<0.000000e+00> : vector<64x8xf32>
    %22 = tpu.matmul %19, %21, %cst_11 {dimension_numbers = #tpu.dot_dimension_numbers<[1], [0], [0], [1], [0, 0, 1, 1], [], []>} : vector<64x8xbf16>, vector<8x8xbf16>, vector<64x8xf32> -> vector<64x8xf32>
    %23 = arith.addf %17, %22 : vector<64x8xf32>
    %c2_i32 = arith.constant 2 : i32
    %24 = arith.addi %0, %c2_i32 : i32
    %c0_12 = arith.constant 0 : index
    %25 = arith.index_cast %24 : i32 to index
    %c0_13 = arith.constant 0 : index
    %c0_14 = arith.constant 0 : index
    %26 = vector.load %arg2[%c0_12, %25, %c0_13, %c0_14] : memref<1x12x12x8xbf16, #tpu.memory_space<vmem>>, vector<1x8x12x8xbf16>
    %27 = vector.shape_cast %26 : vector<1x8x12x8xbf16> to vector<8x12x8xbf16>
    %28 = vector.extract_strided_slice %27 {offsets = [0, 0, 0], sizes = [8, 8, 8], strides = [1, 1, 1]} : vector<8x12x8xbf16> to vector<8x8x8xbf16>
    %29 = vector.shape_cast %28 : vector<8x8x8xbf16> to vector<64x8xbf16>
    %c3 = arith.constant 3 : index
    %c0_15 = arith.constant 0 : index
    %c0_16 = arith.constant 0 : index
    %30 = vector.load %arg3[%c3, %c0_15, %c0_16] : memref<9x8x8xbf16, #tpu.memory_space<vmem>>, vector<1x8x8xbf16>
    %31 = vector.shape_cast %30 : vector<1x8x8xbf16> to vector<8x8xbf16>
    %cst_17 = arith.constant dense<0.000000e+00> : vector<64x8xf32>
    %32 = tpu.matmul %29, %31, %cst_17 {dimension_numbers = #tpu.dot_dimension_numbers<[1], [0], [0], [1], [0, 0, 1, 1], [], []>} : vector<64x8xbf16>, vector<8x8xbf16>, vector<64x8xf32> -> vector<64x8xf32>
    %33 = arith.addf %23, %32 : vector<64x8xf32>
    %34 = vector.extract_strided_slice %27 {offsets = [0, 2, 0], sizes = [8, 8, 8], strides = [1, 1, 1]} : vector<8x12x8xbf16> to vector<8x8x8xbf16>
    %35 = vector.shape_cast %34 : vector<8x8x8xbf16> to vector<64x8xbf16>
    %c4 = arith.constant 4 : index
    %c0_18 = arith.constant 0 : index
    %c0_19 = arith.constant 0 : index
    %36 = vector.load %arg3[%c4, %c0_18, %c0_19] : memref<9x8x8xbf16, #tpu.memory_space<vmem>>, vector<1x8x8xbf16>
    %37 = vector.shape_cast %36 : vector<1x8x8xbf16> to vector<8x8xbf16>
    %cst_20 = arith.constant dense<0.000000e+00> : vector<64x8xf32>
    %38 = tpu.matmul %35, %37, %cst_20 {dimension_numbers = #tpu.dot_dimension_numbers<[1], [0], [0], [1], [0, 0, 1, 1], [], []>} : vector<64x8xbf16>, vector<8x8xbf16>, vector<64x8xf32> -> vector<64x8xf32>
    %39 = arith.addf %33, %38 : vector<64x8xf32>
    %40 = vector.extract_strided_slice %27 {offsets = [0, 4, 0], sizes = [8, 8, 8], strides = [1, 1, 1]} : vector<8x12x8xbf16> to vector<8x8x8xbf16>
    %41 = vector.shape_cast %40 : vector<8x8x8xbf16> to vector<64x8xbf16>
    %c5 = arith.constant 5 : index
    %c0_21 = arith.constant 0 : index
    %c0_22 = arith.constant 0 : index
    %42 = vector.load %arg3[%c5, %c0_21, %c0_22] : memref<9x8x8xbf16, #tpu.memory_space<vmem>>, vector<1x8x8xbf16>
    %43 = vector.shape_cast %42 : vector<1x8x8xbf16> to vector<8x8xbf16>
    %cst_23 = arith.constant dense<0.000000e+00> : vector<64x8xf32>
    %44 = tpu.matmul %41, %43, %cst_23 {dimension_numbers = #tpu.dot_dimension_numbers<[1], [0], [0], [1], [0, 0, 1, 1], [], []>} : vector<64x8xbf16>, vector<8x8xbf16>, vector<64x8xf32> -> vector<64x8xf32>
    %45 = arith.addf %39, %44 : vector<64x8xf32>
    %c4_i32 = arith.constant 4 : i32
    %46 = arith.addi %0, %c4_i32 : i32
    %c0_24 = arith.constant 0 : index
    %47 = arith.index_cast %46 : i32 to index
    %c0_25 = arith.constant 0 : index
    %c0_26 = arith.constant 0 : index
    %48 = vector.load %arg2[%c0_24, %47, %c0_25, %c0_26] : memref<1x12x12x8xbf16, #tpu.memory_space<vmem>>, vector<1x8x12x8xbf16>
    %49 = vector.shape_cast %48 : vector<1x8x12x8xbf16> to vector<8x12x8xbf16>
    %50 = vector.extract_strided_slice %49 {offsets = [0, 0, 0], sizes = [8, 8, 8], strides = [1, 1, 1]} : vector<8x12x8xbf16> to vector<8x8x8xbf16>
    %51 = vector.shape_cast %50 : vector<8x8x8xbf16> to vector<64x8xbf16>
    %c6 = arith.constant 6 : index
    %c0_27 = arith.constant 0 : index
    %c0_28 = arith.constant 0 : index
    %52 = vector.load %arg3[%c6, %c0_27, %c0_28] : memref<9x8x8xbf16, #tpu.memory_space<vmem>>, vector<1x8x8xbf16>
    %53 = vector.shape_cast %52 : vector<1x8x8xbf16> to vector<8x8xbf16>
    %cst_29 = arith.constant dense<0.000000e+00> : vector<64x8xf32>
    %54 = tpu.matmul %51, %53, %cst_29 {dimension_numbers = #tpu.dot_dimension_numbers<[1], [0], [0], [1], [0, 0, 1, 1], [], []>} : vector<64x8xbf16>, vector<8x8xbf16>, vector<64x8xf32> -> vector<64x8xf32>
    %55 = arith.addf %45, %54 : vector<64x8xf32>
    %56 = vector.extract_strided_slice %49 {offsets = [0, 2, 0], sizes = [8, 8, 8], strides = [1, 1, 1]} : vector<8x12x8xbf16> to vector<8x8x8xbf16>
    %57 = vector.shape_cast %56 : vector<8x8x8xbf16> to vector<64x8xbf16>
    %c7 = arith.constant 7 : index
    %c0_30 = arith.constant 0 : index
    %c0_31 = arith.constant 0 : index
    %58 = vector.load %arg3[%c7, %c0_30, %c0_31] : memref<9x8x8xbf16, #tpu.memory_space<vmem>>, vector<1x8x8xbf16>
    %59 = vector.shape_cast %58 : vector<1x8x8xbf16> to vector<8x8xbf16>
    %cst_32 = arith.constant dense<0.000000e+00> : vector<64x8xf32>
    %60 = tpu.matmul %57, %59, %cst_32 {dimension_numbers = #tpu.dot_dimension_numbers<[1], [0], [0], [1], [0, 0, 1, 1], [], []>} : vector<64x8xbf16>, vector<8x8xbf16>, vector<64x8xf32> -> vector<64x8xf32>
    %61 = arith.addf %55, %60 : vector<64x8xf32>
    %62 = vector.extract_strided_slice %49 {offsets = [0, 4, 0], sizes = [8, 8, 8], strides = [1, 1, 1]} : vector<8x12x8xbf16> to vector<8x8x8xbf16>
    %63 = vector.shape_cast %62 : vector<8x8x8xbf16> to vector<64x8xbf16>
    %c8 = arith.constant 8 : index
    %c0_33 = arith.constant 0 : index
    %c0_34 = arith.constant 0 : index
    %64 = vector.load %arg3[%c8, %c0_33, %c0_34] : memref<9x8x8xbf16, #tpu.memory_space<vmem>>, vector<1x8x8xbf16>
    %65 = vector.shape_cast %64 : vector<1x8x8xbf16> to vector<8x8xbf16>
    %cst_35 = arith.constant dense<0.000000e+00> : vector<64x8xf32>
    %66 = tpu.matmul %63, %65, %cst_35 {dimension_numbers = #tpu.dot_dimension_numbers<[1], [0], [0], [1], [0, 0, 1, 1], [], []>} : vector<64x8xbf16>, vector<8x8xbf16>, vector<64x8xf32> -> vector<64x8xf32>
    %67 = arith.addf %61, %66 : vector<64x8xf32>
    %c0_36 = arith.constant 0 : index
    %c0_37 = arith.constant 0 : index
    %c0_38 = arith.constant 0 : index
    %c0_39 = arith.constant 0 : index
    %68 = vector.load %arg4[%c0_36, %c0_37, %c0_38, %c0_39] : memref<1x8x8x8xf32, #tpu.memory_space<vmem>>, vector<1x8x8x8xf32>
    %69 = vector.shape_cast %68 : vector<1x8x8x8xf32> to vector<8x8x8xf32>
    %70 = vector.shape_cast %69 : vector<8x8x8xf32> to vector<64x8xf32>
    %71 = arith.addf %67, %70 : vector<64x8xf32>
    %72 = vector.shape_cast %71 : vector<64x8xf32> to vector<1x8x8x8xf32>
    %c0_40 = arith.constant 0 : index
    %c0_41 = arith.constant 0 : index
    %c0_42 = arith.constant 0 : index
    %c0_43 = arith.constant 0 : index
    %73 = vector.load %arg5[%c0_40, %c0_41, %c0_42, %c0_43] : memref<1x8x8x8xf32, #tpu.memory_space<vmem>>, vector<1x8x8x8xf32>
    tpu.vector_store %arg5[%c0_40, %c0_41, %c0_42, %c0_43], %72 {strides = array<i32>} : memref<1x8x8x8xf32, #tpu.memory_space<vmem>>, vector<1x8x8x8xf32>,
    return
  }
  func.func @transform_0(%arg0: i32, %arg1: i32) -> (i32, i32, i32, i32) {
    %c0_i32 = arith.constant 0 : i32
    %c0_i32_0 = arith.constant 0 : i32
    %c0_i32_1 = arith.constant 0 : i32
    %c0_i32_2 = arith.constant 0 : i32
    return %arg0, %c0_i32, %c0_i32_0, %c0_i32_1 : i32, i32, i32, i32
  }
  func.func @transform_1(%arg0: i32, %arg1: i32) -> (i32, i32, i32) {
    %c0_i32 = arith.constant 0 : i32
    %c0_i32_0 = arith.constant 0 : i32
    %c0_i32_1 = arith.constant 0 : i32
    %c0_i32_2 = arith.constant 0 : i32
    return %c0_i32, %c0_i32_0, %c0_i32_1 : i32, i32, i32
  }
  func.func @transform_2(%arg0: i32, %arg1: i32) -> (i32, i32, i32, i32) {
    %c0_i32 = arith.constant 0 : i32
    %c0_i32_0 = arith.constant 0 : i32
    %c0_i32_1 = arith.constant 0 : i32
    return %arg0, %arg1, %c0_i32, %c0_i32_0 : i32, i32, i32, i32
  }
  func.func @transform_3(%arg0: i32, %arg1: i32) -> (i32, i32, i32, i32) {
    %c0_i32 = arith.constant 0 : i32
    %c0_i32_0 = arith.constant 0 : i32
    %c0_i32_1 = arith.constant 0 : i32
    return %arg0, %arg1, %c0_i32, %c0_i32_0 : i32, i32, i32, i32
  }
}

</mosaic_0001>

<llo_original>
// kernel: _lambda_.33
$region0: #{_lambda_.33}
  #allocation0 [shape = 'u32[]', space=smem, size = 0x4, offset = 0x4, fixed_abs, tag = 'smem constant byte address 0x4 - core index']
  #allocation1 [shape = 'u32[144,128]{1,0:T(1,128)}', space=vmem, size = 0x12000, scoped, tag = 'internal scratch']
  %s0 = inlined_call_operand.vmem [shape: bf16[32,32], index: 0, kind: input, shape index: {}]
  %s1 = inlined_call_operand.vmem [shape: bf16[32,2], index: 1, kind: input, shape index: {}]
  %s2 = inlined_call_operand.vmem [shape: bf16[2,8], index: 2, kind: input, shape index: {}]
  %s3 = inlined_call_operand.vmem [shape: bf16[32,8], index: 3, kind: output, shape index: {}]
  %s4 = sld [smem:[#allocation0]]
  $region45: #{_lambda_.33} parent=0
    _
  %s6 = ssub.s32 1, %s4
  %s7 = scalar_select 0, %s6, %s4
  loop: start=0, step=1, limit=4
  $region2: #{_lambda_.33} parent=0 // loop_pre_header
    _
  $region3: #{_lambda_.33} parent=0 // loop_header
    %s9 = sphi 0, %s13
    %p10 = scmp.ge.s32.totalorder %s9, 4
    %s19 = sphi 0, %s21
    %s22 = sphi 0, %s19
    %s23 = sphi 0, %s22
    %s39 = sphi 0, %s23
    %s43 = sphi 0, %s43
    %s45 = sphi 0, %s43
    %s46 = sphi 0, %s45
    %s60 = sphi 0, %s46
    %s64 = sphi 0, %s64
    %s66 = sphi 0, %s64
    %s67 = sphi 0, %s66
    %s81 = sphi 0, %s67
    %s87 = sphi 0, %s89
    %s90 = sphi 0, %s87
    %s91 = sphi 0, %s90
    %s107 = sphi 0, %s91
  $region4: #{_lambda_.33} parent=0 // loop_header_branch
    %12 = sbr.rel (%p10) target = $region8
  $region5: #{_lambda_.33} parent=0 // loop_body
    %s14 = ssub.s32 %s9, 1
    %s15 = ssub.s32 %s9, 2
    %s16 = sadd.s32 %s9, 1
    %s17 = ssub.s32 %s9, %s16
    %p18 = scmp.eq.s32.totalorder %s17, 0
    %s20 = sadd.s32 %s19, 1
    %s21 = scalar_select %p18, %s19, %s20
    %p24 = pneg %p18
    %p25 = scmp.eq.s32.totalorder %s9, 1
    %p26 = por %p24, %p25
    %p27 = scmp.ne.s32.totalorder %s19, %s22
    %p28 = scmp.eq.s32.totalorder %s9, 0
    %p29 = por %p27, %p28
    %p30 = scmp.ne.s32.totalorder %s19, %s22
    %p31 = scmp.eq.s32.totalorder %s14, 1
    %p32 = por %p30, %p31
    %p33 = scmp.ne.s32.totalorder %s22, %s23
    %p34 = scmp.eq.s32.totalorder %s14, 0
    %p35 = por %p33, %p34
    %p36 = scmp.ne.s32.totalorder %s22, %s23
    %p37 = scmp.eq.s32.totalorder %s15, 1
    %p38 = por %p36, %p37
    %p40 = scmp.ne.s32.totalorder %s23, %s39
    %p41 = scmp.eq.s32.totalorder %s15, 0
    %p42 = por %p40, %p41
    %s44 = sadd.s32 %s43, 1
    %p47 = scmp.eq.s32.totalorder %s9, 1
    %p48 = scmp.ne.s32.totalorder %s43, %s45
    %p49 = scmp.eq.s32.totalorder %s9, 0
    %p50 = por %p48, %p49
    %p51 = scmp.ne.s32.totalorder %s43, %s45
    %p52 = scmp.eq.s32.totalorder %s14, 1
    %p53 = por %p51, %p52
    %p54 = scmp.ne.s32.totalorder %s45, %s46
    %p55 = scmp.eq.s32.totalorder %s14, 0
    %p56 = por %p54, %p55
    %p57 = scmp.ne.s32.totalorder %s45, %s46
    %p58 = scmp.eq.s32.totalorder %s15, 1
    %p59 = por %p57, %p58
    %p61 = scmp.ne.s32.totalorder %s46, %s60
    %p62 = scmp.eq.s32.totalorder %s15, 0
    %p63 = por %p61, %p62
    %s65 = sadd.s32 %s64, 1
    %p68 = scmp.eq.s32.totalorder %s9, 1
    %p69 = scmp.ne.s32.totalorder %s64, %s66
    %p70 = scmp.eq.s32.totalorder %s9, 0
    %p71 = por %p69, %p70
    %p72 = scmp.ne.s32.totalorder %s64, %s66
    %p73 = scmp.eq.s32.totalorder %s14, 1
    %p74 = por %p72, %p73
    %p75 = scmp.ne.s32.totalorder %s66, %s67
    %p76 = scmp.eq.s32.totalorder %s14, 0
    %p77 = por %p75, %p76
    %p78 = scmp.ne.s32.totalorder %s66, %s67
    %p79 = scmp.eq.s32.totalorder %s15, 1
    %p80 = por %p78, %p79
    %p82 = scmp.ne.s32.totalorder %s67, %s81
    %p83 = scmp.eq.s32.totalorder %s15, 0
    %p84 = por %p82, %p83
    %s85 = ssub.s32 %s9, %s16
    %p86 = scmp.eq.s32.totalorder %s85, 0
    %s88 = sadd.s32 %s87, 1
    %s89 = scalar_select %p86, %s87, %s88
    %p92 = pneg %p86
    %p93 = scmp.eq.s32.totalorder %s9, 1
    %p94 = por %p92, %p93
    %p95 = scmp.ne.s32.totalorder %s87, %s90
    %p96 = scmp.eq.s32.totalorder %s9, 0
    %p97 = por %p95, %p96
    %p98 = scmp.ne.s32.totalorder %s87, %s90
    %p99 = scmp.eq.s32.totalorder %s14, 1
    %p100 = por %p98, %p99
    %p101 = scmp.ne.s32.totalorder %s90, %s91
    %p102 = scmp.eq.s32.totalorder %s14, 0
    %p103 = por %p101, %p102
    %p104 = scmp.ne.s32.totalorder %s90, %s91
    %p105 = scmp.eq.s32.totalorder %s15, 1
    %p106 = por %p104, %p105
    %p108 = scmp.ne.s32.totalorder %s91, %s107
    %p109 = scmp.eq.s32.totalorder %s15, 0
    %p110 = por %p108, %p109
    %p111 = scmp.le.s32.totalorder 1, %s9
    %p112 = scmp.lt.s32.totalorder %s9, 3
    %p113 = pnand %p111, %p112
    %p114 = pneg %p113
    // Predicated region
    $region9: #{_lambda_.33} parent=5 // pred_check
      _
    $region10: #{_lambda_.33} parent=5 // pred_check_branch
      %116 = sbr.rel (%p113) target = $region12
    $region11: #{_lambda_.33} parent=5 // pred_region
      %s117 = ssub.s32 %s9, 1
      // Predicated region
      $region13: #{_lambda_.33} parent=11 // pred_check
        %p118 = pneg %p56
      $region14: #{_lambda_.33} parent=11 // pred_check_branch
        %120 = sbr.rel (%p118) target = $region16
      $region15: #{_lambda_.33} parent=11 // pred_region
        _
      $region16: #{_lambda_.33} parent=11 // pred_fallthru
        _
      // Predicated region
      $region17: #{_lambda_.33} parent=11 // pred_check
        %p121 = pneg %p77
      $region18: #{_lambda_.33} parent=11 // pred_check_branch
        %123 = sbr.rel (%p121) target = $region20
      $region19: #{_lambda_.33} parent=11 // pred_region
        _
      $region20: #{_lambda_.33} parent=11 // pred_fallthru
        _
    $region12: #{_lambda_.33} parent=5 // pred_fallthru
      _
    %p124 = scmp.lt.s32.totalorder %s9, 2
    // Predicated region
    $region21: #{_lambda_.33} parent=5 // pred_check
      %p125 = pneg %p124
    $region22: #{_lambda_.33} parent=5 // pred_check_branch
      %127 = sbr.rel (%p125) target = $region24
    $region23: #{_lambda_.33} parent=5 // pred_region
      // Predicated region
      $region25: #{_lambda_.33} parent=23 // pred_check
        %p128 = pneg %p29
      $region26: #{_lambda_.33} parent=23 // pred_check_branch
        %130 = sbr.rel (%p128) target = $region28
      $region27: #{_lambda_.33} parent=23 // pred_region
        %s131 = smul.u32 2, %s9
        %p132 = scmp.lt.s32.totalorder %s131, 3
        %s133 = scalar_select %p132, %s131, 3
        %s134 = smul.addr %s133, 4
        %s135 = scalar_lea.vmem %s0, %s134
        %s136 = smul.u32 2, %s9
      $region28: #{_lambda_.33} parent=23 // pred_fallthru
        _
    $region24: #{_lambda_.33} parent=5 // pred_fallthru
      _
    %p137 = scmp.le.s32.totalorder 1, %s9
    %p138 = scmp.lt.s32.totalorder %s9, 3
    %p139 = pnand %p137, %p138
    %p140 = pneg %p139
    // Predicated region
    $region29: #{_lambda_.33} parent=5 // pred_check
      _
    $region30: #{_lambda_.33} parent=5 // pred_check_branch
      %142 = sbr.rel (%p139) target = $region32
    $region31: #{_lambda_.33} parent=5 // pred_region
      %s143 = ssub.s32 %s9, 1
      %s144 = smul.u32 2, %s14
      %p145 = scmp.lt.s32.totalorder %s144, 3
      %s146 = scalar_select %p145, %s144, 3
      %s147 = smul.addr %s146, 4
      %s148 = scalar_lea.vmem %s0, %s147
      %p149 = pneg %p35
      %p150 = pneg %p32
      %p151 = pneg %p56
      %p152 = pneg %p53
      %p153 = pneg %p77
      %p154 = pneg %p74
      %p155 = pneg %p103
      %p156 = pneg %p100
      %s157 = smul.u32 2, %s14
      %p158 = scmp.lt.s32.totalorder %s157, 3
      %s159 = scalar_select %p158, %s157, 3
      %s160 = smul.addr %s159, 4
      %s161 = scalar_lea.vmem %s3, %s160
      %s162 = smul.u32 2, %s14
      %p163 = scmp.lt.s32.totalorder %s162, 3
      %s164 = scalar_select %p163, %s162, 3
      %s165 = smul.addr %s164, 4
      %s166 = scalar_lea.vmem %s0, %s165
      %s167 = smul.u32 2, %s14
      %s168 = smul.u32 2, %s14
      %p169 = scmp.lt.s32.totalorder %s168, 3
      %s170 = scalar_select %p169, %s168, 3
      %s171 = smul.addr %s170, 4
      %s172 = scalar_lea.vmem %s3, %s171
      %s173 = smul.u32 2, %s14
      %v175 = vld [vmem:[%s166] sm:$0xf]
      %v176 = vld [vmem:[%s166 + $0x4] sm:$0xf]
      %v177 = vld [vmem:[%s1] sm:$0xf]
      %v178 = vld [vmem:[%s1 + $0x4] sm:$0xf]
      %v179 = vld [vmem:[%s1 + $0x8] sm:$0xf]
      %v180 = vld [vmem:[%s1 + $0xc] sm:$0xf]
      %v183 = vunpack.c.l.b16 %v175
      %v184 = vunpack.c.l.b16 %v176
      %v185 = vpack.c.b16 %v184, %v183
      %v190 = vunpack.c.l.b16 %v177
      %v191 = vunpack.c.l.b16 %v178
      %v192 = vunpack.c.l.b16 %v179
      %v193 = vunpack.c.l.b16 %v180
      %v194 = vpack.c.b16 %v191, %v190
      %v195 = vpack.c.b16 %v193, %v192
      %vm198 = vcmask 261120
      %v200 = vsel %vm198, %v185, 0
      %202 = vmatprep.subr.bf16.mxu0 0
      %203 = vmatpush1.bf16.msra.mxu0 %v194
      %204 = vmatprep.subr.bf16.mxu0 0
      %205 = vmatpush1.bf16.msra.mxu0 %v195
      %206 = vmatprep.subr.bf16.mxu0 0
      %207 = vmatpush1.bf16.msra.mxu0 0
      %208 = vmatprep.subr.bf16.mxu0 0
      %209 = vmatpush1.bf16.msra.mxu0 0
      %210 = vmatprep.subr.bf16.mxu0 0
      %211 = vmatpush1.bf16.msra.mxu0 0
      %212 = vmatprep.subr.bf16.mxu0 0
      %213 = vmatpush1.bf16.msra.mxu0 0
      %214 = vmatprep.subr.bf16.mxu0 0
      %215 = vmatpush1.bf16.msra.mxu0 0
      %216 = vmatprep.subr.bf16.mxu0 0
      %217 = vmatpush1.bf16.msra.mxu0 0
      %218 = vmatprep.subr.bf16.mxu0 0
      %219 = vmatpush1.bf16.msra.mxu0 0
      %220 = vmatprep.subr.bf16.mxu0 0
      %221 = vmatpush1.bf16.msra.mxu0 0
      %222 = vmatprep.subr.bf16.mxu0 0
      %223 = vmatpush1.bf16.msra.mxu0 0
      %224 = vmatprep.subr.bf16.mxu0 0
      %225 = vmatpush1.bf16.msra.mxu0 0
      %226 = vmatprep.subr.bf16.mxu0 0
      %227 = vmatpush1.bf16.msra.mxu0 0
      %228 = vmatprep.subr.bf16.mxu0 0
      %229 = vmatpush1.bf16.msra.mxu0 0
      %230 = vmatprep.subr.bf16.mxu0 0
      %231 = vmatpush1.bf16.msra.mxu0 0
      %232 = vmatprep.subr.bf16.mxu0 0
      %233 = vmatpush1.bf16.msra.mxu0 0
      %234 = vmatprep.mubr.bf16.mxu0 0
      %235 = vmatmul.mubr.bf16.gmra.mrb[0].mxu0 %v200
      %v236 = vpop.f32.mrb[0].mxu0
      %v237 = vadd.f32 0.0, %v236
      %v238 = vpop.f32.mrb[0].mxu0
      %v239 = vpop.f32.mrb[0].mxu0
      %v240 = vadd.f32 0.0, %v239
      %v241 = vpop.f32.mrb[0].mxu0
      %242 = vdwg.mxu0
      %vm243 = vcmp.ge.f32.partialorder %v237, 0.0
      %vm244 = vcmp.ge.f32.partialorder %v240, 0.0
      %v245 = vmul.f32 %v237, 0.1
      %v246 = vmul.f32 %v240, 0.1
      %v247 = vsel %vm243, %v237, %v245
      %v248 = vsel %vm244, %v240, %v246
      %v249 = vpack.c.bf16 %v248, %v247
      %v250 = vld [vmem:[%s2] sm:$0x1]
      %vm251 = vcmask 15360
      %v253 = vsel %vm251, %v249, 0
      %vm255 = vcmask 1040384
      %v257 = vsel %vm255, %v250, 0
      %259 = vmatprep.subr.bf16.mxu0 0
      %260 = vmatpush1.bf16.msra.mxu0 %v257
      %261 = vmatprep.subr.bf16.mxu0 0
      %262 = vmatpush1.bf16.msra.mxu0 0
      %263 = vmatprep.subr.bf16.mxu0 0
      %264 = vmatpush1.bf16.msra.mxu0 0
      %265 = vmatprep.subr.bf16.mxu0 0
      %266 = vmatpush1.bf16.msra.mxu0 0
      %267 = vmatprep.subr.bf16.mxu0 0
      %268 = vmatpush1.bf16.msra.mxu0 0
      %269 = vmatprep.subr.bf16.mxu0 0
      %270 = vmatpush1.bf16.msra.mxu0 0
      %271 = vmatprep.subr.bf16.mxu0 0
      %272 = vmatpush1.bf16.msra.mxu0 0
      %273 = vmatprep.subr.bf16.mxu0 0
      %274 = vmatpush1.bf16.msra.mxu0 0
      %275 = vmatprep.subr.bf16.mxu0 0
      %276 = vmatpush1.bf16.msra.mxu0 0
      %277 = vmatprep.subr.bf16.mxu0 0
      %278 = vmatpush1.bf16.msra.mxu0 0
      %279 = vmatprep.subr.bf16.mxu0 0
      %280 = vmatpush1.bf16.msra.mxu0 0
      %281 = vmatprep.subr.bf16.mxu0 0
      %282 = vmatpush1.bf16.msra.mxu0 0
      %283 = vmatprep.subr.bf16.mxu0 0
      %284 = vmatpush1.bf16.msra.mxu0 0
      %285 = vmatprep.subr.bf16.mxu0 0
      %286 = vmatpush1.bf16.msra.mxu0 0
      %287 = vmatprep.subr.bf16.mxu0 0
      %288 = vmatpush1.bf16.msra.mxu0 0
      %289 = vmatprep.subr.bf16.mxu0 0
      %290 = vmatpush1.bf16.msra.mxu0 0
      %291 = vmatprep.mubr.bf16.mxu0 0
      %292 = vmatmul.mubr.bf16.gmra.mrb[0].mxu0 %v253
      %v293 = vpop.f32.mrb[0].mxu0
      %v294 = vadd.f32 0.0, %v293
      %v295 = vpop.f32.mrb[0].mxu0
      %v296 = vpop.f32.mrb[0].mxu0
      %v297 = vadd.f32 0.0, %v296
      %v298 = vpop.f32.mrb[0].mxu0
      %299 = vdwg.mxu0
      %vm300 = vcmp.ge.f32.partialorder %v294, 0.0
      %vm301 = vcmp.ge.f32.partialorder %v297, 0.0
      %v302 = vmul.f32 %v294, 0.1
      %v303 = vmul.f32 %v297, 0.1
      %v304 = vsel %vm300, %v294, %v302
      %v305 = vsel %vm301, %v297, %v303
      %v306 = vpack.c.bf16 %v305, %v304
      %v308 = vunpack.c.l.b16 %v306
      %v309 = vunpack.c.h.b16 %v306
      %v310 = vpack.c.b16 %v308, %v308
      %v311 = vpack.c.b16 %v309, %v309
      %vm314 = vcmask 60416
      %315 = vst.msk [vmem:[%s172] sm:$0xf] %vm314, %v310
      %316 = vst.msk [vmem:[%s172 + $0x4] sm:$0xf] %vm314, %v311
      %s317 = smul.u32 2, %s14
      %p318 = scmp.lt.s32.totalorder %s317, 3
      %s319 = scalar_select %p318, %s317, 3
      %s320 = smul.addr %s319, 4
      %s321 = scalar_lea.vmem %s3, %s320
      // Predicated region
      $region33: #{_lambda_.33} parent=31 // pred_check
        %p322 = pneg %p100
      $region34: #{_lambda_.33} parent=31 // pred_check_branch
        %324 = sbr.rel (%p322) target = $region36
      $region35: #{_lambda_.33} parent=31 // pred_region
        %s325 = smul.u32 2, %s14
      $region36: #{_lambda_.33} parent=31 // pred_fallthru
        _
    $region32: #{_lambda_.33} parent=5 // pred_fallthru
      _
    %p326 = scmp.le.s32.totalorder 2, %s9
    // Predicated region
    $region37: #{_lambda_.33} parent=5 // pred_check
      %p327 = pneg %p326
    $region38: #{_lambda_.33} parent=5 // pred_check_branch
      %329 = sbr.rel (%p327) target = $region40
    $region39: #{_lambda_.33} parent=5 // pred_region
      %s330 = ssub.s32 %s9, 2
      // Predicated region
      $region41: #{_lambda_.33} parent=39 // pred_check
        %p331 = pneg %p106
      $region42: #{_lambda_.33} parent=39 // pred_check_branch
        %333 = sbr.rel (%p331) target = $region44
      $region43: #{_lambda_.33} parent=39 // pred_region
        %s334 = smul.u32 2, %s15
        %p335 = scmp.lt.s32.totalorder %s334, 3
        %s336 = scalar_select %p335, %s334, 3
        %s337 = smul.addr %s336, 4
        %s338 = scalar_lea.vmem %s3, %s337
      $region44: #{_lambda_.33} parent=39 // pred_fallthru
        _
    $region40: #{_lambda_.33} parent=5 // pred_fallthru
      _
  $region6: #{_lambda_.33} parent=0 // loop_footer
    %s13 = sadd.s32 1, %s9
  $region7: #{_lambda_.33} parent=0 // loop_footer_branch
    %8 = sbr.rel target = $region3
  $region8: #{_lambda_.33} parent=0 // loop_exit
    _

// kernel: _lambda_.34
$region0: #{_lambda_.34}
  #allocation0 [shape = 'u32[]', space=smem, size = 0x4, offset = 0x4, fixed_abs, tag = 'smem constant byte address 0x4 - core index']
  #allocation1 [shape = 'u32[144,128]{1,0:T(1,128)}', space=vmem, size = 0x12000, scoped, tag = 'internal scratch']
  %s0 = inlined_call_operand.vmem [shape: bf16[2,8,5,16], index: 0, kind: input, shape index: {}]
  %s1 = inlined_call_operand.vmem [shape: bf16[4,8,4], index: 1, kind: input, shape index: {}]
  %s2 = inlined_call_operand.vmem [shape: bf16[4,8], index: 2, kind: input, shape index: {}]
  %s3 = inlined_call_operand.vmem [shape: bf16[2,8,4,8], index: 3, kind: output, shape index: {}]
  %s4 = sld [smem:[#allocation0]]
  $region45: #{_lambda_.34} parent=0
    _
  %s6 = ssub.s32 1, %s4
  %s7 = scalar_select 0, %s6, %s4
  loop: start=0, step=1, limit=4
  $region2: #{_lambda_.34} parent=0 // loop_pre_header
    _
  $region3: #{_lambda_.34} parent=0 // loop_header
    %s9 = sphi 0, %s13
    %p10 = scmp.ge.s32.totalorder %s9, 4
    %s16 = sphi 0, %s28
    %s17 = sphi 0, %s24
    %s18 = sphi 0, %s16
    %s19 = sphi 0, %s17
    %s20 = sphi 0, %s18
    %s21 = sphi 0, %s19
    %s33 = sphi 0, %s35
    %s36 = sphi 0, %s33
    %s37 = sphi 0, %s36
    %s53 = sphi 0, %s37
    %s57 = sphi 0, %s57
    %s59 = sphi 0, %s57
    %s60 = sphi 0, %s59
    %s74 = sphi 0, %s60
    %s78 = sphi 0, %s78
    %s80 = sphi 0, %s78
    %s81 = sphi 0, %s80
    %s95 = sphi 0, %s81
    %s103 = sphi 0, %s105
    %s106 = sphi 0, %s103
    %s107 = sphi 0, %s106
    %s123 = sphi 0, %s107
  $region4: #{_lambda_.34} parent=0 // loop_header_branch
    %12 = sbr.rel (%p10) target = $region8
  $region5: #{_lambda_.34} parent=0 // loop_body
    %s14 = ssub.s32 %s9, 1
    %s15 = ssub.s32 %s9, 2
    %s22 = sadd.s32 1, %s17
    %p23 = scmp.ge.s32.totalorder %s22, 1
    %s24 = scalar_select %p23, 0, %s22
    %s25 = sadd.s32 1, %s16
    %s26 = scalar_select %p23, %s25, %s16
    %p27 = scmp.ge.s32.totalorder %s26, 2
    %s28 = scalar_select %p27, 0, %s26
    %s29 = ssub.s32 %s16, %s28
    %s30 = ssub.s32 %s17, %s24
    %s31 = sor.u32 %s29, %s30
    %p32 = scmp.eq.s32.totalorder %s31, 0
    %s34 = sadd.s32 %s33, 1
    %s35 = scalar_select %p32, %s33, %s34
    %p38 = pneg %p32
    %p39 = scmp.eq.s32.totalorder %s9, 1
    %p40 = por %p38, %p39
    %p41 = scmp.ne.s32.totalorder %s33, %s36
    %p42 = scmp.eq.s32.totalorder %s9, 0
    %p43 = por %p41, %p42
    %p44 = scmp.ne.s32.totalorder %s33, %s36
    %p45 = scmp.eq.s32.totalorder %s14, 1
    %p46 = por %p44, %p45
    %p47 = scmp.ne.s32.totalorder %s36, %s37
    %p48 = scmp.eq.s32.totalorder %s14, 0
    %p49 = por %p47, %p48
    %p50 = scmp.ne.s32.totalorder %s36, %s37
    %p51 = scmp.eq.s32.totalorder %s15, 1
    %p52 = por %p50, %p51
    %p54 = scmp.ne.s32.totalorder %s37, %s53
    %p55 = scmp.eq.s32.totalorder %s15, 0
    %p56 = por %p54, %p55
    %s58 = sadd.s32 %s57, 1
    %p61 = scmp.eq.s32.totalorder %s9, 1
    %p62 = scmp.ne.s32.totalorder %s57, %s59
    %p63 = scmp.eq.s32.totalorder %s9, 0
    %p64 = por %p62, %p63
    %p65 = scmp.ne.s32.totalorder %s57, %s59
    %p66 = scmp.eq.s32.totalorder %s14, 1
    %p67 = por %p65, %p66
    %p68 = scmp.ne.s32.totalorder %s59, %s60
    %p69 = scmp.eq.s32.totalorder %s14, 0
    %p70 = por %p68, %p69
    %p71 = scmp.ne.s32.totalorder %s59, %s60
    %p72 = scmp.eq.s32.totalorder %s15, 1
    %p73 = por %p71, %p72
    %p75 = scmp.ne.s32.totalorder %s60, %s74
    %p76 = scmp.eq.s32.totalorder %s15, 0
    %p77 = por %p75, %p76
    %s79 = sadd.s32 %s78, 1
    %p82 = scmp.eq.s32.totalorder %s9, 1
    %p83 = scmp.ne.s32.totalorder %s78, %s80
    %p84 = scmp.eq.s32.totalorder %s9, 0
    %p85 = por %p83, %p84
    %p86 = scmp.ne.s32.totalorder %s78, %s80
    %p87 = scmp.eq.s32.totalorder %s14, 1
    %p88 = por %p86, %p87
    %p89 = scmp.ne.s32.totalorder %s80, %s81
    %p90 = scmp.eq.s32.totalorder %s14, 0
    %p91 = por %p89, %p90
    %p92 = scmp.ne.s32.totalorder %s80, %s81
    %p93 = scmp.eq.s32.totalorder %s15, 1
    %p94 = por %p92, %p93
    %p96 = scmp.ne.s32.totalorder %s81, %s95
    %p97 = scmp.eq.s32.totalorder %s15, 0
    %p98 = por %p96, %p97
    %s99 = ssub.s32 %s16, %s28
    %s100 = ssub.s32 %s17, %s24
    %s101 = sor.u32 %s99, %s100
    %p102 = scmp.eq.s32.totalorder %s101, 0
    %s104 = sadd.s32 %s103, 1
    %s105 = scalar_select %p102, %s103, %s104
    %p108 = pneg %p102
    %p109 = scmp.eq.s32.totalorder %s9, 1
    %p110 = por %p108, %p109
    %p111 = scmp.ne.s32.totalorder %s103, %s106
    %p112 = scmp.eq.s32.totalorder %s9, 0
    %p113 = por %p111, %p112
    %p114 = scmp.ne.s32.totalorder %s103, %s106
    %p115 = scmp.eq.s32.totalorder %s14, 1
    %p116 = por %p114, %p115
    %p117 = scmp.ne.s32.totalorder %s106, %s107
    %p118 = scmp.eq.s32.totalorder %s14, 0
    %p119 = por %p117, %p118
    %p120 = scmp.ne.s32.totalorder %s106, %s107
    %p121 = scmp.eq.s32.totalorder %s15, 1
    %p122 = por %p120, %p121
    %p124 = scmp.ne.s32.totalorder %s107, %s123
    %p125 = scmp.eq.s32.totalorder %s15, 0
    %p126 = por %p124, %p125
    %p127 = scmp.le.s32.totalorder 1, %s9
    %p128 = scmp.lt.s32.totalorder %s9, 3
    %p129 = pnand %p127, %p128
    %p130 = pneg %p129
    // Predicated region
    $region9: #{_lambda_.34} parent=5 // pred_check
      _
    $region10: #{_lambda_.34} parent=5 // pred_check_branch
      %132 = sbr.rel (%p129) target = $region12
    $region11: #{_lambda_.34} parent=5 // pred_region
      %s133 = ssub.s32 %s9, 1
      // Predicated region
      $region13: #{_lambda_.34} parent=11 // pred_check
        %p134 = pneg %p70
      $region14: #{_lambda_.34} parent=11 // pred_check_branch
        %136 = sbr.rel (%p134) target = $region16
      $region15: #{_lambda_.34} parent=11 // pred_region
        _
      $region16: #{_lambda_.34} parent=11 // pred_fallthru
        _
      // Predicated region
      $region17: #{_lambda_.34} parent=11 // pred_check
        %p137 = pneg %p91
      $region18: #{_lambda_.34} parent=11 // pred_check_branch
        %139 = sbr.rel (%p137) target = $region20
      $region19: #{_lambda_.34} parent=11 // pred_region
        _
      $region20: #{_lambda_.34} parent=11 // pred_fallthru
        _
    $region12: #{_lambda_.34} parent=5 // pred_fallthru
      _
    %p140 = scmp.lt.s32.totalorder %s9, 2
    // Predicated region
    $region21: #{_lambda_.34} parent=5 // pred_check
      %p141 = pneg %p140
    $region22: #{_lambda_.34} parent=5 // pred_check_branch
      %143 = sbr.rel (%p141) target = $region24
    $region23: #{_lambda_.34} parent=5 // pred_region
      // Predicated region
      $region25: #{_lambda_.34} parent=23 // pred_check
        %p144 = pneg %p43
      $region26: #{_lambda_.34} parent=23 // pred_check_branch
        %146 = sbr.rel (%p144) target = $region28
      $region27: #{_lambda_.34} parent=23 // pred_region
        %s147 = smul.u32 8, %s17
        %p148 = scmp.lt.s32.totalorder %s16, 1
        %s149 = scalar_select %p148, %s16, 1
        %p150 = scmp.lt.s32.totalorder %s147, 7
        %s151 = scalar_select %p150, %s147, 7
        %s152 = smul.addr %s149, 8
        %s153 = sadd.s32 %s151, %s152
        %s154 = smul.addr %s153, 4
        %s155 = scalar_lea.vmem %s0, %s154
        %s156 = smul.u32 8, %s17
      $region28: #{_lambda_.34} parent=23 // pred_fallthru
        _
    $region24: #{_lambda_.34} parent=5 // pred_fallthru
      _
    %p157 = scmp.le.s32.totalorder 1, %s9
    %p158 = scmp.lt.s32.totalorder %s9, 3
    %p159 = pnand %p157, %p158
    %p160 = pneg %p159
    // Predicated region
    $region29: #{_lambda_.34} parent=5 // pred_check
      _
    $region30: #{_lambda_.34} parent=5 // pred_check_branch
      %162 = sbr.rel (%p159) target = $region32
    $region31: #{_lambda_.34} parent=5 // pred_region
      %s163 = ssub.s32 %s9, 1
      %s164 = smul.u32 8, %s19
      %p165 = scmp.lt.s32.totalorder %s18, 1
      %s166 = scalar_select %p165, %s18, 1
      %p167 = scmp.lt.s32.totalorder %s164, 7
      %s168 = scalar_select %p167, %s164, 7
      %s169 = smul.addr %s166, 8
      %s170 = sadd.s32 %s168, %s169
      %s171 = smul.addr %s170, 4
      %s172 = scalar_lea.vmem %s0, %s171
      %p173 = pneg %p49
      %p174 = pneg %p46
      %p175 = pneg %p70
      %p176 = pneg %p67
      %p177 = pneg %p91
      %p178 = pneg %p88
      %p179 = pneg %p119
      %p180 = pneg %p116
      %s181 = smul.u32 8, %s19
      %p182 = scmp.lt.s32.totalorder %s18, 1
      %s183 = scalar_select %p182, %s18, 1
      %p184 = scmp.lt.s32.totalorder %s181, 7
      %s185 = scalar_select %p184, %s181, 7
      %s186 = smul.addr %s183, 8
      %s187 = sadd.s32 %s185, %s186
      %s188 = smul.addr %s187, 2
      %s189 = scalar_lea.vmem %s3, %s188
      %s190 = smul.u32 8, %s19
      %p191 = scmp.lt.s32.totalorder %s18, 1
      %s192 = scalar_select %p191, %s18, 1
      %p193 = scmp.lt.s32.totalorder %s190, 7
      %s194 = scalar_select %p193, %s190, 7
      %s195 = smul.addr %s192, 8
      %s196 = sadd.s32 %s194, %s195
      %s197 = smul.addr %s196, 4
      %s198 = scalar_lea.vmem %s0, %s197
      %s199 = smul.u32 8, %s19
      %s200 = smul.u32 8, %s19
      %p201 = scmp.lt.s32.totalorder %s18, 1
      %s202 = scalar_select %p201, %s18, 1
      %p203 = scmp.lt.s32.totalorder %s200, 7
      %s204 = scalar_select %p203, %s200, 7
      %s205 = smul.addr %s202, 8
      %s206 = sadd.s32 %s204, %s205
      %s207 = smul.addr %s206, 2
      %s208 = scalar_lea.vmem %s3, %s207
      %s209 = smul.u32 8, %s19
      %v211 = vld [vmem:[%s198] sm:$0x3]
      %v212 = vld [vmem:[%s198 + $0x4] sm:$0x3]
      %v213 = vld [vmem:[%s198 + $0x8] sm:$0x3]
      %v214 = vld [vmem:[%s198 + $0xc] sm:$0x3]
      %v215 = vld [vmem:[%s198 + $0x10] sm:$0x3]
      %v216 = vld [vmem:[%s198 + $0x14] sm:$0x3]
      %v217 = vld [vmem:[%s198 + $0x18] sm:$0x3]
      %v218 = vld [vmem:[%s198 + $0x1c] sm:$0x3]
      %v219 = vld [vmem:[%s1] sm:$0xf]
      %s220 = scalar_lea.vmem %s1, 4
      %v221 = vld [vmem:[%s220] sm:$0xf]
      %v230 = vcombine.low %v211, %v212
      %v231 = vcombine.low %v213, %v214
      %v233 = vunpack.c.l.s4 1983009808
      %v234 = vunpack.c.0.s8 %v233
      %v235 = vlaneseq
      %v236 = vshrl.u32 %v235, 7
      %v237 = vsub.s32 %v234, %v236
      %v238 = vrot.slane %v230, %v237
      %v240 = vunpack.c.l.s4 1983009808
      %v241 = vunpack.c.0.s8 %v240
      %v242 = vlaneseq
      %v243 = vshrl.u32 %v242, 7
      %v244 = vsub.s32 %v241, %v243
      %v245 = vrot.slane %v231, %v244
      %v246 = vcombine.low %v238, %v245
      %v247 = vcombine.low %v215, %v216
      %v248 = vcombine.low %v217, %v218
      %v250 = vunpack.c.l.s4 1983009808
      %v251 = vunpack.c.0.s8 %v250
      %v252 = vlaneseq
      %v253 = vshrl.u32 %v252, 7
      %v254 = vsub.s32 %v251, %v253
      %v255 = vrot.slane %v247, %v254
      %v257 = vunpack.c.l.s4 1983009808
      %v258 = vunpack.c.0.s8 %v257
      %v259 = vlaneseq
      %v260 = vshrl.u32 %v259, 7
      %v261 = vsub.s32 %v258, %v260
      %v262 = vrot.slane %v248, %v261
      %v263 = vcombine.low %v255, %v262
      %264 = vrot.lane.b32.xlu0 %v246, 120
      %v265 = vpop.permute.xlu0 %264
      %266 = vrot.lane.b32.xlu0 %v263, 120
      %v267 = vpop.permute.xlu0 %266
      %vm268 = vcmask 64512
      %v270 = vsel %vm268, %v265, 0
      %v273 = vsel %vm268, %v267, 0
      %vm275 = vcmask 1043456
      %v277 = vsel %vm275, %v221, 0
      %279 = vmatprep.subr.bf16.mxu0 0
      %280 = vmatpush1.bf16.msra.mxu0 %v277
      %281 = vmatprep.subr.bf16.mxu0 0
      %282 = vmatpush1.bf16.msra.mxu0 0
      %283 = vmatprep.subr.bf16.mxu0 0
      %284 = vmatpush1.bf16.msra.mxu0 0
      %285 = vmatprep.subr.bf16.mxu0 0
      %286 = vmatpush1.bf16.msra.mxu0 0
      %287 = vmatprep.subr.bf16.mxu0 0
      %288 = vmatpush1.bf16.msra.mxu0 0
      %289 = vmatprep.subr.bf16.mxu0 0
      %290 = vmatpush1.bf16.msra.mxu0 0
      %291 = vmatprep.subr.bf16.mxu0 0
      %292 = vmatpush1.bf16.msra.mxu0 0
      %293 = vmatprep.subr.bf16.mxu0 0
      %294 = vmatpush1.bf16.msra.mxu0 0
      %295 = vmatprep.subr.bf16.mxu0 0
      %296 = vmatpush1.bf16.msra.mxu0 0
      %297 = vmatprep.subr.bf16.mxu0 0
      %298 = vmatpush1.bf16.msra.mxu0 0
      %299 = vmatprep.subr.bf16.mxu0 0
      %300 = vmatpush1.bf16.msra.mxu0 0
      %301 = vmatprep.subr.bf16.mxu0 0
      %302 = vmatpush1.bf16.msra.mxu0 0
      %303 = vmatprep.subr.bf16.mxu0 0
      %304 = vmatpush1.bf16.msra.mxu0 0
      %305 = vmatprep.subr.bf16.mxu0 0
      %306 = vmatpush1.bf16.msra.mxu0 0
      %307 = vmatprep.subr.bf16.mxu0 0
      %308 = vmatpush1.bf16.msra.mxu0 0
      %309 = vmatprep.subr.bf16.mxu0 0
      %310 = vmatpush1.bf16.msra.mxu0 0
      %311 = vmatprep.mubr.bf16.mxu0 0
      %312 = vmatmul.mubr.bf16.gmra.mrb[0].mxu0 %v270
      %v313 = vpop.f32.mrb[0].mxu0
      %v314 = vadd.f32 0.0, %v313
      %v315 = vpop.f32.mrb[0].mxu0
      %v316 = vpop.f32.mrb[0].mxu0
      %v317 = vadd.f32 0.0, %v316
      %v318 = vpop.f32.mrb[0].mxu0
      %319 = vmatprep.mubr.bf16.mxu0 0
      %320 = vmatmul.mubr.bf16.gmra.mrb[0].mxu0 %v273
      %v321 = vpop.f32.mrb[0].mxu0
      %v322 = vadd.f32 0.0, %v321
      %v323 = vpop.f32.mrb[0].mxu0
      %v324 = vpop.f32.mrb[0].mxu0
      %v325 = vadd.f32 0.0, %v324
      %v326 = vpop.f32.mrb[0].mxu0
      %327 = vdwg.mxu0
      %v329 = vsel %vm268, %v246, 0
      %v332 = vsel %vm268, %v263, 0
      %v335 = vsel %vm275, %v219, 0
      %337 = vmatprep.subr.bf16.mxu0 0
      %338 = vmatpush1.bf16.msra.mxu0 %v335
      %339 = vmatprep.subr.bf16.mxu0 0
      %340 = vmatpush1.bf16.msra.mxu0 0
      %341 = vmatprep.subr.bf16.mxu0 0
      %342 = vmatpush1.bf16.msra.mxu0 0
      %343 = vmatprep.subr.bf16.mxu0 0
      %344 = vmatpush1.bf16.msra.mxu0 0
      %345 = vmatprep.subr.bf16.mxu0 0
      %346 = vmatpush1.bf16.msra.mxu0 0
      %347 = vmatprep.subr.bf16.mxu0 0
      %348 = vmatpush1.bf16.msra.mxu0 0
      %349 = vmatprep.subr.bf16.mxu0 0
      %350 = vmatpush1.bf16.msra.mxu0 0
      %351 = vmatprep.subr.bf16.mxu0 0
      %352 = vmatpush1.bf16.msra.mxu0 0
      %353 = vmatprep.subr.bf16.mxu0 0
      %354 = vmatpush1.bf16.msra.mxu0 0
      %355 = vmatprep.subr.bf16.mxu0 0
      %356 = vmatpush1.bf16.msra.mxu0 0
      %357 = vmatprep.subr.bf16.mxu0 0
      %358 = vmatpush1.bf16.msra.mxu0 0
      %359 = vmatprep.subr.bf16.mxu0 0
      %360 = vmatpush1.bf16.msra.mxu0 0
      %361 = vmatprep.subr.bf16.mxu0 0
      %362 = vmatpush1.bf16.msra.mxu0 0
      %363 = vmatprep.subr.bf16.mxu0 0
      %364 = vmatpush1.bf16.msra.mxu0 0
      %365 = vmatprep.subr.bf16.mxu0 0
      %366 = vmatpush1.bf16.msra.mxu0 0
      %367 = vmatprep.subr.bf16.mxu0 0
      %368 = vmatpush1.bf16.msra.mxu0 0
      %369 = vmatprep.mubr.bf16.mxu0 0
      %370 = vmatmul.mubr.bf16.gmra.mrb[0].mxu0 %v329
      %v371 = vpop.f32.mrb[0].mxu0
      %v372 = vadd.f32 %v314, %v371
      %v373 = vpop.f32.mrb[0].mxu0
      %v374 = vpop.f32.mrb[0].mxu0
      %v375 = vadd.f32 %v317, %v374
      %v376 = vpop.f32.mrb[0].mxu0
      %377 = vmatprep.mubr.bf16.mxu0 0
      %378 = vmatmul.mubr.bf16.gmra.mrb[0].mxu0 %v332
      %v379 = vpop.f32.mrb[0].mxu0
      %v380 = vadd.f32 %v322, %v379
      %v381 = vpop.f32.mrb[0].mxu0
      %v382 = vpop.f32.mrb[0].mxu0
      %v383 = vadd.f32 %v325, %v382
      %v384 = vpop.f32.mrb[0].mxu0
      %385 = vdwg.mxu0
      %v386 = vld [vmem:[%s198] sm:$0x7]
      %v387 = vld [vmem:[%s198 + $0x4] sm:$0x7]
      %v388 = vld [vmem:[%s198 + $0x8] sm:$0x7]
      %v389 = vld [vmem:[%s198 + $0xc] sm:$0x7]
      %v390 = vld [vmem:[%s198 + $0x10] sm:$0x7]
      %v391 = vld [vmem:[%s198 + $0x14] sm:$0x7]
      %v392 = vld [vmem:[%s198 + $0x18] sm:$0x7]
      %v393 = vld [vmem:[%s198 + $0x1c] sm:$0x7]
      %v403 = vunpack.c.l.s4 1983009808
      %v404 = vunpack.c.0.s8 %v403
      %v405 = vlaneseq
      %v406 = vshrl.u32 %v405, 7
      %v407 = vsub.s32 %v404, %v406
      %v408 = vrot.slane %v386, %v407
      %v409 = vcombine.high %v408, %v408
      %v411 = vunpack.c.l.s4 1983009808
      %v412 = vunpack.c.0.s8 %v411
      %v413 = vlaneseq
      %v414 = vshrl.u32 %v413, 7
      %v415 = vsub.s32 %v412, %v414
      %v416 = vrot.slane %v387, %v415
      %v417 = vcombine.high %v416, %v416
      %v419 = vunpack.c.l.s4 1983009808
      %v420 = vunpack.c.0.s8 %v419
      %v421 = vlaneseq
      %v422 = vshrl.u32 %v421, 7
      %v423 = vsub.s32 %v420, %v422
      %v424 = vrot.slane %v388, %v423
      %v425 = vcombine.high %v424, %v424
      %v427 = vunpack.c.l.s4 1983009808
      %v428 = vunpack.c.0.s8 %v427
      %v429 = vlaneseq
      %v430 = vshrl.u32 %v429, 7
      %v431 = vsub.s32 %v428, %v430
      %v432 = vrot.slane %v389, %v431
      %v433 = vcombine.high %v432, %v432
      %v435 = vunpack.c.l.s4 1983009808
      %v436 = vunpack.c.0.s8 %v435
      %v437 = vlaneseq
      %v438 = vshrl.u32 %v437, 7
      %v439 = vsub.s32 %v436, %v438
      %v440 = vrot.slane %v390, %v439
      %v441 = vcombine.high %v440, %v440
      %v443 = vunpack.c.l.s4 1983009808
      %v444 = vunpack.c.0.s8 %v443
      %v445 = vlaneseq
      %v446 = vshrl.u32 %v445, 7
      %v447 = vsub.s32 %v444, %v446
      %v448 = vrot.slane %v391, %v447
      %v449 = vcombine.high %v448, %v448
      %v451 = vunpack.c.l.s4 1983009808
      %v452 = vunpack.c.0.s8 %v451
      %v453 = vlaneseq
      %v454 = vshrl.u32 %v453, 7
      %v455 = vsub.s32 %v452, %v454
      %v456 = vrot.slane %v392, %v455
      %v457 = vcombine.high %v456, %v456
      %v459 = vunpack.c.l.s4 1983009808
      %v460 = vunpack.c.0.s8 %v459
      %v461 = vlaneseq
      %v462 = vshrl.u32 %v461, 7
      %v463 = vsub.s32 %v460, %v462
      %v464 = vrot.slane %v393, %v463
      %v465 = vcombine.high %v464, %v464
      %vm466 = vsmask.f32 1280
      %vm467 = vsmask.f32 3336
      %vm468 = vmor %vm466, %vm467
      %vm469 = vsmask.f32 5392
      %vm470 = vmor %vm468, %vm469
      %vm471 = vsmask.f32 7448
      %vm472 = vmor %vm470, %vm471
      %v474 = vshrl.u32 %v408, 16
      %v476 = vrot.slane %v474, 6
      %v477 = vshll.u32 %v408, 16
      %v479 = vrot.slane %v477, 7
      %v480 = vor.u32 %v476, %v479
      %v481 = vrot.slane %v480, 2
      %v483 = vshll.u32 %v409, 16
      %v485 = vrot.slane %v483, 7
      %v486 = vsel %vm472, %v481, %v485
      %v488 = vshrl.u32 %v416, 16
      %v490 = vrot.slane %v488, 6
      %v491 = vshll.u32 %v416, 16
      %v493 = vrot.slane %v491, 7
      %v494 = vor.u32 %v490, %v493
      %v495 = vrot.slane %v494, 2
      %v497 = vshll.u32 %v417, 16
      %v499 = vrot.slane %v497, 7
      %v500 = vsel %vm472, %v495, %v499
      %v502 = vshrl.u32 %v424, 16
      %v504 = vrot.slane %v502, 6
      %v505 = vshll.u32 %v424, 16
      %v507 = vrot.slane %v505, 7
      %v508 = vor.u32 %v504, %v507
      %v509 = vrot.slane %v508, 2
      %v511 = vshll.u32 %v425, 16
      %v513 = vrot.slane %v511, 7
      %v514 = vsel %vm472, %v509, %v513
      %v516 = vshrl.u32 %v432, 16
      %v518 = vrot.slane %v516, 6
      %v519 = vshll.u32 %v432, 16
      %v521 = vrot.slane %v519, 7
      %v522 = vor.u32 %v518, %v521
      %v523 = vrot.slane %v522, 2
      %v525 = vshll.u32 %v433, 16
      %v527 = vrot.slane %v525, 7
      %v528 = vsel %vm472, %v523, %v527
      %v530 = vshrl.u32 %v440, 16
      %v532 = vrot.slane %v530, 6
      %v533 = vshll.u32 %v440, 16
      %v535 = vrot.slane %v533, 7
      %v536 = vor.u32 %v532, %v535
      %v537 = vrot.slane %v536, 2
      %v539 = vshll.u32 %v441, 16
      %v541 = vrot.slane %v539, 7
      %v542 = vsel %vm472, %v537, %v541
      %v544 = vshrl.u32 %v448, 16
      %v546 = vrot.slane %v544, 6
      %v547 = vshll.u32 %v448, 16
      %v549 = vrot.slane %v547, 7
      %v550 = vor.u32 %v546, %v549
      %v551 = vrot.slane %v550, 2
      %v553 = vshll.u32 %v449, 16
      %v555 = vrot.slane %v553, 7
      %v556 = vsel %vm472, %v551, %v555
      %v558 = vshrl.u32 %v456, 16
      %v560 = vrot.slane %v558, 6
      %v561 = vshll.u32 %v456, 16
      %v563 = vrot.slane %v561, 7
      %v564 = vor.u32 %v560, %v563
      %v565 = vrot.slane %v564, 2
      %v567 = vshll.u32 %v457, 16
      %v569 = vrot.slane %v567, 7
      %v570 = vsel %vm472, %v565, %v569
      %v572 = vshrl.u32 %v464, 16
      %v574 = vrot.slane %v572, 6
      %v575 = vshll.u32 %v464, 16
      %v577 = vrot.slane %v575, 7
      %v578 = vor.u32 %v574, %v577
      %v579 = vrot.slane %v578, 2
      %v581 = vshll.u32 %v465, 16
      %v583 = vrot.slane %v581, 7
      %v584 = vsel %vm472, %v579, %v583
      %s585 = scalar_lea.vmem %s1, 8
      %v586 = vld [vmem:[%s585] sm:$0xf]
      %v587 = vcombine.low %v486, %v500
      %v588 = vcombine.low %v514, %v528
      %v590 = vunpack.c.l.s4 1983009808
      %v591 = vunpack.c.0.s8 %v590
      %v592 = vlaneseq
      %v593 = vshrl.u32 %v592, 7
      %v594 = vsub.s32 %v591, %v593
      %v595 = vrot.slane %v587, %v594
      %v597 = vunpack.c.l.s4 1983009808
      %v598 = vunpack.c.0.s8 %v597
      %v599 = vlaneseq
      %v600 = vshrl.u32 %v599, 7
      %v601 = vsub.s32 %v598, %v600
      %v602 = vrot.slane %v588, %v601
      %v603 = vcombine.low %v595, %v602
      %v604 = vcombine.low %v542, %v556
      %v605 = vcombine.low %v570, %v584
      %v607 = vunpack.c.l.s4 1983009808
      %v608 = vunpack.c.0.s8 %v607
      %v609 = vlaneseq
      %v610 = vshrl.u32 %v609, 7
      %v611 = vsub.s32 %v608, %v610
      %v612 = vrot.slane %v604, %v611
      %v614 = vunpack.c.l.s4 1983009808
      %v615 = vunpack.c.0.s8 %v614
      %v616 = vlaneseq
      %v617 = vshrl.u32 %v616, 7
      %v618 = vsub.s32 %v615, %v617
      %v619 = vrot.slane %v605, %v618
      %v620 = vcombine.low %v612, %v619
      %v622 = vsel %vm268, %v603, 0
      %v625 = vsel %vm268, %v620, 0
      %v628 = vsel %vm275, %v586, 0
      %630 = vmatprep.subr.bf16.mxu0 0
      %631 = vmatpush1.bf16.msra.mxu0 %v628
      %632 = vmatprep.subr.bf16.mxu0 0
      %633 = vmatpush1.bf16.msra.mxu0 0
      %634 = vmatprep.subr.bf16.mxu0 0
      %635 = vmatpush1.bf16.msra.mxu0 0
      %636 = vmatprep.subr.bf16.mxu0 0
      %637 = vmatpush1.bf16.msra.mxu0 0
      %638 = vmatprep.subr.bf16.mxu0 0
      %639 = vmatpush1.bf16.msra.mxu0 0
      %640 = vmatprep.subr.bf16.mxu0 0
      %641 = vmatpush1.bf16.msra.mxu0 0
      %642 = vmatprep.subr.bf16.mxu0 0
      %643 = vmatpush1.bf16.msra.mxu0 0
      %644 = vmatprep.subr.bf16.mxu0 0
      %645 = vmatpush1.bf16.msra.mxu0 0
      %646 = vmatprep.subr.bf16.mxu0 0
      %647 = vmatpush1.bf16.msra.mxu0 0
      %648 = vmatprep.subr.bf16.mxu0 0
      %649 = vmatpush1.bf16.msra.mxu0 0
      %650 = vmatprep.subr.bf16.mxu0 0
      %651 = vmatpush1.bf16.msra.mxu0 0
      %652 = vmatprep.subr.bf16.mxu0 0
      %653 = vmatpush1.bf16.msra.mxu0 0
      %654 = vmatprep.subr.bf16.mxu0 0
      %655 = vmatpush1.bf16.msra.mxu0 0
      %656 = vmatprep.subr.bf16.mxu0 0
      %657 = vmatpush1.bf16.msra.mxu0 0
      %658 = vmatprep.subr.bf16.mxu0 0
      %659 = vmatpush1.bf16.msra.mxu0 0
      %660 = vmatprep.subr.bf16.mxu0 0
      %661 = vmatpush1.bf16.msra.mxu0 0
      %662 = vmatprep.mubr.bf16.mxu0 0
      %663 = vmatmul.mubr.bf16.gmra.mrb[0].mxu0 %v622
      %v664 = vpop.f32.mrb[0].mxu0
      %v665 = vadd.f32 0.0, %v664
      %v666 = vpop.f32.mrb[0].mxu0
      %v667 = vpop.f32.mrb[0].mxu0
      %v668 = vadd.f32 0.0, %v667
      %v669 = vpop.f32.mrb[0].mxu0
      %670 = vmatprep.mubr.bf16.mxu0 0
      %671 = vmatmul.mubr.bf16.gmra.mrb[0].mxu0 %v625
      %v672 = vpop.f32.mrb[0].mxu0
      %v673 = vadd.f32 0.0, %v672
      %v674 = vpop.f32.mrb[0].mxu0
      %v675 = vpop.f32.mrb[0].mxu0
      %v676 = vadd.f32 0.0, %v675
      %v677 = vpop.f32.mrb[0].mxu0
      %678 = vdwg.mxu0
      %v679 = vadd.f32 %v372, %v665
      %v680 = vadd.f32 %v375, %v668
      %v681 = vadd.f32 %v380, %v673
      %v682 = vadd.f32 %v383, %v676
      %s683 = scalar_lea.vmem %s1, 12
      %v684 = vld [vmem:[%s683] sm:$0xf]
      %685 = vrot.lane.b32.xlu0 %v603, 120
      %v686 = vpop.permute.xlu0 %685
      %687 = vrot.lane.b32.xlu0 %v620, 120
      %v688 = vpop.permute.xlu0 %687
      %v690 = vsel %vm268, %v686, 0
      %v693 = vsel %vm268, %v688, 0
      %v696 = vsel %vm275, %v684, 0
      %698 = vmatprep.subr.bf16.mxu0 0
      %699 = vmatpush1.bf16.msra.mxu0 %v696
      %700 = vmatprep.subr.bf16.mxu0 0
      %701 = vmatpush1.bf16.msra.mxu0 0
      %702 = vmatprep.subr.bf16.mxu0 0
      %703 = vmatpush1.bf16.msra.mxu0 0
      %704 = vmatprep.subr.bf16.mxu0 0
      %705 = vmatpush1.bf16.msra.mxu0 0
      %706 = vmatprep.subr.bf16.mxu0 0
      %707 = vmatpush1.bf16.msra.mxu0 0
      %708 = vmatprep.subr.bf16.mxu0 0
      %709 = vmatpush1.bf16.msra.mxu0 0
      %710 = vmatprep.subr.bf16.mxu0 0
      %711 = vmatpush1.bf16.msra.mxu0 0
      %712 = vmatprep.subr.bf16.mxu0 0
      %713 = vmatpush1.bf16.msra.mxu0 0
      %714 = vmatprep.subr.bf16.mxu0 0
      %715 = vmatpush1.bf16.msra.mxu0 0
      %716 = vmatprep.subr.bf16.mxu0 0
      %717 = vmatpush1.bf16.msra.mxu0 0
      %718 = vmatprep.subr.bf16.mxu0 0
      %719 = vmatpush1.bf16.msra.mxu0 0
      %720 = vmatprep.subr.bf16.mxu0 0
      %721 = vmatpush1.bf16.msra.mxu0 0
      %722 = vmatprep.subr.bf16.mxu0 0
      %723 = vmatpush1.bf16.msra.mxu0 0
      %724 = vmatprep.subr.bf16.mxu0 0
      %725 = vmatpush1.bf16.msra.mxu0 0
      %726 = vmatprep.subr.bf16.mxu0 0
      %727 = vmatpush1.bf16.msra.mxu0 0
      %728 = vmatprep.subr.bf16.mxu0 0
      %729 = vmatpush1.bf16.msra.mxu0 0
      %730 = vmatprep.mubr.bf16.mxu0 0
      %731 = vmatmul.mubr.bf16.gmra.mrb[0].mxu0 %v690
      %v732 = vpop.f32.mrb[0].mxu0
      %v733 = vadd.f32 0.0, %v732
      %v734 = vpop.f32.mrb[0].mxu0
      %v735 = vpop.f32.mrb[0].mxu0
      %v736 = vadd.f32 0.0, %v735
      %v737 = vpop.f32.mrb[0].mxu0
      %738 = vmatprep.mubr.bf16.mxu0 0
      %739 = vmatmul.mubr.bf16.gmra.mrb[0].mxu0 %v693
      %v740 = vpop.f32.mrb[0].mxu0
      %v741 = vadd.f32 0.0, %v740
      %v742 = vpop.f32.mrb[0].mxu0
      %v743 = vpop.f32.mrb[0].mxu0
      %v744 = vadd.f32 0.0, %v743
      %v745 = vpop.f32.mrb[0].mxu0
      %746 = vdwg.mxu0
      %v747 = vadd.f32 %v679, %v733
      %v748 = vadd.f32 %v680, %v736
      %v749 = vadd.f32 %v681, %v741
      %v750 = vadd.f32 %v682, %v744
      %vm751 = vcmp.ge.f32.partialorder %v747, 0.0
      %vm752 = vcmp.ge.f32.partialorder %v748, 0.0
      %vm753 = vcmp.ge.f32.partialorder %v749, 0.0
      %vm754 = vcmp.ge.f32.partialorder %v750, 0.0
      %v755 = vmul.f32 %v747, 0.1
      %v756 = vmul.f32 %v748, 0.1
      %v757 = vmul.f32 %v749, 0.1
      %v758 = vmul.f32 %v750, 0.1
      %v759 = vsel %vm751, %v747, %v755
      %v760 = vsel %vm752, %v748, %v756
      %v761 = vsel %vm753, %v749, %v757
      %v762 = vsel %vm754, %v750, %v758
      %v763 = vpack.c.bf16 %v760, %v759
      %v764 = vpack.c.bf16 %v762, %v761
      %v765 = vld [vmem:[%s2] sm:$0x3]
      %vm766 = vcmask 31744
      %v768 = vsel %vm766, %v763, 0
      %v771 = vsel %vm766, %v764, 0
      %vm773 = vcmask 1041408
      %v775 = vsel %vm773, %v765, 0
      %777 = vmatprep.subr.bf16.mxu0 0
      %778 = vmatpush1.bf16.msra.mxu0 %v775
      %779 = vmatprep.subr.bf16.mxu0 0
      %780 = vmatpush1.bf16.msra.mxu0 0
      %781 = vmatprep.subr.bf16.mxu0 0
      %782 = vmatpush1.bf16.msra.mxu0 0
      %783 = vmatprep.subr.bf16.mxu0 0
      %784 = vmatpush1.bf16.msra.mxu0 0
      %785 = vmatprep.subr.bf16.mxu0 0
      %786 = vmatpush1.bf16.msra.mxu0 0
      %787 = vmatprep.subr.bf16.mxu0 0
      %788 = vmatpush1.bf16.msra.mxu0 0
      %789 = vmatprep.subr.bf16.mxu0 0
      %790 = vmatpush1.bf16.msra.mxu0 0
      %791 = vmatprep.subr.bf16.mxu0 0
      %792 = vmatpush1.bf16.msra.mxu0 0
      %793 = vmatprep.subr.bf16.mxu0 0
      %794 = vmatpush1.bf16.msra.mxu0 0
      %795 = vmatprep.subr.bf16.mxu0 0
      %796 = vmatpush1.bf16.msra.mxu0 0
      %797 = vmatprep.subr.bf16.mxu0 0
      %798 = vmatpush1.bf16.msra.mxu0 0
      %799 = vmatprep.subr.bf16.mxu0 0
      %800 = vmatpush1.bf16.msra.mxu0 0
      %801 = vmatprep.subr.bf16.mxu0 0
      %802 = vmatpush1.bf16.msra.mxu0 0
      %803 = vmatprep.subr.bf16.mxu0 0
      %804 = vmatpush1.bf16.msra.mxu0 0
      %805 = vmatprep.subr.bf16.mxu0 0
      %806 = vmatpush1.bf16.msra.mxu0 0
      %807 = vmatprep.subr.bf16.mxu0 0
      %808 = vmatpush1.bf16.msra.mxu0 0
      %809 = vmatprep.mubr.bf16.mxu0 0
      %810 = vmatmul.mubr.bf16.gmra.mrb[0].mxu0 %v768
      %v811 = vpop.f32.mrb[0].mxu0
      %v812 = vadd.f32 0.0, %v811
      %v813 = vpop.f32.mrb[0].mxu0
      %v814 = vpop.f32.mrb[0].mxu0
      %v815 = vadd.f32 0.0, %v814
      %v816 = vpop.f32.mrb[0].mxu0
      %817 = vmatprep.mubr.bf16.mxu0 0
      %818 = vmatmul.mubr.bf16.gmra.mrb[0].mxu0 %v771
      %v819 = vpop.f32.mrb[0].mxu0
      %v820 = vadd.f32 0.0, %v819
      %v821 = vpop.f32.mrb[0].mxu0
      %v822 = vpop.f32.mrb[0].mxu0
      %v823 = vadd.f32 0.0, %v822
      %v824 = vpop.f32.mrb[0].mxu0
      %825 = vdwg.mxu0
      %vm826 = vcmp.ge.f32.partialorder %v812, 0.0
      %vm827 = vcmp.ge.f32.partialorder %v815, 0.0
      %vm828 = vcmp.ge.f32.partialorder %v820, 0.0
      %vm829 = vcmp.ge.f32.partialorder %v823, 0.0
      %v830 = vmul.f32 %v812, 0.1
      %v831 = vmul.f32 %v815, 0.1
      %v832 = vmul.f32 %v820, 0.1
      %v833 = vmul.f32 %v823, 0.1
      %v834 = vsel %vm826, %v812, %v830
      %v835 = vsel %vm827, %v815, %v831
      %v836 = vsel %vm828, %v820, %v832
      %v837 = vsel %vm829, %v823, %v833
      %v842 = vcombine.high %v834, %v834
      %v843 = vcombine.high %v835, %v835
      %v844 = vcombine.high %v836, %v836
      %v845 = vcombine.high %v837, %v837
      %v850 = vpack.c.bf16 %v834, %v834
      %v851 = vpack.c.bf16 %v842, %v842
      %v852 = vpack.c.bf16 %v835, %v835
      %v853 = vpack.c.bf16 %v843, %v843
      %v854 = vpack.c.bf16 %v836, %v836
      %v855 = vpack.c.bf16 %v844, %v844
      %v856 = vpack.c.bf16 %v837, %v837
      %v857 = vpack.c.bf16 %v845, %v845
      %vm858 = vcmask 58368
      %859 = vst.msk [vmem:[%s208] sm:$0x3] %vm858, %v850
      %860 = vst.msk [vmem:[%s208 + $0x2] sm:$0x3] %vm858, %v851
      %861 = vst.msk [vmem:[%s208 + $0x4] sm:$0x3] %vm858, %v852
      %862 = vst.msk [vmem:[%s208 + $0x6] sm:$0x3] %vm858, %v853
      %863 = vst.msk [vmem:[%s208 + $0x8] sm:$0x3] %vm858, %v854
      %864 = vst.msk [vmem:[%s208 + $0xa] sm:$0x3] %vm858, %v855
      %865 = vst.msk [vmem:[%s208 + $0xc] sm:$0x3] %vm858, %v856
      %866 = vst.msk [vmem:[%s208 + $0xe] sm:$0x3] %vm858, %v857
      %s867 = smul.u32 8, %s19
      %p868 = scmp.lt.s32.totalorder %s18, 1
      %s869 = scalar_select %p868, %s18, 1
      %p870 = scmp.lt.s32.totalorder %s867, 7
      %s871 = scalar_select %p870, %s867, 7
      %s872 = smul.addr %s869, 8
      %s873 = sadd.s32 %s871, %s872
      %s874 = smul.addr %s873, 2
      %s875 = scalar_lea.vmem %s3, %s874
      // Predicated region
      $region33: #{_lambda_.34} parent=31 // pred_check
        %p876 = pneg %p116
      $region34: #{_lambda_.34} parent=31 // pred_check_branch
        %878 = sbr.rel (%p876) target = $region36
      $region35: #{_lambda_.34} parent=31 // pred_region
        %s879 = smul.u32 8, %s19
      $region36: #{_lambda_.34} parent=31 // pred_fallthru
        _
    $region32: #{_lambda_.34} parent=5 // pred_fallthru
      _
    %p880 = scmp.le.s32.totalorder 2, %s9
    // Predicated region
    $region37: #{_lambda_.34} parent=5 // pred_check
      %p881 = pneg %p880
    $region38: #{_lambda_.34} parent=5 // pred_check_branch
      %883 = sbr.rel (%p881) target = $region40
    $region39: #{_lambda_.34} parent=5 // pred_region
      %s884 = ssub.s32 %s9, 2
      // Predicated region
      $region41: #{_lambda_.34} parent=39 // pred_check
        %p885 = pneg %p122
      $region42: #{_lambda_.34} parent=39 // pred_check_branch
        %887 = sbr.rel (%p885) target = $region44
      $region43: #{_lambda_.34} parent=39 // pred_region
        %s888 = smul.u32 8, %s21
        %p889 = scmp.lt.s32.totalorder %s20, 1
        %s890 = scalar_select %p889, %s20, 1
        %p891 = scmp.lt.s32.totalorder %s888, 7
        %s892 = scalar_select %p891, %s888, 7
        %s893 = smul.addr %s890, 8
        %s894 = sadd.s32 %s892, %s893
        %s895 = smul.addr %s894, 2
        %s896 = scalar_lea.vmem %s3, %s895
      $region44: #{_lambda_.34} parent=39 // pred_fallthru
        _
    $region40: #{_lambda_.34} parent=5 // pred_fallthru
      _
  $region6: #{_lambda_.34} parent=0 // loop_footer
    %s13 = sadd.s32 1, %s9
  $region7: #{_lambda_.34} parent=0 // loop_footer_branch
    %8 = sbr.rel target = $region3
  $region8: #{_lambda_.34} parent=0 // loop_exit
    _

// kernel: _lambda_.31
$region0: #{_lambda_.31}
  #allocation0 [shape = 'u32[]', space=smem, size = 0x4, offset = 0x4, fixed_abs, tag = 'smem constant byte address 0x4 - core index']
  #allocation1 [shape = 'u32[144,128]{1,0:T(1,128)}', space=vmem, size = 0x12000, scoped, tag = 'internal scratch']
  %s0 = inlined_call_operand.vmem [shape: bf16[2,12,12,8], index: 0, kind: input, shape index: {}]
  %s1 = inlined_call_operand.vmem [shape: bf16[9,8,8], index: 1, kind: input, shape index: {}]
  %s2 = inlined_call_operand.vmem [shape: bf16[2,8,8,8], index: 2, kind: output, shape index: {}]
  %s3 = sld [smem:[#allocation0]]
  $region41: #{_lambda_.31} parent=0
    _
  %s5 = ssub.s32 1, %s3
  %s6 = scalar_select 0, %s5, %s3
  loop: start=0, step=1, limit=4
  $region2: #{_lambda_.31} parent=0 // loop_pre_header
    _
  $region3: #{_lambda_.31} parent=0 // loop_header
    %s8 = sphi 0, %s12
    %p9 = scmp.ge.s32.totalorder %s8, 4
    %s15 = sphi 0, %s27
    %s16 = sphi 0, %s23
    %s17 = sphi 0, %s15
    %s18 = sphi 0, %s16
    %s19 = sphi 0, %s17
    %s20 = sphi 0, %s18
    %s30 = sphi 0, %s32
    %s33 = sphi 0, %s30
    %s34 = sphi 0, %s33
    %s50 = sphi 0, %s34
    %s54 = sphi 0, %s54
    %s56 = sphi 0, %s54
    %s57 = sphi 0, %s56
    %s71 = sphi 0, %s57
    %s79 = sphi 0, %s81
    %s82 = sphi 0, %s79
    %s83 = sphi 0, %s82
    %s99 = sphi 0, %s83
  $region4: #{_lambda_.31} parent=0 // loop_header_branch
    %11 = sbr.rel (%p9) target = $region8
  $region5: #{_lambda_.31} parent=0 // loop_body
    %s13 = ssub.s32 %s8, 1
    %s14 = ssub.s32 %s8, 2
    %s21 = sadd.s32 1, %s16
    %p22 = scmp.ge.s32.totalorder %s21, 1
    %s23 = scalar_select %p22, 0, %s21
    %s24 = sadd.s32 1, %s15
    %s25 = scalar_select %p22, %s24, %s15
    %p26 = scmp.ge.s32.totalorder %s25, 2
    %s27 = scalar_select %p26, 0, %s25
    %s28 = ssub.s32 %s15, %s27
    %p29 = scmp.eq.s32.totalorder %s28, 0
    %s31 = sadd.s32 %s30, 1
    %s32 = scalar_select %p29, %s30, %s31
    %p35 = pneg %p29
    %p36 = scmp.eq.s32.totalorder %s8, 1
    %p37 = por %p35, %p36
    %p38 = scmp.ne.s32.totalorder %s30, %s33
    %p39 = scmp.eq.s32.totalorder %s8, 0
    %p40 = por %p38, %p39
    %p41 = scmp.ne.s32.totalorder %s30, %s33
    %p42 = scmp.eq.s32.totalorder %s13, 1
    %p43 = por %p41, %p42
    %p44 = scmp.ne.s32.totalorder %s33, %s34
    %p45 = scmp.eq.s32.totalorder %s13, 0
    %p46 = por %p44, %p45
    %p47 = scmp.ne.s32.totalorder %s33, %s34
    %p48 = scmp.eq.s32.totalorder %s14, 1
    %p49 = por %p47, %p48
    %p51 = scmp.ne.s32.totalorder %s34, %s50
    %p52 = scmp.eq.s32.totalorder %s14, 0
    %p53 = por %p51, %p52
    %s55 = sadd.s32 %s54, 1
    %p58 = scmp.eq.s32.totalorder %s8, 1
    %p59 = scmp.ne.s32.totalorder %s54, %s56
    %p60 = scmp.eq.s32.totalorder %s8, 0
    %p61 = por %p59, %p60
    %p62 = scmp.ne.s32.totalorder %s54, %s56
    %p63 = scmp.eq.s32.totalorder %s13, 1
    %p64 = por %p62, %p63
    %p65 = scmp.ne.s32.totalorder %s56, %s57
    %p66 = scmp.eq.s32.totalorder %s13, 0
    %p67 = por %p65, %p66
    %p68 = scmp.ne.s32.totalorder %s56, %s57
    %p69 = scmp.eq.s32.totalorder %s14, 1
    %p70 = por %p68, %p69
    %p72 = scmp.ne.s32.totalorder %s57, %s71
    %p73 = scmp.eq.s32.totalorder %s14, 0
    %p74 = por %p72, %p73
    %s75 = ssub.s32 %s15, %s27
    %s76 = ssub.s32 %s16, %s23
    %s77 = sor.u32 %s75, %s76
    %p78 = scmp.eq.s32.totalorder %s77, 0
    %s80 = sadd.s32 %s79, 1
    %s81 = scalar_select %p78, %s79, %s80
    %p84 = pneg %p78
    %p85 = scmp.eq.s32.totalorder %s8, 1
    %p86 = por %p84, %p85
    %p87 = scmp.ne.s32.totalorder %s79, %s82
    %p88 = scmp.eq.s32.totalorder %s8, 0
    %p89 = por %p87, %p88
    %p90 = scmp.ne.s32.totalorder %s79, %s82
    %p91 = scmp.eq.s32.totalorder %s13, 1
    %p92 = por %p90, %p91
    %p93 = scmp.ne.s32.totalorder %s82, %s83
    %p94 = scmp.eq.s32.totalorder %s13, 0
    %p95 = por %p93, %p94
    %p96 = scmp.ne.s32.totalorder %s82, %s83
    %p97 = scmp.eq.s32.totalorder %s14, 1
    %p98 = por %p96, %p97
    %p100 = scmp.ne.s32.totalorder %s83, %s99
    %p101 = scmp.eq.s32.totalorder %s14, 0
    %p102 = por %p100, %p101
    %p103 = scmp.le.s32.totalorder 1, %s8
    %p104 = scmp.lt.s32.totalorder %s8, 3
    %p105 = pnand %p103, %p104
    %p106 = pneg %p105
    // Predicated region
    $region9: #{_lambda_.31} parent=5 // pred_check
      _
    $region10: #{_lambda_.31} parent=5 // pred_check_branch
      %108 = sbr.rel (%p105) target = $region12
    $region11: #{_lambda_.31} parent=5 // pred_region
      %s109 = ssub.s32 %s8, 1
      // Predicated region
      $region13: #{_lambda_.31} parent=11 // pred_check
        %p110 = pneg %p67
      $region14: #{_lambda_.31} parent=11 // pred_check_branch
        %112 = sbr.rel (%p110) target = $region16
      $region15: #{_lambda_.31} parent=11 // pred_region
        _
      $region16: #{_lambda_.31} parent=11 // pred_fallthru
        _
    $region12: #{_lambda_.31} parent=5 // pred_fallthru
      _
    %p113 = scmp.lt.s32.totalorder %s8, 2
    // Predicated region
    $region17: #{_lambda_.31} parent=5 // pred_check
      %p114 = pneg %p113
    $region18: #{_lambda_.31} parent=5 // pred_check_branch
      %116 = sbr.rel (%p114) target = $region20
    $region19: #{_lambda_.31} parent=5 // pred_region
      // Predicated region
      $region21: #{_lambda_.31} parent=19 // pred_check
        %p117 = pneg %p40
      $region22: #{_lambda_.31} parent=19 // pred_check_branch
        %119 = sbr.rel (%p117) target = $region24
      $region23: #{_lambda_.31} parent=19 // pred_region
        %p120 = scmp.lt.s32.totalorder %s15, 1
        %s121 = scalar_select %p120, %s15, 1
        %s122 = smul.addr %s121, 24
        %s123 = smul.addr %s122, 4
        %s124 = scalar_lea.vmem %s0, %s123
      $region24: #{_lambda_.31} parent=19 // pred_fallthru
        _
    $region20: #{_lambda_.31} parent=5 // pred_fallthru
      _
    %p125 = scmp.le.s32.totalorder 1, %s8
    %p126 = scmp.lt.s32.totalorder %s8, 3
    %p127 = pnand %p125, %p126
    %p128 = pneg %p127
    // Predicated region
    $region25: #{_lambda_.31} parent=5 // pred_check
      _
    $region26: #{_lambda_.31} parent=5 // pred_check_branch
      %130 = sbr.rel (%p127) target = $region28
    $region27: #{_lambda_.31} parent=5 // pred_region
      %s131 = ssub.s32 %s8, 1
      %p132 = scmp.lt.s32.totalorder %s17, 1
      %s133 = scalar_select %p132, %s17, 1
      %s134 = smul.addr %s133, 24
      %s135 = smul.addr %s134, 4
      %s136 = scalar_lea.vmem %s0, %s135
      %p137 = pneg %p46
      %p138 = pneg %p43
      %p139 = pneg %p67
      %p140 = pneg %p64
      %p141 = pneg %p95
      %p142 = pneg %p92
      %s143 = smul.u32 8, %s18
      %p144 = scmp.lt.s32.totalorder %s17, 1
      %s145 = scalar_select %p144, %s17, 1
      %p146 = scmp.lt.s32.totalorder %s143, 7
      %s147 = scalar_select %p146, %s143, 7
      %s148 = smul.addr %s145, 8
      %s149 = sadd.s32 %s147, %s148
      %s150 = smul.addr %s149, 4
      %s151 = scalar_lea.vmem %s2, %s150
      %p152 = scmp.lt.s32.totalorder %s17, 1
      %s153 = scalar_select %p152, %s17, 1
      %s154 = smul.addr %s153, 24
      %s155 = smul.addr %s154, 4
      %s156 = scalar_lea.vmem %s0, %s155
      %s157 = smul.u32 8, %s18
      %p158 = scmp.lt.s32.totalorder %s17, 1
      %s159 = scalar_select %p158, %s17, 1
      %p160 = scmp.lt.s32.totalorder %s157, 7
      %s161 = scalar_select %p160, %s157, 7
      %s162 = smul.addr %s159, 8
      %s163 = sadd.s32 %s161, %s162
      %s164 = smul.addr %s163, 4
      %s165 = scalar_lea.vmem %s2, %s164
      %s166 = smul.u32 8, %s18
      %s168 = smul.u32 %s18, 8
      %s169 = smul.u32 %s168, 2
      %s170 = smul.addr %s169, 4
      %s171 = scalar_lea.vmem %s156, %s170
      %v172 = vld [vmem:[%s171] sm:$0xf]
      %v173 = vld [vmem:[%s171 + $0x4] sm:$0x3]
      %v174 = vld [vmem:[%s171 + $0x8] sm:$0xf]
      %v175 = vld [vmem:[%s171 + $0xc] sm:$0x3]
      %v176 = vld [vmem:[%s171 + $0x10] sm:$0xf]
      %v177 = vld [vmem:[%s171 + $0x14] sm:$0x3]
      %v178 = vld [vmem:[%s171 + $0x18] sm:$0xf]
      %v179 = vld [vmem:[%s171 + $0x1c] sm:$0x3]
      %v180 = vld [vmem:[%s171 + $0x20] sm:$0xf]
      %v181 = vld [vmem:[%s171 + $0x24] sm:$0x3]
      %v182 = vld [vmem:[%s171 + $0x28] sm:$0xf]
      %v183 = vld [vmem:[%s171 + $0x2c] sm:$0x3]
      %v184 = vld [vmem:[%s171 + $0x30] sm:$0xf]
      %v185 = vld [vmem:[%s171 + $0x34] sm:$0x3]
      %v186 = vld [vmem:[%s171 + $0x38] sm:$0xf]
      %v187 = vld [vmem:[%s171 + $0x3c] sm:$0x3]
      %v188 = vld [vmem:[%s1] sm:$0xf]
      %vm205 = vcmask 1042432
      %vm206 = vcmask 1046532
      %vm207 = vmor %vm205, %vm206
      %v208 = vrot.slane %v172, 5
      %v209 = vrot.slane %v208, 4
      %v210 = vrot.slane %v173, 5
      %v211 = vsel %vm207, %v209, %v210
      %v212 = vrot.slane %v174, 5
      %v213 = vrot.slane %v212, 4
      %v214 = vrot.slane %v175, 5
      %v215 = vsel %vm207, %v213, %v214
      %v216 = vrot.slane %v176, 5
      %v217 = vrot.slane %v216, 4
      %v218 = vrot.slane %v177, 5
      %v219 = vsel %vm207, %v217, %v218
      %v220 = vrot.slane %v178, 5
      %v221 = vrot.slane %v220, 4
      %v222 = vrot.slane %v179, 5
      %v223 = vsel %vm207, %v221, %v222
      %v224 = vrot.slane %v180, 5
      %v225 = vrot.slane %v224, 4
      %v226 = vrot.slane %v181, 5
      %v227 = vsel %vm207, %v225, %v226
      %v228 = vrot.slane %v182, 5
      %v229 = vrot.slane %v228, 4
      %v230 = vrot.slane %v183, 5
      %v231 = vsel %vm207, %v229, %v230
      %v232 = vrot.slane %v184, 5
      %v233 = vrot.slane %v232, 4
      %v234 = vrot.slane %v185, 5
      %v235 = vsel %vm207, %v233, %v234
      %v236 = vrot.slane %v186, 5
      %v237 = vrot.slane %v236, 4
      %v238 = vrot.slane %v187, 5
      %v239 = vsel %vm207, %v237, %v238
      %s240 = scalar_lea.vmem %s1, 4
      %v241 = vld [vmem:[%s240] sm:$0xf]
      %v242 = vunpack.c.l.b16 %v211
      %v243 = vunpack.c.l.b16 %v215
      %v244 = vunpack.c.l.b16 %v219
      %v245 = vunpack.c.l.b16 %v223
      %v246 = vunpack.c.l.b16 %v227
      %v247 = vunpack.c.l.b16 %v231
      %v248 = vunpack.c.l.b16 %v235
      %v249 = vunpack.c.l.b16 %v239
      %v250 = vpack.c.b16 %v243, %v242
      %v251 = vpack.c.b16 %v245, %v244
      %v252 = vpack.c.b16 %v247, %v246
      %v253 = vpack.c.b16 %v249, %v248
      %vm254 = vcmask 64512
      %v256 = vsel %vm254, %v250, 0
      %v259 = vsel %vm254, %v251, 0
      %v262 = vsel %vm254, %v252, 0
      %v265 = vsel %vm254, %v253, 0
      %vm267 = vcmask 1043456
      %v269 = vsel %vm267, %v241, 0
      %271 = vmatprep.subr.bf16.mxu0 0
      %272 = vmatpush1.bf16.msra.mxu0 %v269
      %273 = vmatprep.subr.bf16.mxu0 0
      %274 = vmatpush1.bf16.msra.mxu0 0
      %275 = vmatprep.subr.bf16.mxu0 0
      %276 = vmatpush1.bf16.msra.mxu0 0
      %277 = vmatprep.subr.bf16.mxu0 0
      %278 = vmatpush1.bf16.msra.mxu0 0
      %279 = vmatprep.subr.bf16.mxu0 0
      %280 = vmatpush1.bf16.msra.mxu0 0
      %281 = vmatprep.subr.bf16.mxu0 0
      %282 = vmatpush1.bf16.msra.mxu0 0
      %283 = vmatprep.subr.bf16.mxu0 0
      %284 = vmatpush1.bf16.msra.mxu0 0
      %285 = vmatprep.subr.bf16.mxu0 0
      %286 = vmatpush1.bf16.msra.mxu0 0
      %287 = vmatprep.subr.bf16.mxu0 0
      %288 = vmatpush1.bf16.msra.mxu0 0
      %289 = vmatprep.subr.bf16.mxu0 0
      %290 = vmatpush1.bf16.msra.mxu0 0
      %291 = vmatprep.subr.bf16.mxu0 0
      %292 = vmatpush1.bf16.msra.mxu0 0
      %293 = vmatprep.subr.bf16.mxu0 0
      %294 = vmatpush1.bf16.msra.mxu0 0
      %295 = vmatprep.subr.bf16.mxu0 0
      %296 = vmatpush1.bf16.msra.mxu0 0
      %297 = vmatprep.subr.bf16.mxu0 0
      %298 = vmatpush1.bf16.msra.mxu0 0
      %299 = vmatprep.subr.bf16.mxu0 0
      %300 = vmatpush1.bf16.msra.mxu0 0
      %301 = vmatprep.subr.bf16.mxu0 0
      %302 = vmatpush1.bf16.msra.mxu0 0
      %303 = vmatprep.mubr.bf16.mxu0 0
      %304 = vmatmul.mubr.bf16.gmra.mrb[0].mxu0 %v256
      %v305 = vpop.f32.mrb[0].mxu0
      %v306 = vadd.f32 0.0, %v305
      %v307 = vpop.f32.mrb[0].mxu0
      %v308 = vpop.f32.mrb[0].mxu0
      %v309 = vadd.f32 0.0, %v308
      %v310 = vpop.f32.mrb[0].mxu0
      %311 = vmatprep.mubr.bf16.mxu0 0
      %312 = vmatmul.mubr.bf16.gmra.mrb[0].mxu0 %v259
      %v313 = vpop.f32.mrb[0].mxu0
      %v314 = vadd.f32 0.0, %v313
      %v315 = vpop.f32.mrb[0].mxu0
      %v316 = vpop.f32.mrb[0].mxu0
      %v317 = vadd.f32 0.0, %v316
      %v318 = vpop.f32.mrb[0].mxu0
      %319 = vmatprep.mubr.bf16.mxu0 0
      %320 = vmatmul.mubr.bf16.gmra.mrb[0].mxu0 %v262
      %v321 = vpop.f32.mrb[0].mxu0
      %v322 = vadd.f32 0.0, %v321
      %v323 = vpop.f32.mrb[0].mxu0
      %v324 = vpop.f32.mrb[0].mxu0
      %v325 = vadd.f32 0.0, %v324
      %v326 = vpop.f32.mrb[0].mxu0
      %327 = vmatprep.mubr.bf16.mxu0 0
      %328 = vmatmul.mubr.bf16.gmra.mrb[0].mxu0 %v265
      %v329 = vpop.f32.mrb[0].mxu0
      %v330 = vadd.f32 0.0, %v329
      %v331 = vpop.f32.mrb[0].mxu0
      %v332 = vpop.f32.mrb[0].mxu0
      %v333 = vadd.f32 0.0, %v332
      %v334 = vpop.f32.mrb[0].mxu0
      %335 = vdwg.mxu0
      %v336 = vunpack.c.l.b16 %v172
      %v337 = vunpack.c.l.b16 %v174
      %v338 = vunpack.c.l.b16 %v176
      %v339 = vunpack.c.l.b16 %v178
      %v340 = vunpack.c.l.b16 %v180
      %v341 = vunpack.c.l.b16 %v182
      %v342 = vunpack.c.l.b16 %v184
      %v343 = vunpack.c.l.b16 %v186
      %v344 = vpack.c.b16 %v337, %v336
      %v345 = vpack.c.b16 %v339, %v338
      %v346 = vpack.c.b16 %v341, %v340
      %v347 = vpack.c.b16 %v343, %v342
      %v349 = vsel %vm254, %v344, 0
      %v352 = vsel %vm254, %v345, 0
      %v355 = vsel %vm254, %v346, 0
      %v358 = vsel %vm254, %v347, 0
      %v361 = vsel %vm267, %v188, 0
      %363 = vmatprep.subr.bf16.mxu0 0
      %364 = vmatpush1.bf16.msra.mxu0 %v361
      %365 = vmatprep.subr.bf16.mxu0 0
      %366 = vmatpush1.bf16.msra.mxu0 0
      %367 = vmatprep.subr.bf16.mxu0 0
      %368 = vmatpush1.bf16.msra.mxu0 0
      %369 = vmatprep.subr.bf16.mxu0 0
      %370 = vmatpush1.bf16.msra.mxu0 0
      %371 = vmatprep.subr.bf16.mxu0 0
      %372 = vmatpush1.bf16.msra.mxu0 0
      %373 = vmatprep.subr.bf16.mxu0 0
      %374 = vmatpush1.bf16.msra.mxu0 0
      %375 = vmatprep.subr.bf16.mxu0 0
      %376 = vmatpush1.bf16.msra.mxu0 0
      %377 = vmatprep.subr.bf16.mxu0 0
      %378 = vmatpush1.bf16.msra.mxu0 0
      %379 = vmatprep.subr.bf16.mxu0 0
      %380 = vmatpush1.bf16.msra.mxu0 0
      %381 = vmatprep.subr.bf16.mxu0 0
      %382 = vmatpush1.bf16.msra.mxu0 0
      %383 = vmatprep.subr.bf16.mxu0 0
      %384 = vmatpush1.bf16.msra.mxu0 0
      %385 = vmatprep.subr.bf16.mxu0 0
      %386 = vmatpush1.bf16.msra.mxu0 0
      %387 = vmatprep.subr.bf16.mxu0 0
      %388 = vmatpush1.bf16.msra.mxu0 0
      %389 = vmatprep.subr.bf16.mxu0 0
      %390 = vmatpush1.bf16.msra.mxu0 0
      %391 = vmatprep.subr.bf16.mxu0 0
      %392 = vmatpush1.bf16.msra.mxu0 0
      %393 = vmatprep.subr.bf16.mxu0 0
      %394 = vmatpush1.bf16.msra.mxu0 0
      %395 = vmatprep.mubr.bf16.mxu0 0
      %396 = vmatmul.mubr.bf16.gmra.mrb[0].mxu0 %v349
      %v397 = vpop.f32.mrb[0].mxu0
      %v398 = vadd.f32 %v306, %v397
      %v399 = vpop.f32.mrb[0].mxu0
      %v400 = vpop.f32.mrb[0].mxu0
      %v401 = vadd.f32 %v309, %v400
      %v402 = vpop.f32.mrb[0].mxu0
      %403 = vmatprep.mubr.bf16.mxu0 0
      %404 = vmatmul.mubr.bf16.gmra.mrb[0].mxu0 %v352
      %v405 = vpop.f32.mrb[0].mxu0
      %v406 = vadd.f32 %v314, %v405
      %v407 = vpop.f32.mrb[0].mxu0
      %v408 = vpop.f32.mrb[0].mxu0
      %v409 = vadd.f32 %v317, %v408
      %v410 = vpop.f32.mrb[0].mxu0
      %411 = vmatprep.mubr.bf16.mxu0 0
      %412 = vmatmul.mubr.bf16.gmra.mrb[0].mxu0 %v355
      %v413 = vpop.f32.mrb[0].mxu0
      %v414 = vadd.f32 %v322, %v413
      %v415 = vpop.f32.mrb[0].mxu0
      %v416 = vpop.f32.mrb[0].mxu0
      %v417 = vadd.f32 %v325, %v416
      %v418 = vpop.f32.mrb[0].mxu0
      %419 = vmatprep.mubr.bf16.mxu0 0
      %420 = vmatmul.mubr.bf16.gmra.mrb[0].mxu0 %v358
      %v421 = vpop.f32.mrb[0].mxu0
      %v422 = vadd.f32 %v330, %v421
      %v423 = vpop.f32.mrb[0].mxu0
      %v424 = vpop.f32.mrb[0].mxu0
      %v425 = vadd.f32 %v333, %v424
      %v426 = vpop.f32.mrb[0].mxu0
      %427 = vdwg.mxu0
      %vm428 = vcmask 1041408
      %vm429 = vcmask 1045508
      %vm430 = vmor %vm428, %vm429
      %v431 = vrot.slane %v172, 6
      %v432 = vrot.slane %v431, 4
      %v433 = vrot.slane %v173, 6
      %v434 = vsel %vm430, %v432, %v433
      %v435 = vrot.slane %v174, 6
      %v436 = vrot.slane %v435, 4
      %v437 = vrot.slane %v175, 6
      %v438 = vsel %vm430, %v436, %v437
      %v439 = vrot.slane %v176, 6
      %v440 = vrot.slane %v439, 4
      %v441 = vrot.slane %v177, 6
      %v442 = vsel %vm430, %v440, %v441
      %v443 = vrot.slane %v178, 6
      %v444 = vrot.slane %v443, 4
      %v445 = vrot.slane %v179, 6
      %v446 = vsel %vm430, %v444, %v445
      %v447 = vrot.slane %v180, 6
      %v448 = vrot.slane %v447, 4
      %v449 = vrot.slane %v181, 6
      %v450 = vsel %vm430, %v448, %v449
      %v451 = vrot.slane %v182, 6
      %v452 = vrot.slane %v451, 4
      %v453 = vrot.slane %v183, 6
      %v454 = vsel %vm430, %v452, %v453
      %v455 = vrot.slane %v184, 6
      %v456 = vrot.slane %v455, 4
      %v457 = vrot.slane %v185, 6
      %v458 = vsel %vm430, %v456, %v457
      %v459 = vrot.slane %v186, 6
      %v460 = vrot.slane %v459, 4
      %v461 = vrot.slane %v187, 6
      %v462 = vsel %vm430, %v460, %v461
      %s463 = scalar_lea.vmem %s1, 8
      %v464 = vld [vmem:[%s463] sm:$0xf]
      %v465 = vunpack.c.l.b16 %v434
      %v466 = vunpack.c.l.b16 %v438
      %v467 = vunpack.c.l.b16 %v442
      %v468 = vunpack.c.l.b16 %v446
      %v469 = vunpack.c.l.b16 %v450
      %v470 = vunpack.c.l.b16 %v454
      %v471 = vunpack.c.l.b16 %v458
      %v472 = vunpack.c.l.b16 %v462
      %v473 = vpack.c.b16 %v466, %v465
      %v474 = vpack.c.b16 %v468, %v467
      %v475 = vpack.c.b16 %v470, %v469
      %v476 = vpack.c.b16 %v472, %v471
      %v478 = vsel %vm254, %v473, 0
      %v481 = vsel %vm254, %v474, 0
      %v484 = vsel %vm254, %v475, 0
      %v487 = vsel %vm254, %v476, 0
      %v490 = vsel %vm267, %v464, 0
      %492 = vmatprep.subr.bf16.mxu0 0
      %493 = vmatpush1.bf16.msra.mxu0 %v490
      %494 = vmatprep.subr.bf16.mxu0 0
      %495 = vmatpush1.bf16.msra.mxu0 0
      %496 = vmatprep.subr.bf16.mxu0 0
      %497 = vmatpush1.bf16.msra.mxu0 0
      %498 = vmatprep.subr.bf16.mxu0 0
      %499 = vmatpush1.bf16.msra.mxu0 0
      %500 = vmatprep.subr.bf16.mxu0 0
      %501 = vmatpush1.bf16.msra.mxu0 0
      %502 = vmatprep.subr.bf16.mxu0 0
      %503 = vmatpush1.bf16.msra.mxu0 0
      %504 = vmatprep.subr.bf16.mxu0 0
      %505 = vmatpush1.bf16.msra.mxu0 0
      %506 = vmatprep.subr.bf16.mxu0 0
      %507 = vmatpush1.bf16.msra.mxu0 0
      %508 = vmatprep.subr.bf16.mxu0 0
      %509 = vmatpush1.bf16.msra.mxu0 0
      %510 = vmatprep.subr.bf16.mxu0 0
      %511 = vmatpush1.bf16.msra.mxu0 0
      %512 = vmatprep.subr.bf16.mxu0 0
      %513 = vmatpush1.bf16.msra.mxu0 0
      %514 = vmatprep.subr.bf16.mxu0 0
      %515 = vmatpush1.bf16.msra.mxu0 0
      %516 = vmatprep.subr.bf16.mxu0 0
      %517 = vmatpush1.bf16.msra.mxu0 0
      %518 = vmatprep.subr.bf16.mxu0 0
      %519 = vmatpush1.bf16.msra.mxu0 0
      %520 = vmatprep.subr.bf16.mxu0 0
      %521 = vmatpush1.bf16.msra.mxu0 0
      %522 = vmatprep.subr.bf16.mxu0 0
      %523 = vmatpush1.bf16.msra.mxu0 0
      %524 = vmatprep.mubr.bf16.mxu0 0
      %525 = vmatmul.mubr.bf16.gmra.mrb[0].mxu0 %v478
      %v526 = vpop.f32.mrb[0].mxu0
      %v527 = vadd.f32 0.0, %v526
      %v528 = vpop.f32.mrb[0].mxu0
      %v529 = vpop.f32.mrb[0].mxu0
      %v530 = vadd.f32 0.0, %v529
      %v531 = vpop.f32.mrb[0].mxu0
      %532 = vmatprep.mubr.bf16.mxu0 0
      %533 = vmatmul.mubr.bf16.gmra.mrb[0].mxu0 %v481
      %v534 = vpop.f32.mrb[0].mxu0
      %v535 = vadd.f32 0.0, %v534
      %v536 = vpop.f32.mrb[0].mxu0
      %v537 = vpop.f32.mrb[0].mxu0
      %v538 = vadd.f32 0.0, %v537
      %v539 = vpop.f32.mrb[0].mxu0
      %540 = vmatprep.mubr.bf16.mxu0 0
      %541 = vmatmul.mubr.bf16.gmra.mrb[0].mxu0 %v484
      %v542 = vpop.f32.mrb[0].mxu0
      %v543 = vadd.f32 0.0, %v542
      %v544 = vpop.f32.mrb[0].mxu0
      %v545 = vpop.f32.mrb[0].mxu0
      %v546 = vadd.f32 0.0, %v545
      %v547 = vpop.f32.mrb[0].mxu0
      %548 = vmatprep.mubr.bf16.mxu0 0
      %549 = vmatmul.mubr.bf16.gmra.mrb[0].mxu0 %v487
      %v550 = vpop.f32.mrb[0].mxu0
      %v551 = vadd.f32 0.0, %v550
      %v552 = vpop.f32.mrb[0].mxu0
      %v553 = vpop.f32.mrb[0].mxu0
      %v554 = vadd.f32 0.0, %v553
      %v555 = vpop.f32.mrb[0].mxu0
      %556 = vdwg.mxu0
      %v557 = vadd.f32 %v398, %v527
      %v558 = vadd.f32 %v401, %v530
      %v559 = vadd.f32 %v406, %v535
      %v560 = vadd.f32 %v409, %v538
      %v561 = vadd.f32 %v414, %v543
      %v562 = vadd.f32 %v417, %v546
      %v563 = vadd.f32 %v422, %v551
      %v564 = vadd.f32 %v425, %v554
      %s565 = sadd.s32 %s168, 2
      %s566 = smul.u32 %s565, 2
      %s567 = smul.addr %s566, 4
      %s568 = scalar_lea.vmem %s156, %s567
      %v569 = vld [vmem:[%s568] sm:$0xf]
      %v570 = vld [vmem:[%s568 + $0x4] sm:$0x3]
      %v571 = vld [vmem:[%s568 + $0x8] sm:$0xf]
      %v572 = vld [vmem:[%s568 + $0xc] sm:$0x3]
      %v573 = vld [vmem:[%s568 + $0x10] sm:$0xf]
      %v574 = vld [vmem:[%s568 + $0x14] sm:$0x3]
      %v575 = vld [vmem:[%s568 + $0x18] sm:$0xf]
      %v576 = vld [vmem:[%s568 + $0x1c] sm:$0x3]
      %v577 = vld [vmem:[%s568 + $0x20] sm:$0xf]
      %v578 = vld [vmem:[%s568 + $0x24] sm:$0x3]
      %v579 = vld [vmem:[%s568 + $0x28] sm:$0xf]
      %v580 = vld [vmem:[%s568 + $0x2c] sm:$0x3]
      %v581 = vld [vmem:[%s568 + $0x30] sm:$0xf]
      %v582 = vld [vmem:[%s568 + $0x34] sm:$0x3]
      %v583 = vld [vmem:[%s568 + $0x38] sm:$0xf]
      %v584 = vld [vmem:[%s568 + $0x3c] sm:$0x3]
      %s585 = scalar_lea.vmem %s1, 12
      %v586 = vld [vmem:[%s585] sm:$0xf]
      %v595 = vunpack.c.l.b16 %v569
      %v596 = vunpack.c.l.b16 %v571
      %v597 = vunpack.c.l.b16 %v573
      %v598 = vunpack.c.l.b16 %v575
      %v599 = vunpack.c.l.b16 %v577
      %v600 = vunpack.c.l.b16 %v579
      %v601 = vunpack.c.l.b16 %v581
      %v602 = vunpack.c.l.b16 %v583
      %v603 = vpack.c.b16 %v596, %v595
      %v604 = vpack.c.b16 %v598, %v597
      %v605 = vpack.c.b16 %v600, %v599
      %v606 = vpack.c.b16 %v602, %v601
      %v608 = vsel %vm254, %v603, 0
      %v611 = vsel %vm254, %v604, 0
      %v614 = vsel %vm254, %v605, 0
      %v617 = vsel %vm254, %v606, 0
      %v620 = vsel %vm267, %v586, 0
      %622 = vmatprep.subr.bf16.mxu0 0
      %623 = vmatpush1.bf16.msra.mxu0 %v620
      %624 = vmatprep.subr.bf16.mxu0 0
      %625 = vmatpush1.bf16.msra.mxu0 0
      %626 = vmatprep.subr.bf16.mxu0 0
      %627 = vmatpush1.bf16.msra.mxu0 0
      %628 = vmatprep.subr.bf16.mxu0 0
      %629 = vmatpush1.bf16.msra.mxu0 0
      %630 = vmatprep.subr.bf16.mxu0 0
      %631 = vmatpush1.bf16.msra.mxu0 0
      %632 = vmatprep.subr.bf16.mxu0 0
      %633 = vmatpush1.bf16.msra.mxu0 0
      %634 = vmatprep.subr.bf16.mxu0 0
      %635 = vmatpush1.bf16.msra.mxu0 0
      %636 = vmatprep.subr.bf16.mxu0 0
      %637 = vmatpush1.bf16.msra.mxu0 0
      %638 = vmatprep.subr.bf16.mxu0 0
      %639 = vmatpush1.bf16.msra.mxu0 0
      %640 = vmatprep.subr.bf16.mxu0 0
      %641 = vmatpush1.bf16.msra.mxu0 0
      %642 = vmatprep.subr.bf16.mxu0 0
      %643 = vmatpush1.bf16.msra.mxu0 0
      %644 = vmatprep.subr.bf16.mxu0 0
      %645 = vmatpush1.bf16.msra.mxu0 0
      %646 = vmatprep.subr.bf16.mxu0 0
      %647 = vmatpush1.bf16.msra.mxu0 0
      %648 = vmatprep.subr.bf16.mxu0 0
      %649 = vmatpush1.bf16.msra.mxu0 0
      %650 = vmatprep.subr.bf16.mxu0 0
      %651 = vmatpush1.bf16.msra.mxu0 0
      %652 = vmatprep.subr.bf16.mxu0 0
      %653 = vmatpush1.bf16.msra.mxu0 0
      %654 = vmatprep.mubr.bf16.mxu0 0
      %655 = vmatmul.mubr.bf16.gmra.mrb[0].mxu0 %v608
      %v656 = vpop.f32.mrb[0].mxu0
      %v657 = vadd.f32 0.0, %v656
      %v658 = vpop.f32.mrb[0].mxu0
      %v659 = vpop.f32.mrb[0].mxu0
      %v660 = vadd.f32 0.0, %v659
      %v661 = vpop.f32.mrb[0].mxu0
      %662 = vmatprep.mubr.bf16.mxu0 0
      %663 = vmatmul.mubr.bf16.gmra.mrb[0].mxu0 %v611
      %v664 = vpop.f32.mrb[0].mxu0
      %v665 = vadd.f32 0.0, %v664
      %v666 = vpop.f32.mrb[0].mxu0
      %v667 = vpop.f32.mrb[0].mxu0
      %v668 = vadd.f32 0.0, %v667
      %v669 = vpop.f32.mrb[0].mxu0
      %670 = vmatprep.mubr.bf16.mxu0 0
      %671 = vmatmul.mubr.bf16.gmra.mrb[0].mxu0 %v614
      %v672 = vpop.f32.mrb[0].mxu0
      %v673 = vadd.f32 0.0, %v672
      %v674 = vpop.f32.mrb[0].mxu0
      %v675 = vpop.f32.mrb[0].mxu0
      %v676 = vadd.f32 0.0, %v675
      %v677 = vpop.f32.mrb[0].mxu0
      %678 = vmatprep.mubr.bf16.mxu0 0
      %679 = vmatmul.mubr.bf16.gmra.mrb[0].mxu0 %v617
      %v680 = vpop.f32.mrb[0].mxu0
      %v681 = vadd.f32 0.0, %v680
      %v682 = vpop.f32.mrb[0].mxu0
      %v683 = vpop.f32.mrb[0].mxu0
      %v684 = vadd.f32 0.0, %v683
      %v685 = vpop.f32.mrb[0].mxu0
      %686 = vdwg.mxu0
      %v687 = vadd.f32 %v557, %v657
      %v688 = vadd.f32 %v558, %v660
      %v689 = vadd.f32 %v559, %v665
      %v690 = vadd.f32 %v560, %v668
      %v691 = vadd.f32 %v561, %v673
      %v692 = vadd.f32 %v562, %v676
      %v693 = vadd.f32 %v563, %v681
      %v694 = vadd.f32 %v564, %v684
      %v703 = vrot.slane %v569, 5
      %v704 = vrot.slane %v703, 4
      %v705 = vrot.slane %v570, 5
      %v706 = vsel %vm207, %v704, %v705
      %v707 = vrot.slane %v571, 5
      %v708 = vrot.slane %v707, 4
      %v709 = vrot.slane %v572, 5
      %v710 = vsel %vm207, %v708, %v709
      %v711 = vrot.slane %v573, 5
      %v712 = vrot.slane %v711, 4
      %v713 = vrot.slane %v574, 5
      %v714 = vsel %vm207, %v712, %v713
      %v715 = vrot.slane %v575, 5
      %v716 = vrot.slane %v715, 4
      %v717 = vrot.slane %v576, 5
      %v718 = vsel %vm207, %v716, %v717
      %v719 = vrot.slane %v577, 5
      %v720 = vrot.slane %v719, 4
      %v721 = vrot.slane %v578, 5
      %v722 = vsel %vm207, %v720, %v721
      %v723 = vrot.slane %v579, 5
      %v724 = vrot.slane %v723, 4
      %v725 = vrot.slane %v580, 5
      %v726 = vsel %vm207, %v724, %v725
      %v727 = vrot.slane %v581, 5
      %v728 = vrot.slane %v727, 4
      %v729 = vrot.slane %v582, 5
      %v730 = vsel %vm207, %v728, %v729
      %v731 = vrot.slane %v583, 5
      %v732 = vrot.slane %v731, 4
      %v733 = vrot.slane %v584, 5
      %v734 = vsel %vm207, %v732, %v733
      %s735 = scalar_lea.vmem %s1, 16
      %v736 = vld [vmem:[%s735] sm:$0xf]
      %v737 = vunpack.c.l.b16 %v706
      %v738 = vunpack.c.l.b16 %v710
      %v739 = vunpack.c.l.b16 %v714
      %v740 = vunpack.c.l.b16 %v718
      %v741 = vunpack.c.l.b16 %v722
      %v742 = vunpack.c.l.b16 %v726
      %v743 = vunpack.c.l.b16 %v730
      %v744 = vunpack.c.l.b16 %v734
      %v745 = vpack.c.b16 %v738, %v737
      %v746 = vpack.c.b16 %v740, %v739
      %v747 = vpack.c.b16 %v742, %v741
      %v748 = vpack.c.b16 %v744, %v743
      %v750 = vsel %vm254, %v745, 0
      %v753 = vsel %vm254, %v746, 0
      %v756 = vsel %vm254, %v747, 0
      %v759 = vsel %vm254, %v748, 0
      %v762 = vsel %vm267, %v736, 0
      %764 = vmatprep.subr.bf16.mxu0 0
      %765 = vmatpush1.bf16.msra.mxu0 %v762
      %766 = vmatprep.subr.bf16.mxu0 0
      %767 = vmatpush1.bf16.msra.mxu0 0
      %768 = vmatprep.subr.bf16.mxu0 0
      %769 = vmatpush1.bf16.msra.mxu0 0
      %770 = vmatprep.subr.bf16.mxu0 0
      %771 = vmatpush1.bf16.msra.mxu0 0
      %772 = vmatprep.subr.bf16.mxu0 0
      %773 = vmatpush1.bf16.msra.mxu0 0
      %774 = vmatprep.subr.bf16.mxu0 0
      %775 = vmatpush1.bf16.msra.mxu0 0
      %776 = vmatprep.subr.bf16.mxu0 0
      %777 = vmatpush1.bf16.msra.mxu0 0
      %778 = vmatprep.subr.bf16.mxu0 0
      %779 = vmatpush1.bf16.msra.mxu0 0
      %780 = vmatprep.subr.bf16.mxu0 0
      %781 = vmatpush1.bf16.msra.mxu0 0
      %782 = vmatprep.subr.bf16.mxu0 0
      %783 = vmatpush1.bf16.msra.mxu0 0
      %784 = vmatprep.subr.bf16.mxu0 0
      %785 = vmatpush1.bf16.msra.mxu0 0
      %786 = vmatprep.subr.bf16.mxu0 0
      %787 = vmatpush1.bf16.msra.mxu0 0
      %788 = vmatprep.subr.bf16.mxu0 0
      %789 = vmatpush1.bf16.msra.mxu0 0
      %790 = vmatprep.subr.bf16.mxu0 0
      %791 = vmatpush1.bf16.msra.mxu0 0
      %792 = vmatprep.subr.bf16.mxu0 0
      %793 = vmatpush1.bf16.msra.mxu0 0
      %794 = vmatprep.subr.bf16.mxu0 0
      %795 = vmatpush1.bf16.msra.mxu0 0
      %796 = vmatprep.mubr.bf16.mxu0 0
      %797 = vmatmul.mubr.bf16.gmra.mrb[0].mxu0 %v750
      %v798 = vpop.f32.mrb[0].mxu0
      %v799 = vadd.f32 0.0, %v798
      %v800 = vpop.f32.mrb[0].mxu0
      %v801 = vpop.f32.mrb[0].mxu0
      %v802 = vadd.f32 0.0, %v801
      %v803 = vpop.f32.mrb[0].mxu0
      %804 = vmatprep.mubr.bf16.mxu0 0
      %805 = vmatmul.mubr.bf16.gmra.mrb[0].mxu0 %v753
      %v806 = vpop.f32.mrb[0].mxu0
      %v807 = vadd.f32 0.0, %v806
      %v808 = vpop.f32.mrb[0].mxu0
      %v809 = vpop.f32.mrb[0].mxu0
      %v810 = vadd.f32 0.0, %v809
      %v811 = vpop.f32.mrb[0].mxu0
      %812 = vmatprep.mubr.bf16.mxu0 0
      %813 = vmatmul.mubr.bf16.gmra.mrb[0].mxu0 %v756
      %v814 = vpop.f32.mrb[0].mxu0
      %v815 = vadd.f32 0.0, %v814
      %v816 = vpop.f32.mrb[0].mxu0
      %v817 = vpop.f32.mrb[0].mxu0
      %v818 = vadd.f32 0.0, %v817
      %v819 = vpop.f32.mrb[0].mxu0
      %820 = vmatprep.mubr.bf16.mxu0 0
      %821 = vmatmul.mubr.bf16.gmra.mrb[0].mxu0 %v759
      %v822 = vpop.f32.mrb[0].mxu0
      %v823 = vadd.f32 0.0, %v822
      %v824 = vpop.f32.mrb[0].mxu0
      %v825 = vpop.f32.mrb[0].mxu0
      %v826 = vadd.f32 0.0, %v825
      %v827 = vpop.f32.mrb[0].mxu0
      %828 = vdwg.mxu0
      %v829 = vadd.f32 %v687, %v799
      %v830 = vadd.f32 %v688, %v802
      %v831 = vadd.f32 %v689, %v807
      %v832 = vadd.f32 %v690, %v810
      %v833 = vadd.f32 %v691, %v815
      %v834 = vadd.f32 %v692, %v818
      %v835 = vadd.f32 %v693, %v823
      %v836 = vadd.f32 %v694, %v826
      %v837 = vrot.slane %v569, 6
      %v838 = vrot.slane %v837, 4
      %v839 = vrot.slane %v570, 6
      %v840 = vsel %vm430, %v838, %v839
      %v841 = vrot.slane %v571, 6
      %v842 = vrot.slane %v841, 4
      %v843 = vrot.slane %v572, 6
      %v844 = vsel %vm430, %v842, %v843
      %v845 = vrot.slane %v573, 6
      %v846 = vrot.slane %v845, 4
      %v847 = vrot.slane %v574, 6
      %v848 = vsel %vm430, %v846, %v847
      %v849 = vrot.slane %v575, 6
      %v850 = vrot.slane %v849, 4
      %v851 = vrot.slane %v576, 6
      %v852 = vsel %vm430, %v850, %v851
      %v853 = vrot.slane %v577, 6
      %v854 = vrot.slane %v853, 4
      %v855 = vrot.slane %v578, 6
      %v856 = vsel %vm430, %v854, %v855
      %v857 = vrot.slane %v579, 6
      %v858 = vrot.slane %v857, 4
      %v859 = vrot.slane %v580, 6
      %v860 = vsel %vm430, %v858, %v859
      %v861 = vrot.slane %v581, 6
      %v862 = vrot.slane %v861, 4
      %v863 = vrot.slane %v582, 6
      %v864 = vsel %vm430, %v862, %v863
      %v865 = vrot.slane %v583, 6
      %v866 = vrot.slane %v865, 4
      %v867 = vrot.slane %v584, 6
      %v868 = vsel %vm430, %v866, %v867
      %s869 = scalar_lea.vmem %s1, 20
      %v870 = vld [vmem:[%s869] sm:$0xf]
      %v871 = vunpack.c.l.b16 %v840
      %v872 = vunpack.c.l.b16 %v844
      %v873 = vunpack.c.l.b16 %v848
      %v874 = vunpack.c.l.b16 %v852
      %v875 = vunpack.c.l.b16 %v856
      %v876 = vunpack.c.l.b16 %v860
      %v877 = vunpack.c.l.b16 %v864
      %v878 = vunpack.c.l.b16 %v868
      %v879 = vpack.c.b16 %v872, %v871
      %v880 = vpack.c.b16 %v874, %v873
      %v881 = vpack.c.b16 %v876, %v875
      %v882 = vpack.c.b16 %v878, %v877
      %v884 = vsel %vm254, %v879, 0
      %v887 = vsel %vm254, %v880, 0
      %v890 = vsel %vm254, %v881, 0
      %v893 = vsel %vm254, %v882, 0
      %v896 = vsel %vm267, %v870, 0
      %898 = vmatprep.subr.bf16.mxu0 0
      %899 = vmatpush1.bf16.msra.mxu0 %v896
      %900 = vmatprep.subr.bf16.mxu0 0
      %901 = vmatpush1.bf16.msra.mxu0 0
      %902 = vmatprep.subr.bf16.mxu0 0
      %903 = vmatpush1.bf16.msra.mxu0 0
      %904 = vmatprep.subr.bf16.mxu0 0
      %905 = vmatpush1.bf16.msra.mxu0 0
      %906 = vmatprep.subr.bf16.mxu0 0
      %907 = vmatpush1.bf16.msra.mxu0 0
      %908 = vmatprep.subr.bf16.mxu0 0
      %909 = vmatpush1.bf16.msra.mxu0 0
      %910 = vmatprep.subr.bf16.mxu0 0
      %911 = vmatpush1.bf16.msra.mxu0 0
      %912 = vmatprep.subr.bf16.mxu0 0
      %913 = vmatpush1.bf16.msra.mxu0 0
      %914 = vmatprep.subr.bf16.mxu0 0
      %915 = vmatpush1.bf16.msra.mxu0 0
      %916 = vmatprep.subr.bf16.mxu0 0
      %917 = vmatpush1.bf16.msra.mxu0 0
      %918 = vmatprep.subr.bf16.mxu0 0
      %919 = vmatpush1.bf16.msra.mxu0 0
      %920 = vmatprep.subr.bf16.mxu0 0
      %921 = vmatpush1.bf16.msra.mxu0 0
      %922 = vmatprep.subr.bf16.mxu0 0
      %923 = vmatpush1.bf16.msra.mxu0 0
      %924 = vmatprep.subr.bf16.mxu0 0
      %925 = vmatpush1.bf16.msra.mxu0 0
      %926 = vmatprep.subr.bf16.mxu0 0
      %927 = vmatpush1.bf16.msra.mxu0 0
      %928 = vmatprep.subr.bf16.mxu0 0
      %929 = vmatpush1.bf16.msra.mxu0 0
      %930 = vmatprep.mubr.bf16.mxu0 0
      %931 = vmatmul.mubr.bf16.gmra.mrb[0].mxu0 %v884
      %v932 = vpop.f32.mrb[0].mxu0
      %v933 = vadd.f32 0.0, %v932
      %v934 = vpop.f32.mrb[0].mxu0
      %v935 = vpop.f32.mrb[0].mxu0
      %v936 = vadd.f32 0.0, %v935
      %v937 = vpop.f32.mrb[0].mxu0
      %938 = vmatprep.mubr.bf16.mxu0 0
      %939 = vmatmul.mubr.bf16.gmra.mrb[0].mxu0 %v887
      %v940 = vpop.f32.mrb[0].mxu0
      %v941 = vadd.f32 0.0, %v940
      %v942 = vpop.f32.mrb[0].mxu0
      %v943 = vpop.f32.mrb[0].mxu0
      %v944 = vadd.f32 0.0, %v943
      %v945 = vpop.f32.mrb[0].mxu0
      %946 = vmatprep.mubr.bf16.mxu0 0
      %947 = vmatmul.mubr.bf16.gmra.mrb[0].mxu0 %v890
      %v948 = vpop.f32.mrb[0].mxu0
      %v949 = vadd.f32 0.0, %v948
      %v950 = vpop.f32.mrb[0].mxu0
      %v951 = vpop.f32.mrb[0].mxu0
      %v952 = vadd.f32 0.0, %v951
      %v953 = vpop.f32.mrb[0].mxu0
      %954 = vmatprep.mubr.bf16.mxu0 0
      %955 = vmatmul.mubr.bf16.gmra.mrb[0].mxu0 %v893
      %v956 = vpop.f32.mrb[0].mxu0
      %v957 = vadd.f32 0.0, %v956
      %v958 = vpop.f32.mrb[0].mxu0
      %v959 = vpop.f32.mrb[0].mxu0
      %v960 = vadd.f32 0.0, %v959
      %v961 = vpop.f32.mrb[0].mxu0
      %962 = vdwg.mxu0
      %v963 = vadd.f32 %v829, %v933
      %v964 = vadd.f32 %v830, %v936
      %v965 = vadd.f32 %v831, %v941
      %v966 = vadd.f32 %v832, %v944
      %v967 = vadd.f32 %v833, %v949
      %v968 = vadd.f32 %v834, %v952
      %v969 = vadd.f32 %v835, %v957
      %v970 = vadd.f32 %v836, %v960
      %s971 = sadd.s32 %s168, 4
      %s972 = smul.u32 %s971, 2
      %s973 = smul.addr %s972, 4
      %s974 = scalar_lea.vmem %s156, %s973
      %v975 = vld [vmem:[%s974] sm:$0xf]
      %v976 = vld [vmem:[%s974 + $0x4] sm:$0x3]
      %v977 = vld [vmem:[%s974 + $0x8] sm:$0xf]
      %v978 = vld [vmem:[%s974 + $0xc] sm:$0x3]
      %v979 = vld [vmem:[%s974 + $0x10] sm:$0xf]
      %v980 = vld [vmem:[%s974 + $0x14] sm:$0x3]
      %v981 = vld [vmem:[%s974 + $0x18] sm:$0xf]
      %v982 = vld [vmem:[%s974 + $0x1c] sm:$0x3]
      %v983 = vld [vmem:[%s974 + $0x20] sm:$0xf]
      %v984 = vld [vmem:[%s974 + $0x24] sm:$0x3]
      %v985 = vld [vmem:[%s974 + $0x28] sm:$0xf]
      %v986 = vld [vmem:[%s974 + $0x2c] sm:$0x3]
      %v987 = vld [vmem:[%s974 + $0x30] sm:$0xf]
      %v988 = vld [vmem:[%s974 + $0x34] sm:$0x3]
      %v989 = vld [vmem:[%s974 + $0x38] sm:$0xf]
      %v990 = vld [vmem:[%s974 + $0x3c] sm:$0x3]
      %s991 = scalar_lea.vmem %s1, 24
      %v992 = vld [vmem:[%s991] sm:$0xf]
      %v1001 = vunpack.c.l.b16 %v975
      %v1002 = vunpack.c.l.b16 %v977
      %v1003 = vunpack.c.l.b16 %v979
      %v1004 = vunpack.c.l.b16 %v981
      %v1005 = vunpack.c.l.b16 %v983
      %v1006 = vunpack.c.l.b16 %v985
      %v1007 = vunpack.c.l.b16 %v987
      %v1008 = vunpack.c.l.b16 %v989
      %v1009 = vpack.c.b16 %v1002, %v1001
      %v1010 = vpack.c.b16 %v1004, %v1003
      %v1011 = vpack.c.b16 %v1006, %v1005
      %v1012 = vpack.c.b16 %v1008, %v1007
      %v1014 = vsel %vm254, %v1009, 0
      %v1017 = vsel %vm254, %v1010, 0
      %v1020 = vsel %vm254, %v1011, 0
      %v1023 = vsel %vm254, %v1012, 0
      %v1026 = vsel %vm267, %v992, 0
      %1028 = vmatprep.subr.bf16.mxu0 0
      %1029 = vmatpush1.bf16.msra.mxu0 %v1026
      %1030 = vmatprep.subr.bf16.mxu0 0
      %1031 = vmatpush1.bf16.msra.mxu0 0
      %1032 = vmatprep.subr.bf16.mxu0 0
      %1033 = vmatpush1.bf16.msra.mxu0 0
      %1034 = vmatprep.subr.bf16.mxu0 0
      %1035 = vmatpush1.bf16.msra.mxu0 0
      %1036 = vmatprep.subr.bf16.mxu0 0
      %1037 = vmatpush1.bf16.msra.mxu0 0
      %1038 = vmatprep.subr.bf16.mxu0 0
      %1039 = vmatpush1.bf16.msra.mxu0 0
      %1040 = vmatprep.subr.bf16.mxu0 0
      %1041 = vmatpush1.bf16.msra.mxu0 0
      %1042 = vmatprep.subr.bf16.mxu0 0
      %1043 = vmatpush1.bf16.msra.mxu0 0
      %1044 = vmatprep.subr.bf16.mxu0 0
      %1045 = vmatpush1.bf16.msra.mxu0 0
      %1046 = vmatprep.subr.bf16.mxu0 0
      %1047 = vmatpush1.bf16.msra.mxu0 0
      %1048 = vmatprep.subr.bf16.mxu0 0
      %1049 = vmatpush1.bf16.msra.mxu0 0
      %1050 = vmatprep.subr.bf16.mxu0 0
      %1051 = vmatpush1.bf16.msra.mxu0 0
      %1052 = vmatprep.subr.bf16.mxu0 0
      %1053 = vmatpush1.bf16.msra.mxu0 0
      %1054 = vmatprep.subr.bf16.mxu0 0
      %1055 = vmatpush1.bf16.msra.mxu0 0
      %1056 = vmatprep.subr.bf16.mxu0 0
      %1057 = vmatpush1.bf16.msra.mxu0 0
      %1058 = vmatprep.subr.bf16.mxu0 0
      %1059 = vmatpush1.bf16.msra.mxu0 0
      %1060 = vmatprep.mubr.bf16.mxu0 0
      %1061 = vmatmul.mubr.bf16.gmra.mrb[0].mxu0 %v1014
      %v1062 = vpop.f32.mrb[0].mxu0
      %v1063 = vadd.f32 0.0, %v1062
      %v1064 = vpop.f32.mrb[0].mxu0
      %v1065 = vpop.f32.mrb[0].mxu0
      %v1066 = vadd.f32 0.0, %v1065
      %v1067 = vpop.f32.mrb[0].mxu0
      %1068 = vmatprep.mubr.bf16.mxu0 0
      %1069 = vmatmul.mubr.bf16.gmra.mrb[0].mxu0 %v1017
      %v1070 = vpop.f32.mrb[0].mxu0
      %v1071 = vadd.f32 0.0, %v1070
      %v1072 = vpop.f32.mrb[0].mxu0
      %v1073 = vpop.f32.mrb[0].mxu0
      %v1074 = vadd.f32 0.0, %v1073
      %v1075 = vpop.f32.mrb[0].mxu0
      %1076 = vmatprep.mubr.bf16.mxu0 0
      %1077 = vmatmul.mubr.bf16.gmra.mrb[0].mxu0 %v1020
      %v1078 = vpop.f32.mrb[0].mxu0
      %v1079 = vadd.f32 0.0, %v1078
      %v1080 = vpop.f32.mrb[0].mxu0
      %v1081 = vpop.f32.mrb[0].mxu0
      %v1082 = vadd.f32 0.0, %v1081
      %v1083 = vpop.f32.mrb[0].mxu0
      %1084 = vmatprep.mubr.bf16.mxu0 0
      %1085 = vmatmul.mubr.bf16.gmra.mrb[0].mxu0 %v1023
      %v1086 = vpop.f32.mrb[0].mxu0
      %v1087 = vadd.f32 0.0, %v1086
      %v1088 = vpop.f32.mrb[0].mxu0
      %v1089 = vpop.f32.mrb[0].mxu0
      %v1090 = vadd.f32 0.0, %v1089
      %v1091 = vpop.f32.mrb[0].mxu0
      %1092 = vdwg.mxu0
      %v1093 = vadd.f32 %v963, %v1063
      %v1094 = vadd.f32 %v964, %v1066
      %v1095 = vadd.f32 %v965, %v1071
      %v1096 = vadd.f32 %v966, %v1074
      %v1097 = vadd.f32 %v967, %v1079
      %v1098 = vadd.f32 %v968, %v1082
      %v1099 = vadd.f32 %v969, %v1087
      %v1100 = vadd.f32 %v970, %v1090
      %v1109 = vrot.slane %v975, 5
      %v1110 = vrot.slane %v1109, 4
      %v1111 = vrot.slane %v976, 5
      %v1112 = vsel %vm207, %v1110, %v1111
      %v1113 = vrot.slane %v977, 5
      %v1114 = vrot.slane %v1113, 4
      %v1115 = vrot.slane %v978, 5
      %v1116 = vsel %vm207, %v1114, %v1115
      %v1117 = vrot.slane %v979, 5
      %v1118 = vrot.slane %v1117, 4
      %v1119 = vrot.slane %v980, 5
      %v1120 = vsel %vm207, %v1118, %v1119
      %v1121 = vrot.slane %v981, 5
      %v1122 = vrot.slane %v1121, 4
      %v1123 = vrot.slane %v982, 5
      %v1124 = vsel %vm207, %v1122, %v1123
      %v1125 = vrot.slane %v983, 5
      %v1126 = vrot.slane %v1125, 4
      %v1127 = vrot.slane %v984, 5
      %v1128 = vsel %vm207, %v1126, %v1127
      %v1129 = vrot.slane %v985, 5
      %v1130 = vrot.slane %v1129, 4
      %v1131 = vrot.slane %v986, 5
      %v1132 = vsel %vm207, %v1130, %v1131
      %v1133 = vrot.slane %v987, 5
      %v1134 = vrot.slane %v1133, 4
      %v1135 = vrot.slane %v988, 5
      %v1136 = vsel %vm207, %v1134, %v1135
      %v1137 = vrot.slane %v989, 5
      %v1138 = vrot.slane %v1137, 4
      %v1139 = vrot.slane %v990, 5
      %v1140 = vsel %vm207, %v1138, %v1139
      %s1141 = scalar_lea.vmem %s1, 28
      %v1142 = vld [vmem:[%s1141] sm:$0xf]
      %v1143 = vunpack.c.l.b16 %v1112
      %v1144 = vunpack.c.l.b16 %v1116
      %v1145 = vunpack.c.l.b16 %v1120
      %v1146 = vunpack.c.l.b16 %v1124
      %v1147 = vunpack.c.l.b16 %v1128
      %v1148 = vunpack.c.l.b16 %v1132
      %v1149 = vunpack.c.l.b16 %v1136
      %v1150 = vunpack.c.l.b16 %v1140
      %v1151 = vpack.c.b16 %v1144, %v1143
      %v1152 = vpack.c.b16 %v1146, %v1145
      %v1153 = vpack.c.b16 %v1148, %v1147
      %v1154 = vpack.c.b16 %v1150, %v1149
      %v1156 = vsel %vm254, %v1151, 0
      %v1159 = vsel %vm254, %v1152, 0
      %v1162 = vsel %vm254, %v1153, 0
      %v1165 = vsel %vm254, %v1154, 0
      %v1168 = vsel %vm267, %v1142, 0
      %1170 = vmatprep.subr.bf16.mxu0 0
      %1171 = vmatpush1.bf16.msra.mxu0 %v1168
      %1172 = vmatprep.subr.bf16.mxu0 0
      %1173 = vmatpush1.bf16.msra.mxu0 0
      %1174 = vmatprep.subr.bf16.mxu0 0
      %1175 = vmatpush1.bf16.msra.mxu0 0
      %1176 = vmatprep.subr.bf16.mxu0 0
      %1177 = vmatpush1.bf16.msra.mxu0 0
      %1178 = vmatprep.subr.bf16.mxu0 0
      %1179 = vmatpush1.bf16.msra.mxu0 0
      %1180 = vmatprep.subr.bf16.mxu0 0
      %1181 = vmatpush1.bf16.msra.mxu0 0
      %1182 = vmatprep.subr.bf16.mxu0 0
      %1183 = vmatpush1.bf16.msra.mxu0 0
      %1184 = vmatprep.subr.bf16.mxu0 0
      %1185 = vmatpush1.bf16.msra.mxu0 0
      %1186 = vmatprep.subr.bf16.mxu0 0
      %1187 = vmatpush1.bf16.msra.mxu0 0
      %1188 = vmatprep.subr.bf16.mxu0 0
      %1189 = vmatpush1.bf16.msra.mxu0 0
      %1190 = vmatprep.subr.bf16.mxu0 0
      %1191 = vmatpush1.bf16.msra.mxu0 0
      %1192 = vmatprep.subr.bf16.mxu0 0
      %1193 = vmatpush1.bf16.msra.mxu0 0
      %1194 = vmatprep.subr.bf16.mxu0 0
      %1195 = vmatpush1.bf16.msra.mxu0 0
      %1196 = vmatprep.subr.bf16.mxu0 0
      %1197 = vmatpush1.bf16.msra.mxu0 0
      %1198 = vmatprep.subr.bf16.mxu0 0
      %1199 = vmatpush1.bf16.msra.mxu0 0
      %1200 = vmatprep.subr.bf16.mxu0 0
      %1201 = vmatpush1.bf16.msra.mxu0 0
      %1202 = vmatprep.mubr.bf16.mxu0 0
      %1203 = vmatmul.mubr.bf16.gmra.mrb[0].mxu0 %v1156
      %v1204 = vpop.f32.mrb[0].mxu0
      %v1205 = vadd.f32 0.0, %v1204
      %v1206 = vpop.f32.mrb[0].mxu0
      %v1207 = vpop.f32.mrb[0].mxu0
      %v1208 = vadd.f32 0.0, %v1207
      %v1209 = vpop.f32.mrb[0].mxu0
      %1210 = vmatprep.mubr.bf16.mxu0 0
      %1211 = vmatmul.mubr.bf16.gmra.mrb[0].mxu0 %v1159
      %v1212 = vpop.f32.mrb[0].mxu0
      %v1213 = vadd.f32 0.0, %v1212
      %v1214 = vpop.f32.mrb[0].mxu0
      %v1215 = vpop.f32.mrb[0].mxu0
      %v1216 = vadd.f32 0.0, %v1215
      %v1217 = vpop.f32.mrb[0].mxu0
      %1218 = vmatprep.mubr.bf16.mxu0 0
      %1219 = vmatmul.mubr.bf16.gmra.mrb[0].mxu0 %v1162
      %v1220 = vpop.f32.mrb[0].mxu0
      %v1221 = vadd.f32 0.0, %v1220
      %v1222 = vpop.f32.mrb[0].mxu0
      %v1223 = vpop.f32.mrb[0].mxu0
      %v1224 = vadd.f32 0.0, %v1223
      %v1225 = vpop.f32.mrb[0].mxu0
      %1226 = vmatprep.mubr.bf16.mxu0 0
      %1227 = vmatmul.mubr.bf16.gmra.mrb[0].mxu0 %v1165
      %v1228 = vpop.f32.mrb[0].mxu0
      %v1229 = vadd.f32 0.0, %v1228
      %v1230 = vpop.f32.mrb[0].mxu0
      %v1231 = vpop.f32.mrb[0].mxu0
      %v1232 = vadd.f32 0.0, %v1231
      %v1233 = vpop.f32.mrb[0].mxu0
      %1234 = vdwg.mxu0
      %v1235 = vadd.f32 %v1093, %v1205
      %v1236 = vadd.f32 %v1094, %v1208
      %v1237 = vadd.f32 %v1095, %v1213
      %v1238 = vadd.f32 %v1096, %v1216
      %v1239 = vadd.f32 %v1097, %v1221
      %v1240 = vadd.f32 %v1098, %v1224
      %v1241 = vadd.f32 %v1099, %v1229
      %v1242 = vadd.f32 %v1100, %v1232
      %v1243 = vrot.slane %v975, 6
      %v1244 = vrot.slane %v1243, 4
      %v1245 = vrot.slane %v976, 6
      %v1246 = vsel %vm430, %v1244, %v1245
      %v1247 = vrot.slane %v977, 6
      %v1248 = vrot.slane %v1247, 4
      %v1249 = vrot.slane %v978, 6
      %v1250 = vsel %vm430, %v1248, %v1249
      %v1251 = vrot.slane %v979, 6
      %v1252 = vrot.slane %v1251, 4
      %v1253 = vrot.slane %v980, 6
      %v1254 = vsel %vm430, %v1252, %v1253
      %v1255 = vrot.slane %v981, 6
      %v1256 = vrot.slane %v1255, 4
      %v1257 = vrot.slane %v982, 6
      %v1258 = vsel %vm430, %v1256, %v1257
      %v1259 = vrot.slane %v983, 6
      %v1260 = vrot.slane %v1259, 4
      %v1261 = vrot.slane %v984, 6
      %v1262 = vsel %vm430, %v1260, %v1261
      %v1263 = vrot.slane %v985, 6
      %v1264 = vrot.slane %v1263, 4
      %v1265 = vrot.slane %v986, 6
      %v1266 = vsel %vm430, %v1264, %v1265
      %v1267 = vrot.slane %v987, 6
      %v1268 = vrot.slane %v1267, 4
      %v1269 = vrot.slane %v988, 6
      %v1270 = vsel %vm430, %v1268, %v1269
      %v1271 = vrot.slane %v989, 6
      %v1272 = vrot.slane %v1271, 4
      %v1273 = vrot.slane %v990, 6
      %v1274 = vsel %vm430, %v1272, %v1273
      %s1275 = scalar_lea.vmem %s1, 32
      %v1276 = vld [vmem:[%s1275] sm:$0xf]
      %v1277 = vunpack.c.l.b16 %v1246
      %v1278 = vunpack.c.l.b16 %v1250
      %v1279 = vunpack.c.l.b16 %v1254
      %v1280 = vunpack.c.l.b16 %v1258
      %v1281 = vunpack.c.l.b16 %v1262
      %v1282 = vunpack.c.l.b16 %v1266
      %v1283 = vunpack.c.l.b16 %v1270
      %v1284 = vunpack.c.l.b16 %v1274
      %v1285 = vpack.c.b16 %v1278, %v1277
      %v1286 = vpack.c.b16 %v1280, %v1279
      %v1287 = vpack.c.b16 %v1282, %v1281
      %v1288 = vpack.c.b16 %v1284, %v1283
      %v1290 = vsel %vm254, %v1285, 0
      %v1293 = vsel %vm254, %v1286, 0
      %v1296 = vsel %vm254, %v1287, 0
      %v1299 = vsel %vm254, %v1288, 0
      %v1302 = vsel %vm267, %v1276, 0
      %1304 = vmatprep.subr.bf16.mxu0 0
      %1305 = vmatpush1.bf16.msra.mxu0 %v1302
      %1306 = vmatprep.subr.bf16.mxu0 0
      %1307 = vmatpush1.bf16.msra.mxu0 0
      %1308 = vmatprep.subr.bf16.mxu0 0
      %1309 = vmatpush1.bf16.msra.mxu0 0
      %1310 = vmatprep.subr.bf16.mxu0 0
      %1311 = vmatpush1.bf16.msra.mxu0 0
      %1312 = vmatprep.subr.bf16.mxu0 0
      %1313 = vmatpush1.bf16.msra.mxu0 0
      %1314 = vmatprep.subr.bf16.mxu0 0
      %1315 = vmatpush1.bf16.msra.mxu0 0
      %1316 = vmatprep.subr.bf16.mxu0 0
      %1317 = vmatpush1.bf16.msra.mxu0 0
      %1318 = vmatprep.subr.bf16.mxu0 0
      %1319 = vmatpush1.bf16.msra.mxu0 0
      %1320 = vmatprep.subr.bf16.mxu0 0
      %1321 = vmatpush1.bf16.msra.mxu0 0
      %1322 = vmatprep.subr.bf16.mxu0 0
      %1323 = vmatpush1.bf16.msra.mxu0 0
      %1324 = vmatprep.subr.bf16.mxu0 0
      %1325 = vmatpush1.bf16.msra.mxu0 0
      %1326 = vmatprep.subr.bf16.mxu0 0
      %1327 = vmatpush1.bf16.msra.mxu0 0
      %1328 = vmatprep.subr.bf16.mxu0 0
      %1329 = vmatpush1.bf16.msra.mxu0 0
      %1330 = vmatprep.subr.bf16.mxu0 0
      %1331 = vmatpush1.bf16.msra.mxu0 0
      %1332 = vmatprep.subr.bf16.mxu0 0
      %1333 = vmatpush1.bf16.msra.mxu0 0
      %1334 = vmatprep.subr.bf16.mxu0 0
      %1335 = vmatpush1.bf16.msra.mxu0 0
      %1336 = vmatprep.mubr.bf16.mxu0 0
      %1337 = vmatmul.mubr.bf16.gmra.mrb[0].mxu0 %v1290
      %v1338 = vpop.f32.mrb[0].mxu0
      %v1339 = vadd.f32 0.0, %v1338
      %v1340 = vpop.f32.mrb[0].mxu0
      %v1341 = vpop.f32.mrb[0].mxu0
      %v1342 = vadd.f32 0.0, %v1341
      %v1343 = vpop.f32.mrb[0].mxu0
      %1344 = vmatprep.mubr.bf16.mxu0 0
      %1345 = vmatmul.mubr.bf16.gmra.mrb[0].mxu0 %v1293
      %v1346 = vpop.f32.mrb[0].mxu0
      %v1347 = vadd.f32 0.0, %v1346
      %v1348 = vpop.f32.mrb[0].mxu0
      %v1349 = vpop.f32.mrb[0].mxu0
      %v1350 = vadd.f32 0.0, %v1349
      %v1351 = vpop.f32.mrb[0].mxu0
      %1352 = vmatprep.mubr.bf16.mxu0 0
      %1353 = vmatmul.mubr.bf16.gmra.mrb[0].mxu0 %v1296
      %v1354 = vpop.f32.mrb[0].mxu0
      %v1355 = vadd.f32 0.0, %v1354
      %v1356 = vpop.f32.mrb[0].mxu0
      %v1357 = vpop.f32.mrb[0].mxu0
      %v1358 = vadd.f32 0.0, %v1357
      %v1359 = vpop.f32.mrb[0].mxu0
      %1360 = vmatprep.mubr.bf16.mxu0 0
      %1361 = vmatmul.mubr.bf16.gmra.mrb[0].mxu0 %v1299
      %v1362 = vpop.f32.mrb[0].mxu0
      %v1363 = vadd.f32 0.0, %v1362
      %v1364 = vpop.f32.mrb[0].mxu0
      %v1365 = vpop.f32.mrb[0].mxu0
      %v1366 = vadd.f32 0.0, %v1365
      %v1367 = vpop.f32.mrb[0].mxu0
      %1368 = vdwg.mxu0
      %v1369 = vadd.f32 %v1235, %v1339
      %v1370 = vadd.f32 %v1236, %v1342
      %v1371 = vadd.f32 %v1237, %v1347
      %v1372 = vadd.f32 %v1238, %v1350
      %v1373 = vadd.f32 %v1239, %v1355
      %v1374 = vadd.f32 %v1240, %v1358
      %v1375 = vadd.f32 %v1241, %v1363
      %v1376 = vadd.f32 %v1242, %v1366
      %vm1377 = vcmp.ge.f32.partialorder %v1369, 0.0
      %vm1378 = vcmp.ge.f32.partialorder %v1370, 0.0
      %vm1379 = vcmp.ge.f32.partialorder %v1371, 0.0
      %vm1380 = vcmp.ge.f32.partialorder %v1372, 0.0
      %vm1381 = vcmp.ge.f32.partialorder %v1373, 0.0
      %vm1382 = vcmp.ge.f32.partialorder %v1374, 0.0
      %vm1383 = vcmp.ge.f32.partialorder %v1375, 0.0
      %vm1384 = vcmp.ge.f32.partialorder %v1376, 0.0
      %v1385 = vmul.f32 %v1369, 0.1
      %v1386 = vmul.f32 %v1370, 0.1
      %v1387 = vmul.f32 %v1371, 0.1
      %v1388 = vmul.f32 %v1372, 0.1
      %v1389 = vmul.f32 %v1373, 0.1
      %v1390 = vmul.f32 %v1374, 0.1
      %v1391 = vmul.f32 %v1375, 0.1
      %v1392 = vmul.f32 %v1376, 0.1
      %v1393 = vsel %vm1377, %v1369, %v1385
      %v1394 = vsel %vm1378, %v1370, %v1386
      %v1395 = vsel %vm1379, %v1371, %v1387
      %v1396 = vsel %vm1380, %v1372, %v1388
      %v1397 = vsel %vm1381, %v1373, %v1389
      %v1398 = vsel %vm1382, %v1374, %v1390
      %v1399 = vsel %vm1383, %v1375, %v1391
      %v1400 = vsel %vm1384, %v1376, %v1392
      %v1401 = vpack.c.bf16 %v1393, %v1393
      %v1402 = vpack.c.bf16 %v1394, %v1394
      %v1403 = vpack.c.bf16 %v1395, %v1395
      %v1404 = vpack.c.bf16 %v1396, %v1396
      %v1405 = vpack.c.bf16 %v1397, %v1397
      %v1406 = vpack.c.bf16 %v1398, %v1398
      %v1407 = vpack.c.bf16 %v1399, %v1399
      %v1408 = vpack.c.bf16 %v1400, %v1400
      %vm1409 = vcmask 60416
      %1410 = vst.msk [vmem:[%s165] sm:$0xf] %vm1409, %v1401
      %1411 = vst.msk [vmem:[%s165 + $0x4] sm:$0xf] %vm1409, %v1402
      %1412 = vst.msk [vmem:[%s165 + $0x8] sm:$0xf] %vm1409, %v1403
      %1413 = vst.msk [vmem:[%s165 + $0xc] sm:$0xf] %vm1409, %v1404
      %1414 = vst.msk [vmem:[%s165 + $0x10] sm:$0xf] %vm1409, %v1405
      %1415 = vst.msk [vmem:[%s165 + $0x14] sm:$0xf] %vm1409, %v1406
      %1416 = vst.msk [vmem:[%s165 + $0x18] sm:$0xf] %vm1409, %v1407
      %1417 = vst.msk [vmem:[%s165 + $0x1c] sm:$0xf] %vm1409, %v1408
      %s1418 = smul.u32 8, %s18
      %p1419 = scmp.lt.s32.totalorder %s17, 1
      %s1420 = scalar_select %p1419, %s17, 1
      %p1421 = scmp.lt.s32.totalorder %s1418, 7
      %s1422 = scalar_select %p1421, %s1418, 7
      %s1423 = smul.addr %s1420, 8
      %s1424 = sadd.s32 %s1422, %s1423
      %s1425 = smul.addr %s1424, 4
      %s1426 = scalar_lea.vmem %s2, %s1425
      // Predicated region
      $region29: #{_lambda_.31} parent=27 // pred_check
        %p1427 = pneg %p92
      $region30: #{_lambda_.31} parent=27 // pred_check_branch
        %1429 = sbr.rel (%p1427) target = $region32
      $region31: #{_lambda_.31} parent=27 // pred_region
        %s1430 = smul.u32 8, %s18
      $region32: #{_lambda_.31} parent=27 // pred_fallthru
        _
    $region28: #{_lambda_.31} parent=5 // pred_fallthru
      _
    %p1431 = scmp.le.s32.totalorder 2, %s8
    // Predicated region
    $region33: #{_lambda_.31} parent=5 // pred_check
      %p1432 = pneg %p1431
    $region34: #{_lambda_.31} parent=5 // pred_check_branch
      %1434 = sbr.rel (%p1432) target = $region36
    $region35: #{_lambda_.31} parent=5 // pred_region
      %s1435 = ssub.s32 %s8, 2
      // Predicated region
      $region37: #{_lambda_.31} parent=35 // pred_check
        %p1436 = pneg %p98
      $region38: #{_lambda_.31} parent=35 // pred_check_branch
        %1438 = sbr.rel (%p1436) target = $region40
      $region39: #{_lambda_.31} parent=35 // pred_region
        %s1439 = smul.u32 8, %s20
        %p1440 = scmp.lt.s32.totalorder %s19, 1
        %s1441 = scalar_select %p1440, %s19, 1
        %p1442 = scmp.lt.s32.totalorder %s1439, 7
        %s1443 = scalar_select %p1442, %s1439, 7
        %s1444 = smul.addr %s1441, 8
        %s1445 = sadd.s32 %s1443, %s1444
        %s1446 = smul.addr %s1445, 4
        %s1447 = scalar_lea.vmem %s2, %s1446
      $region40: #{_lambda_.31} parent=35 // pred_fallthru
        _
    $region36: #{_lambda_.31} parent=5 // pred_fallthru
      _
  $region6: #{_lambda_.31} parent=0 // loop_footer
    %s12 = sadd.s32 1, %s8
  $region7: #{_lambda_.31} parent=0 // loop_footer_branch
    %7 = sbr.rel target = $region3
  $region8: #{_lambda_.31} parent=0 // loop_exit
    _

// kernel: _lambda_.36
$region0: #{_lambda_.36}
  #allocation0 [shape = 'u32[]', space=smem, size = 0x4, offset = 0x4, fixed_abs, tag = 'smem constant byte address 0x4 - core index']
  #allocation1 [shape = 'u32[144,128]{1,0:T(1,128)}', space=vmem, size = 0x12000, scoped, tag = 'internal scratch']
  %s0 = inlined_call_operand.vmem [shape: bf16[128,8], index: 0, kind: input, shape index: {}]
  %s1 = inlined_call_operand.vmem [shape: bf16[128,2], index: 1, kind: input, shape index: {}]
  %s2 = inlined_call_operand.vmem [shape: bf16[128,4], index: 2, kind: input, shape index: {}]
  %s3 = inlined_call_operand.vmem [shape: bf16[128,4], index: 3, kind: input, shape index: {}]
  %s4 = inlined_call_operand.vmem [shape: bf16[8,8], index: 4, kind: input, shape index: {}]
  %s5 = inlined_call_operand.vmem [shape: bf16[2,8], index: 5, kind: input, shape index: {}]
  %s6 = inlined_call_operand.vmem [shape: bf16[4,8], index: 6, kind: input, shape index: {}]
  %s7 = inlined_call_operand.vmem [shape: bf16[4,8], index: 7, kind: input, shape index: {}]
  %s8 = inlined_call_operand.vmem [shape: bf16[128,8], index: 8, kind: output, shape index: {}]
  %s9 = sld [smem:[#allocation0]]
  $region65: #{_lambda_.36} parent=0
    _
  %s11 = ssub.s32 1, %s9
  %s12 = scalar_select 0, %s11, %s9
  loop: start=0, step=1, limit=4
  $region2: #{_lambda_.36} parent=0 // loop_pre_header
    _
  $region3: #{_lambda_.36} parent=0 // loop_header
    %s14 = sphi 0, %s18
    %p15 = scmp.ge.s32.totalorder %s14, 4
    %s24 = sphi 0, %s26
    %s27 = sphi 0, %s24
    %s28 = sphi 0, %s27
    %s44 = sphi 0, %s28
    %s50 = sphi 0, %s52
    %s53 = sphi 0, %s50
    %s54 = sphi 0, %s53
    %s70 = sphi 0, %s54
    %s76 = sphi 0, %s78
    %s79 = sphi 0, %s76
    %s80 = sphi 0, %s79
    %s96 = sphi 0, %s80
    %s102 = sphi 0, %s104
    %s105 = sphi 0, %s102
    %s106 = sphi 0, %s105
    %s122 = sphi 0, %s106
    %s126 = sphi 0, %s126
    %s128 = sphi 0, %s126
    %s129 = sphi 0, %s128
    %s143 = sphi 0, %s129
    %s147 = sphi 0, %s147
    %s149 = sphi 0, %s147
    %s150 = sphi 0, %s149
    %s164 = sphi 0, %s150
    %s168 = sphi 0, %s168
    %s170 = sphi 0, %s168
    %s171 = sphi 0, %s170
    %s185 = sphi 0, %s171
    %s189 = sphi 0, %s189
    %s191 = sphi 0, %s189
    %s192 = sphi 0, %s191
    %s206 = sphi 0, %s192
    %s212 = sphi 0, %s214
    %s215 = sphi 0, %s212
    %s216 = sphi 0, %s215
    %s232 = sphi 0, %s216
  $region4: #{_lambda_.36} parent=0 // loop_header_branch
    %17 = sbr.rel (%p15) target = $region8
  $region5: #{_lambda_.36} parent=0 // loop_body
    %s19 = ssub.s32 %s14, 1
    %s20 = ssub.s32 %s14, 2
    %s21 = sadd.s32 %s14, 1
    %s22 = ssub.s32 %s14, %s21
    %p23 = scmp.eq.s32.totalorder %s22, 0
    %s25 = sadd.s32 %s24, 1
    %s26 = scalar_select %p23, %s24, %s25
    %p29 = pneg %p23
    %p30 = scmp.eq.s32.totalorder %s14, 1
    %p31 = por %p29, %p30
    %p32 = scmp.ne.s32.totalorder %s24, %s27
    %p33 = scmp.eq.s32.totalorder %s14, 0
    %p34 = por %p32, %p33
    %p35 = scmp.ne.s32.totalorder %s24, %s27
    %p36 = scmp.eq.s32.totalorder %s19, 1
    %p37 = por %p35, %p36
    %p38 = scmp.ne.s32.totalorder %s27, %s28
    %p39 = scmp.eq.s32.totalorder %s19, 0
    %p40 = por %p38, %p39
    %p41 = scmp.ne.s32.totalorder %s27, %s28
    %p42 = scmp.eq.s32.totalorder %s20, 1
    %p43 = por %p41, %p42
    %p45 = scmp.ne.s32.totalorder %s28, %s44
    %p46 = scmp.eq.s32.totalorder %s20, 0
    %p47 = por %p45, %p46
    %s48 = ssub.s32 %s14, %s21
    %p49 = scmp.eq.s32.totalorder %s48, 0
    %s51 = sadd.s32 %s50, 1
    %s52 = scalar_select %p49, %s50, %s51
    %p55 = pneg %p49
    %p56 = scmp.eq.s32.totalorder %s14, 1
    %p57 = por %p55, %p56
    %p58 = scmp.ne.s32.totalorder %s50, %s53
    %p59 = scmp.eq.s32.totalorder %s14, 0
    %p60 = por %p58, %p59
    %p61 = scmp.ne.s32.totalorder %s50, %s53
    %p62 = scmp.eq.s32.totalorder %s19, 1
    %p63 = por %p61, %p62
    %p64 = scmp.ne.s32.totalorder %s53, %s54
    %p65 = scmp.eq.s32.totalorder %s19, 0
    %p66 = por %p64, %p65
    %p67 = scmp.ne.s32.totalorder %s53, %s54
    %p68 = scmp.eq.s32.totalorder %s20, 1
    %p69 = por %p67, %p68
    %p71 = scmp.ne.s32.totalorder %s54, %s70
    %p72 = scmp.eq.s32.totalorder %s20, 0
    %p73 = por %p71, %p72
    %s74 = ssub.s32 %s14, %s21
    %p75 = scmp.eq.s32.totalorder %s74, 0
    %s77 = sadd.s32 %s76, 1
    %s78 = scalar_select %p75, %s76, %s77
    %p81 = pneg %p75
    %p82 = scmp.eq.s32.totalorder %s14, 1
    %p83 = por %p81, %p82
    %p84 = scmp.ne.s32.totalorder %s76, %s79
    %p85 = scmp.eq.s32.totalorder %s14, 0
    %p86 = por %p84, %p85
    %p87 = scmp.ne.s32.totalorder %s76, %s79
    %p88 = scmp.eq.s32.totalorder %s19, 1
    %p89 = por %p87, %p88
    %p90 = scmp.ne.s32.totalorder %s79, %s80
    %p91 = scmp.eq.s32.totalorder %s19, 0
    %p92 = por %p90, %p91
    %p93 = scmp.ne.s32.totalorder %s79, %s80
    %p94 = scmp.eq.s32.totalorder %s20, 1
    %p95 = por %p93, %p94
    %p97 = scmp.ne.s32.totalorder %s80, %s96
    %p98 = scmp.eq.s32.totalorder %s20, 0
    %p99 = por %p97, %p98
    %s100 = ssub.s32 %s14, %s21
    %p101 = scmp.eq.s32.totalorder %s100, 0
    %s103 = sadd.s32 %s102, 1
    %s104 = scalar_select %p101, %s102, %s103
    %p107 = pneg %p101
    %p108 = scmp.eq.s32.totalorder %s14, 1
    %p109 = por %p107, %p108
    %p110 = scmp.ne.s32.totalorder %s102, %s105
    %p111 = scmp.eq.s32.totalorder %s14, 0
    %p112 = por %p110, %p111
    %p113 = scmp.ne.s32.totalorder %s102, %s105
    %p114 = scmp.eq.s32.totalorder %s19, 1
    %p115 = por %p113, %p114
    %p116 = scmp.ne.s32.totalorder %s105, %s106
    %p117 = scmp.eq.s32.totalorder %s19, 0
    %p118 = por %p116, %p117
    %p119 = scmp.ne.s32.totalorder %s105, %s106
    %p120 = scmp.eq.s32.totalorder %s20, 1
    %p121 = por %p119, %p120
    %p123 = scmp.ne.s32.totalorder %s106, %s122
    %p124 = scmp.eq.s32.totalorder %s20, 0
    %p125 = por %p123, %p124
    %s127 = sadd.s32 %s126, 1
    %p130 = scmp.eq.s32.totalorder %s14, 1
    %p131 = scmp.ne.s32.totalorder %s126, %s128
    %p132 = scmp.eq.s32.totalorder %s14, 0
    %p133 = por %p131, %p132
    %p134 = scmp.ne.s32.totalorder %s126, %s128
    %p135 = scmp.eq.s32.totalorder %s19, 1
    %p136 = por %p134, %p135
    %p137 = scmp.ne.s32.totalorder %s128, %s129
    %p138 = scmp.eq.s32.totalorder %s19, 0
    %p139 = por %p137, %p138
    %p140 = scmp.ne.s32.totalorder %s128, %s129
    %p141 = scmp.eq.s32.totalorder %s20, 1
    %p142 = por %p140, %p141
    %p144 = scmp.ne.s32.totalorder %s129, %s143
    %p145 = scmp.eq.s32.totalorder %s20, 0
    %p146 = por %p144, %p145
    %s148 = sadd.s32 %s147, 1
    %p151 = scmp.eq.s32.totalorder %s14, 1
    %p152 = scmp.ne.s32.totalorder %s147, %s149
    %p153 = scmp.eq.s32.totalorder %s14, 0
    %p154 = por %p152, %p153
    %p155 = scmp.ne.s32.totalorder %s147, %s149
    %p156 = scmp.eq.s32.totalorder %s19, 1
    %p157 = por %p155, %p156
    %p158 = scmp.ne.s32.totalorder %s149, %s150
    %p159 = scmp.eq.s32.totalorder %s19, 0
    %p160 = por %p158, %p159
    %p161 = scmp.ne.s32.totalorder %s149, %s150
    %p162 = scmp.eq.s32.totalorder %s20, 1
    %p163 = por %p161, %p162
    %p165 = scmp.ne.s32.totalorder %s150, %s164
    %p166 = scmp.eq.s32.totalorder %s20, 0
    %p167 = por %p165, %p166
    %s169 = sadd.s32 %s168, 1
    %p172 = scmp.eq.s32.totalorder %s14, 1
    %p173 = scmp.ne.s32.totalorder %s168, %s170
    %p174 = scmp.eq.s32.totalorder %s14, 0
    %p175 = por %p173, %p174
    %p176 = scmp.ne.s32.totalorder %s168, %s170
    %p177 = scmp.eq.s32.totalorder %s19, 1
    %p178 = por %p176, %p177
    %p179 = scmp.ne.s32.totalorder %s170, %s171
    %p180 = scmp.eq.s32.totalorder %s19, 0
    %p181 = por %p179, %p180
    %p182 = scmp.ne.s32.totalorder %s170, %s171
    %p183 = scmp.eq.s32.totalorder %s20, 1
    %p184 = por %p182, %p183
    %p186 = scmp.ne.s32.totalorder %s171, %s185
    %p187 = scmp.eq.s32.totalorder %s20, 0
    %p188 = por %p186, %p187
    %s190 = sadd.s32 %s189, 1
    %p193 = scmp.eq.s32.totalorder %s14, 1
    %p194 = scmp.ne.s32.totalorder %s189, %s191
    %p195 = scmp.eq.s32.totalorder %s14, 0
    %p196 = por %p194, %p195
    %p197 = scmp.ne.s32.totalorder %s189, %s191
    %p198 = scmp.eq.s32.totalorder %s19, 1
    %p199 = por %p197, %p198
    %p200 = scmp.ne.s32.totalorder %s191, %s192
    %p201 = scmp.eq.s32.totalorder %s19, 0
    %p202 = por %p200, %p201
    %p203 = scmp.ne.s32.totalorder %s191, %s192
    %p204 = scmp.eq.s32.totalorder %s20, 1
    %p205 = por %p203, %p204
    %p207 = scmp.ne.s32.totalorder %s192, %s206
    %p208 = scmp.eq.s32.totalorder %s20, 0
    %p209 = por %p207, %p208
    %s210 = ssub.s32 %s14, %s21
    %p211 = scmp.eq.s32.totalorder %s210, 0
    %s213 = sadd.s32 %s212, 1
    %s214 = scalar_select %p211, %s212, %s213
    %p217 = pneg %p211
    %p218 = scmp.eq.s32.totalorder %s14, 1
    %p219 = por %p217, %p218
    %p220 = scmp.ne.s32.totalorder %s212, %s215
    %p221 = scmp.eq.s32.totalorder %s14, 0
    %p222 = por %p220, %p221
    %p223 = scmp.ne.s32.totalorder %s212, %s215
    %p224 = scmp.eq.s32.totalorder %s19, 1
    %p225 = por %p223, %p224
    %p226 = scmp.ne.s32.totalorder %s215, %s216
    %p227 = scmp.eq.s32.totalorder %s19, 0
    %p228 = por %p226, %p227
    %p229 = scmp.ne.s32.totalorder %s215, %s216
    %p230 = scmp.eq.s32.totalorder %s20, 1
    %p231 = por %p229, %p230
    %p233 = scmp.ne.s32.totalorder %s216, %s232
    %p234 = scmp.eq.s32.totalorder %s20, 0
    %p235 = por %p233, %p234
    %p236 = scmp.le.s32.totalorder 1, %s14
    %p237 = scmp.lt.s32.totalorder %s14, 3
    %p238 = pnand %p236, %p237
    %p239 = pneg %p238
    // Predicated region
    $region9: #{_lambda_.36} parent=5 // pred_check
      _
    $region10: #{_lambda_.36} parent=5 // pred_check_branch
      %241 = sbr.rel (%p238) target = $region12
    $region11: #{_lambda_.36} parent=5 // pred_region
      %s242 = ssub.s32 %s14, 1
      // Predicated region
      $region13: #{_lambda_.36} parent=11 // pred_check
        %p243 = pneg %p139
      $region14: #{_lambda_.36} parent=11 // pred_check_branch
        %245 = sbr.rel (%p243) target = $region16
      $region15: #{_lambda_.36} parent=11 // pred_region
        _
      $region16: #{_lambda_.36} parent=11 // pred_fallthru
        _
      // Predicated region
      $region17: #{_lambda_.36} parent=11 // pred_check
        %p246 = pneg %p160
      $region18: #{_lambda_.36} parent=11 // pred_check_branch
        %248 = sbr.rel (%p246) target = $region20
      $region19: #{_lambda_.36} parent=11 // pred_region
        _
      $region20: #{_lambda_.36} parent=11 // pred_fallthru
        _
      // Predicated region
      $region21: #{_lambda_.36} parent=11 // pred_check
        %p249 = pneg %p181
      $region22: #{_lambda_.36} parent=11 // pred_check_branch
        %251 = sbr.rel (%p249) target = $region24
      $region23: #{_lambda_.36} parent=11 // pred_region
        _
      $region24: #{_lambda_.36} parent=11 // pred_fallthru
        _
      // Predicated region
      $region25: #{_lambda_.36} parent=11 // pred_check
        %p252 = pneg %p202
      $region26: #{_lambda_.36} parent=11 // pred_check_branch
        %254 = sbr.rel (%p252) target = $region28
      $region27: #{_lambda_.36} parent=11 // pred_region
        _
      $region28: #{_lambda_.36} parent=11 // pred_fallthru
        _
    $region12: #{_lambda_.36} parent=5 // pred_fallthru
      _
    %p255 = scmp.lt.s32.totalorder %s14, 2
    // Predicated region
    $region29: #{_lambda_.36} parent=5 // pred_check
      %p256 = pneg %p255
    $region30: #{_lambda_.36} parent=5 // pred_check_branch
      %258 = sbr.rel (%p256) target = $region32
    $region31: #{_lambda_.36} parent=5 // pred_region
      // Predicated region
      $region33: #{_lambda_.36} parent=31 // pred_check
        %p259 = pneg %p34
      $region34: #{_lambda_.36} parent=31 // pred_check_branch
        %261 = sbr.rel (%p259) target = $region36
      $region35: #{_lambda_.36} parent=31 // pred_region
        %s262 = smul.u32 8, %s14
        %p263 = scmp.lt.s32.totalorder %s262, 15
        %s264 = scalar_select %p263, %s262, 15
        %s265 = smul.addr %s264, 4
        %s266 = scalar_lea.vmem %s0, %s265
        %s267 = smul.u32 8, %s14
      $region36: #{_lambda_.36} parent=31 // pred_fallthru
        _
      // Predicated region
      $region37: #{_lambda_.36} parent=31 // pred_check
        %p268 = pneg %p60
      $region38: #{_lambda_.36} parent=31 // pred_check_branch
        %270 = sbr.rel (%p268) target = $region40
      $region39: #{_lambda_.36} parent=31 // pred_region
        %s271 = smul.u32 8, %s14
        %p272 = scmp.lt.s32.totalorder %s271, 15
        %s273 = scalar_select %p272, %s271, 15
        %s274 = smul.addr %s273, 4
        %s275 = scalar_lea.vmem %s1, %s274
        %s276 = smul.u32 8, %s14
      $region40: #{_lambda_.36} parent=31 // pred_fallthru
        _
      // Predicated region
      $region41: #{_lambda_.36} parent=31 // pred_check
        %p277 = pneg %p86
      $region42: #{_lambda_.36} parent=31 // pred_check_branch
        %279 = sbr.rel (%p277) target = $region44
      $region43: #{_lambda_.36} parent=31 // pred_region
        %s280 = smul.u32 8, %s14
        %p281 = scmp.lt.s32.totalorder %s280, 15
        %s282 = scalar_select %p281, %s280, 15
        %s283 = smul.addr %s282, 4
        %s284 = scalar_lea.vmem %s2, %s283
        %s285 = smul.u32 8, %s14
      $region44: #{_lambda_.36} parent=31 // pred_fallthru
        _
      // Predicated region
      $region45: #{_lambda_.36} parent=31 // pred_check
        %p286 = pneg %p112
      $region46: #{_lambda_.36} parent=31 // pred_check_branch
        %288 = sbr.rel (%p286) target = $region48
      $region47: #{_lambda_.36} parent=31 // pred_region
        %s289 = smul.u32 8, %s14
        %p290 = scmp.lt.s32.totalorder %s289, 15
        %s291 = scalar_select %p290, %s289, 15
        %s292 = smul.addr %s291, 4
        %s293 = scalar_lea.vmem %s3, %s292
        %s294 = smul.u32 8, %s14
      $region48: #{_lambda_.36} parent=31 // pred_fallthru
        _
    $region32: #{_lambda_.36} parent=5 // pred_fallthru
      _
    %p295 = scmp.le.s32.totalorder 1, %s14
    %p296 = scmp.lt.s32.totalorder %s14, 3
    %p297 = pnand %p295, %p296
    %p298 = pneg %p297
    // Predicated region
    $region49: #{_lambda_.36} parent=5 // pred_check
      _
    $region50: #{_lambda_.36} parent=5 // pred_check_branch
      %300 = sbr.rel (%p297) target = $region52
    $region51: #{_lambda_.36} parent=5 // pred_region
      %s301 = ssub.s32 %s14, 1
      %s302 = smul.u32 8, %s19
      %p303 = scmp.lt.s32.totalorder %s302, 15
      %s304 = scalar_select %p303, %s302, 15
      %s305 = smul.addr %s304, 4
      %s306 = scalar_lea.vmem %s0, %s305
      %p307 = pneg %p40
      %p308 = pneg %p37
      %s309 = smul.u32 8, %s19
      %p310 = scmp.lt.s32.totalorder %s309, 15
      %s311 = scalar_select %p310, %s309, 15
      %s312 = smul.addr %s311, 4
      %s313 = scalar_lea.vmem %s1, %s312
      %p314 = pneg %p66
      %p315 = pneg %p63
      %s316 = smul.u32 8, %s19
      %p317 = scmp.lt.s32.totalorder %s316, 15
      %s318 = scalar_select %p317, %s316, 15
      %s319 = smul.addr %s318, 4
      %s320 = scalar_lea.vmem %s2, %s319
      %p321 = pneg %p92
      %p322 = pneg %p89
      %s323 = smul.u32 8, %s19
      %p324 = scmp.lt.s32.totalorder %s323, 15
      %s325 = scalar_select %p324, %s323, 15
      %s326 = smul.addr %s325, 4
      %s327 = scalar_lea.vmem %s3, %s326
      %p328 = pneg %p118
      %p329 = pneg %p115
      %p330 = pneg %p139
      %p331 = pneg %p136
      %p332 = pneg %p160
      %p333 = pneg %p157
      %p334 = pneg %p181
      %p335 = pneg %p178
      %p336 = pneg %p202
      %p337 = pneg %p199
      %p338 = pneg %p228
      %p339 = pneg %p225
      %s340 = smul.u32 8, %s19
      %p341 = scmp.lt.s32.totalorder %s340, 15
      %s342 = scalar_select %p341, %s340, 15
      %s343 = smul.addr %s342, 4
      %s344 = scalar_lea.vmem %s8, %s343
      %s345 = smul.u32 8, %s19
      %p346 = scmp.lt.s32.totalorder %s345, 15
      %s347 = scalar_select %p346, %s345, 15
      %s348 = smul.addr %s347, 4
      %s349 = scalar_lea.vmem %s0, %s348
      %s350 = smul.u32 8, %s19
      %s351 = smul.u32 8, %s19
      %p352 = scmp.lt.s32.totalorder %s351, 15
      %s353 = scalar_select %p352, %s351, 15
      %s354 = smul.addr %s353, 4
      %s355 = scalar_lea.vmem %s1, %s354
      %s356 = smul.u32 8, %s19
      %s357 = smul.u32 8, %s19
      %p358 = scmp.lt.s32.totalorder %s357, 15
      %s359 = scalar_select %p358, %s357, 15
      %s360 = smul.addr %s359, 4
      %s361 = scalar_lea.vmem %s2, %s360
      %s362 = smul.u32 8, %s19
      %s363 = smul.u32 8, %s19
      %p364 = scmp.lt.s32.totalorder %s363, 15
      %s365 = scalar_select %p364, %s363, 15
      %s366 = smul.addr %s365, 4
      %s367 = scalar_lea.vmem %s3, %s366
      %s368 = smul.u32 8, %s19
      %s369 = smul.u32 8, %s19
      %p370 = scmp.lt.s32.totalorder %s369, 15
      %s371 = scalar_select %p370, %s369, 15
      %s372 = smul.addr %s371, 4
      %s373 = scalar_lea.vmem %s8, %s372
      %s374 = smul.u32 8, %s19
      %v376 = vld [vmem:[%s349] sm:$0xf]
      %v377 = vld [vmem:[%s349 + $0x4] sm:$0xf]
      %v378 = vld [vmem:[%s349 + $0x8] sm:$0xf]
      %v379 = vld [vmem:[%s349 + $0xc] sm:$0xf]
      %v380 = vld [vmem:[%s349 + $0x10] sm:$0xf]
      %v381 = vld [vmem:[%s349 + $0x14] sm:$0xf]
      %v382 = vld [vmem:[%s349 + $0x18] sm:$0xf]
      %v383 = vld [vmem:[%s349 + $0x1c] sm:$0xf]
      %v384 = vld [vmem:[%s4] sm:$0xf]
      %v385 = vld [vmem:[%s355] sm:$0xf]
      %v386 = vld [vmem:[%s355 + $0x4] sm:$0xf]
      %v387 = vld [vmem:[%s355 + $0x8] sm:$0xf]
      %v388 = vld [vmem:[%s355 + $0xc] sm:$0xf]
      %v389 = vld [vmem:[%s355 + $0x10] sm:$0xf]
      %v390 = vld [vmem:[%s355 + $0x14] sm:$0xf]
      %v391 = vld [vmem:[%s355 + $0x18] sm:$0xf]
      %v392 = vld [vmem:[%s355 + $0x1c] sm:$0xf]
      %v393 = vld [vmem:[%s5] sm:$0x1]
      %v402 = vunpack.c.l.b16 %v385
      %v403 = vunpack.c.l.b16 %v386
      %v404 = vunpack.c.l.b16 %v387
      %v405 = vunpack.c.l.b16 %v388
      %v406 = vunpack.c.l.b16 %v389
      %v407 = vunpack.c.l.b16 %v390
      %v408 = vunpack.c.l.b16 %v391
      %v409 = vunpack.c.l.b16 %v392
      %v410 = vpack.c.b16 %v403, %v402
      %v411 = vpack.c.b16 %v405, %v404
      %v412 = vpack.c.b16 %v407, %v406
      %v413 = vpack.c.b16 %v409, %v408
      %vm414 = vcmask 15360
      %v416 = vsel %vm414, %v410, 0
      %v419 = vsel %vm414, %v411, 0
      %v422 = vsel %vm414, %v412, 0
      %v425 = vsel %vm414, %v413, 0
      %vm427 = vcmask 1040384
      %v429 = vsel %vm427, %v393, 0
      %431 = vmatprep.subr.bf16.mxu0 0
      %432 = vmatpush1.bf16.msra.mxu0 %v429
      %433 = vmatprep.subr.bf16.mxu0 0
      %434 = vmatpush1.bf16.msra.mxu0 0
      %435 = vmatprep.subr.bf16.mxu0 0
      %436 = vmatpush1.bf16.msra.mxu0 0
      %437 = vmatprep.subr.bf16.mxu0 0
      %438 = vmatpush1.bf16.msra.mxu0 0
      %439 = vmatprep.subr.bf16.mxu0 0
      %440 = vmatpush1.bf16.msra.mxu0 0
      %441 = vmatprep.subr.bf16.mxu0 0
      %442 = vmatpush1.bf16.msra.mxu0 0
      %443 = vmatprep.subr.bf16.mxu0 0
      %444 = vmatpush1.bf16.msra.mxu0 0
      %445 = vmatprep.subr.bf16.mxu0 0
      %446 = vmatpush1.bf16.msra.mxu0 0
      %447 = vmatprep.subr.bf16.mxu0 0
      %448 = vmatpush1.bf16.msra.mxu0 0
      %449 = vmatprep.subr.bf16.mxu0 0
      %450 = vmatpush1.bf16.msra.mxu0 0
      %451 = vmatprep.subr.bf16.mxu0 0
      %452 = vmatpush1.bf16.msra.mxu0 0
      %453 = vmatprep.subr.bf16.mxu0 0
      %454 = vmatpush1.bf16.msra.mxu0 0
      %455 = vmatprep.subr.bf16.mxu0 0
      %456 = vmatpush1.bf16.msra.mxu0 0
      %457 = vmatprep.subr.bf16.mxu0 0
      %458 = vmatpush1.bf16.msra.mxu0 0
      %459 = vmatprep.subr.bf16.mxu0 0
      %460 = vmatpush1.bf16.msra.mxu0 0
      %461 = vmatprep.subr.bf16.mxu0 0
      %462 = vmatpush1.bf16.msra.mxu0 0
      %463 = vmatprep.mubr.bf16.mxu0 0
      %464 = vmatmul.mubr.bf16.gmra.mrb[0].mxu0 %v416
      %v465 = vpop.f32.mrb[0].mxu0
      %v466 = vadd.f32 0.0, %v465
      %v467 = vpop.f32.mrb[0].mxu0
      %v468 = vpop.f32.mrb[0].mxu0
      %v469 = vadd.f32 0.0, %v468
      %v470 = vpop.f32.mrb[0].mxu0
      %471 = vmatprep.mubr.bf16.mxu0 0
      %472 = vmatmul.mubr.bf16.gmra.mrb[0].mxu0 %v419
      %v473 = vpop.f32.mrb[0].mxu0
      %v474 = vadd.f32 0.0, %v473
      %v475 = vpop.f32.mrb[0].mxu0
      %v476 = vpop.f32.mrb[0].mxu0
      %v477 = vadd.f32 0.0, %v476
      %v478 = vpop.f32.mrb[0].mxu0
      %479 = vmatprep.mubr.bf16.mxu0 0
      %480 = vmatmul.mubr.bf16.gmra.mrb[0].mxu0 %v422
      %v481 = vpop.f32.mrb[0].mxu0
      %v482 = vadd.f32 0.0, %v481
      %v483 = vpop.f32.mrb[0].mxu0
      %v484 = vpop.f32.mrb[0].mxu0
      %v485 = vadd.f32 0.0, %v484
      %v486 = vpop.f32.mrb[0].mxu0
      %487 = vmatprep.mubr.bf16.mxu0 0
      %488 = vmatmul.mubr.bf16.gmra.mrb[0].mxu0 %v425
      %v489 = vpop.f32.mrb[0].mxu0
      %v490 = vadd.f32 0.0, %v489
      %v491 = vpop.f32.mrb[0].mxu0
      %v492 = vpop.f32.mrb[0].mxu0
      %v493 = vadd.f32 0.0, %v492
      %v494 = vpop.f32.mrb[0].mxu0
      %495 = vdwg.mxu0
      %v504 = vunpack.c.l.b16 %v376
      %v505 = vunpack.c.l.b16 %v377
      %v506 = vunpack.c.l.b16 %v378
      %v507 = vunpack.c.l.b16 %v379
      %v508 = vunpack.c.l.b16 %v380
      %v509 = vunpack.c.l.b16 %v381
      %v510 = vunpack.c.l.b16 %v382
      %v511 = vunpack.c.l.b16 %v383
      %v512 = vpack.c.b16 %v505, %v504
      %v513 = vpack.c.b16 %v507, %v506
      %v514 = vpack.c.b16 %v509, %v508
      %v515 = vpack.c.b16 %v511, %v510
      %vm516 = vcmask 64512
      %v518 = vsel %vm516, %v512, 0
      %v521 = vsel %vm516, %v513, 0
      %v524 = vsel %vm516, %v514, 0
      %v527 = vsel %vm516, %v515, 0
      %vm529 = vcmask 1043456
      %v531 = vsel %vm529, %v384, 0
      %533 = vmatprep.subr.bf16.mxu0 0
      %534 = vmatpush1.bf16.msra.mxu0 %v531
      %535 = vmatprep.subr.bf16.mxu0 0
      %536 = vmatpush1.bf16.msra.mxu0 0
      %537 = vmatprep.subr.bf16.mxu0 0
      %538 = vmatpush1.bf16.msra.mxu0 0
      %539 = vmatprep.subr.bf16.mxu0 0
      %540 = vmatpush1.bf16.msra.mxu0 0
      %541 = vmatprep.subr.bf16.mxu0 0
      %542 = vmatpush1.bf16.msra.mxu0 0
      %543 = vmatprep.subr.bf16.mxu0 0
      %544 = vmatpush1.bf16.msra.mxu0 0
      %545 = vmatprep.subr.bf16.mxu0 0
      %546 = vmatpush1.bf16.msra.mxu0 0
      %547 = vmatprep.subr.bf16.mxu0 0
      %548 = vmatpush1.bf16.msra.mxu0 0
      %549 = vmatprep.subr.bf16.mxu0 0
      %550 = vmatpush1.bf16.msra.mxu0 0
      %551 = vmatprep.subr.bf16.mxu0 0
      %552 = vmatpush1.bf16.msra.mxu0 0
      %553 = vmatprep.subr.bf16.mxu0 0
      %554 = vmatpush1.bf16.msra.mxu0 0
      %555 = vmatprep.subr.bf16.mxu0 0
      %556 = vmatpush1.bf16.msra.mxu0 0
      %557 = vmatprep.subr.bf16.mxu0 0
      %558 = vmatpush1.bf16.msra.mxu0 0
      %559 = vmatprep.subr.bf16.mxu0 0
      %560 = vmatpush1.bf16.msra.mxu0 0
      %561 = vmatprep.subr.bf16.mxu0 0
      %562 = vmatpush1.bf16.msra.mxu0 0
      %563 = vmatprep.subr.bf16.mxu0 0
      %564 = vmatpush1.bf16.msra.mxu0 0
      %565 = vmatprep.mubr.bf16.mxu0 0
      %566 = vmatmul.mubr.bf16.gmra.mrb[0].mxu0 %v518
      %v567 = vpop.f32.mrb[0].mxu0
      %v568 = vadd.f32 %v466, %v567
      %v569 = vpop.f32.mrb[0].mxu0
      %v570 = vpop.f32.mrb[0].mxu0
      %v571 = vadd.f32 %v469, %v570
      %v572 = vpop.f32.mrb[0].mxu0
      %573 = vmatprep.mubr.bf16.mxu0 0
      %574 = vmatmul.mubr.bf16.gmra.mrb[0].mxu0 %v521
      %v575 = vpop.f32.mrb[0].mxu0
      %v576 = vadd.f32 %v474, %v575
      %v577 = vpop.f32.mrb[0].mxu0
      %v578 = vpop.f32.mrb[0].mxu0
      %v579 = vadd.f32 %v477, %v578
      %v580 = vpop.f32.mrb[0].mxu0
      %581 = vmatprep.mubr.bf16.mxu0 0
      %582 = vmatmul.mubr.bf16.gmra.mrb[0].mxu0 %v524
      %v583 = vpop.f32.mrb[0].mxu0
      %v584 = vadd.f32 %v482, %v583
      %v585 = vpop.f32.mrb[0].mxu0
      %v586 = vpop.f32.mrb[0].mxu0
      %v587 = vadd.f32 %v485, %v586
      %v588 = vpop.f32.mrb[0].mxu0
      %589 = vmatprep.mubr.bf16.mxu0 0
      %590 = vmatmul.mubr.bf16.gmra.mrb[0].mxu0 %v527
      %v591 = vpop.f32.mrb[0].mxu0
      %v592 = vadd.f32 %v490, %v591
      %v593 = vpop.f32.mrb[0].mxu0
      %v594 = vpop.f32.mrb[0].mxu0
      %v595 = vadd.f32 %v493, %v594
      %v596 = vpop.f32.mrb[0].mxu0
      %597 = vdwg.mxu0
      %v598 = vld [vmem:[%s361] sm:$0xf]
      %v599 = vld [vmem:[%s361 + $0x4] sm:$0xf]
      %v600 = vld [vmem:[%s361 + $0x8] sm:$0xf]
      %v601 = vld [vmem:[%s361 + $0xc] sm:$0xf]
      %v602 = vld [vmem:[%s361 + $0x10] sm:$0xf]
      %v603 = vld [vmem:[%s361 + $0x14] sm:$0xf]
      %v604 = vld [vmem:[%s361 + $0x18] sm:$0xf]
      %v605 = vld [vmem:[%s361 + $0x1c] sm:$0xf]
      %v606 = vld [vmem:[%s6] sm:$0x3]
      %v615 = vunpack.c.l.b16 %v598
      %v616 = vunpack.c.l.b16 %v599
      %v617 = vunpack.c.l.b16 %v600
      %v618 = vunpack.c.l.b16 %v601
      %v619 = vunpack.c.l.b16 %v602
      %v620 = vunpack.c.l.b16 %v603
      %v621 = vunpack.c.l.b16 %v604
      %v622 = vunpack.c.l.b16 %v605
      %v623 = vpack.c.b16 %v616, %v615
      %v624 = vpack.c.b16 %v618, %v617
      %v625 = vpack.c.b16 %v620, %v619
      %v626 = vpack.c.b16 %v622, %v621
      %vm627 = vcmask 31744
      %v629 = vsel %vm627, %v623, 0
      %v632 = vsel %vm627, %v624, 0
      %v635 = vsel %vm627, %v625, 0
      %v638 = vsel %vm627, %v626, 0
      %vm640 = vcmask 1041408
      %v642 = vsel %vm640, %v606, 0
      %644 = vmatprep.subr.bf16.mxu0 0
      %645 = vmatpush1.bf16.msra.mxu0 %v642
      %646 = vmatprep.subr.bf16.mxu0 0
      %647 = vmatpush1.bf16.msra.mxu0 0
      %648 = vmatprep.subr.bf16.mxu0 0
      %649 = vmatpush1.bf16.msra.mxu0 0
      %650 = vmatprep.subr.bf16.mxu0 0
      %651 = vmatpush1.bf16.msra.mxu0 0
      %652 = vmatprep.subr.bf16.mxu0 0
      %653 = vmatpush1.bf16.msra.mxu0 0
      %654 = vmatprep.subr.bf16.mxu0 0
      %655 = vmatpush1.bf16.msra.mxu0 0
      %656 = vmatprep.subr.bf16.mxu0 0
      %657 = vmatpush1.bf16.msra.mxu0 0
      %658 = vmatprep.subr.bf16.mxu0 0
      %659 = vmatpush1.bf16.msra.mxu0 0
      %660 = vmatprep.subr.bf16.mxu0 0
      %661 = vmatpush1.bf16.msra.mxu0 0
      %662 = vmatprep.subr.bf16.mxu0 0
      %663 = vmatpush1.bf16.msra.mxu0 0
      %664 = vmatprep.subr.bf16.mxu0 0
      %665 = vmatpush1.bf16.msra.mxu0 0
      %666 = vmatprep.subr.bf16.mxu0 0
      %667 = vmatpush1.bf16.msra.mxu0 0
      %668 = vmatprep.subr.bf16.mxu0 0
      %669 = vmatpush1.bf16.msra.mxu0 0
      %670 = vmatprep.subr.bf16.mxu0 0
      %671 = vmatpush1.bf16.msra.mxu0 0
      %672 = vmatprep.subr.bf16.mxu0 0
      %673 = vmatpush1.bf16.msra.mxu0 0
      %674 = vmatprep.subr.bf16.mxu0 0
      %675 = vmatpush1.bf16.msra.mxu0 0
      %676 = vmatprep.mubr.bf16.mxu0 0
      %677 = vmatmul.mubr.bf16.gmra.mrb[0].mxu0 %v629
      %v678 = vpop.f32.mrb[0].mxu0
      %v679 = vadd.f32 0.0, %v678
      %v680 = vpop.f32.mrb[0].mxu0
      %v681 = vpop.f32.mrb[0].mxu0
      %v682 = vadd.f32 0.0, %v681
      %v683 = vpop.f32.mrb[0].mxu0
      %684 = vmatprep.mubr.bf16.mxu0 0
      %685 = vmatmul.mubr.bf16.gmra.mrb[0].mxu0 %v632
      %v686 = vpop.f32.mrb[0].mxu0
      %v687 = vadd.f32 0.0, %v686
      %v688 = vpop.f32.mrb[0].mxu0
      %v689 = vpop.f32.mrb[0].mxu0
      %v690 = vadd.f32 0.0, %v689
      %v691 = vpop.f32.mrb[0].mxu0
      %692 = vmatprep.mubr.bf16.mxu0 0
      %693 = vmatmul.mubr.bf16.gmra.mrb[0].mxu0 %v635
      %v694 = vpop.f32.mrb[0].mxu0
      %v695 = vadd.f32 0.0, %v694
      %v696 = vpop.f32.mrb[0].mxu0
      %v697 = vpop.f32.mrb[0].mxu0
      %v698 = vadd.f32 0.0, %v697
      %v699 = vpop.f32.mrb[0].mxu0
      %700 = vmatprep.mubr.bf16.mxu0 0
      %701 = vmatmul.mubr.bf16.gmra.mrb[0].mxu0 %v638
      %v702 = vpop.f32.mrb[0].mxu0
      %v703 = vadd.f32 0.0, %v702
      %v704 = vpop.f32.mrb[0].mxu0
      %v705 = vpop.f32.mrb[0].mxu0
      %v706 = vadd.f32 0.0, %v705
      %v707 = vpop.f32.mrb[0].mxu0
      %708 = vdwg.mxu0
      %v709 = vadd.f32 %v568, %v679
      %v710 = vadd.f32 %v571, %v682
      %v711 = vadd.f32 %v576, %v687
      %v712 = vadd.f32 %v579, %v690
      %v713 = vadd.f32 %v584, %v695
      %v714 = vadd.f32 %v587, %v698
      %v715 = vadd.f32 %v592, %v703
      %v716 = vadd.f32 %v595, %v706
      %v717 = vld [vmem:[%s367] sm:$0xf]
      %v718 = vld [vmem:[%s367 + $0x4] sm:$0xf]
      %v719 = vld [vmem:[%s367 + $0x8] sm:$0xf]
      %v720 = vld [vmem:[%s367 + $0xc] sm:$0xf]
      %v721 = vld [vmem:[%s367 + $0x10] sm:$0xf]
      %v722 = vld [vmem:[%s367 + $0x14] sm:$0xf]
      %v723 = vld [vmem:[%s367 + $0x18] sm:$0xf]
      %v724 = vld [vmem:[%s367 + $0x1c] sm:$0xf]
      %v725 = vld [vmem:[%s7] sm:$0x3]
      %v734 = vunpack.c.l.b16 %v717
      %v735 = vunpack.c.l.b16 %v718
      %v736 = vunpack.c.l.b16 %v719
      %v737 = vunpack.c.l.b16 %v720
      %v738 = vunpack.c.l.b16 %v721
      %v739 = vunpack.c.l.b16 %v722
      %v740 = vunpack.c.l.b16 %v723
      %v741 = vunpack.c.l.b16 %v724
      %v742 = vpack.c.b16 %v735, %v734
      %v743 = vpack.c.b16 %v737, %v736
      %v744 = vpack.c.b16 %v739, %v738
      %v745 = vpack.c.b16 %v741, %v740
      %v747 = vsel %vm627, %v742, 0
      %v750 = vsel %vm627, %v743, 0
      %v753 = vsel %vm627, %v744, 0
      %v756 = vsel %vm627, %v745, 0
      %v759 = vsel %vm640, %v725, 0
      %761 = vmatprep.subr.bf16.mxu0 0
      %762 = vmatpush1.bf16.msra.mxu0 %v759
      %763 = vmatprep.subr.bf16.mxu0 0
      %764 = vmatpush1.bf16.msra.mxu0 0
      %765 = vmatprep.subr.bf16.mxu0 0
      %766 = vmatpush1.bf16.msra.mxu0 0
      %767 = vmatprep.subr.bf16.mxu0 0
      %768 = vmatpush1.bf16.msra.mxu0 0
      %769 = vmatprep.subr.bf16.mxu0 0
      %770 = vmatpush1.bf16.msra.mxu0 0
      %771 = vmatprep.subr.bf16.mxu0 0
      %772 = vmatpush1.bf16.msra.mxu0 0
      %773 = vmatprep.subr.bf16.mxu0 0
      %774 = vmatpush1.bf16.msra.mxu0 0
      %775 = vmatprep.subr.bf16.mxu0 0
      %776 = vmatpush1.bf16.msra.mxu0 0
      %777 = vmatprep.subr.bf16.mxu0 0
      %778 = vmatpush1.bf16.msra.mxu0 0
      %779 = vmatprep.subr.bf16.mxu0 0
      %780 = vmatpush1.bf16.msra.mxu0 0
      %781 = vmatprep.subr.bf16.mxu0 0
      %782 = vmatpush1.bf16.msra.mxu0 0
      %783 = vmatprep.subr.bf16.mxu0 0
      %784 = vmatpush1.bf16.msra.mxu0 0
      %785 = vmatprep.subr.bf16.mxu0 0
      %786 = vmatpush1.bf16.msra.mxu0 0
      %787 = vmatprep.subr.bf16.mxu0 0
      %788 = vmatpush1.bf16.msra.mxu0 0
      %789 = vmatprep.subr.bf16.mxu0 0
      %790 = vmatpush1.bf16.msra.mxu0 0
      %791 = vmatprep.subr.bf16.mxu0 0
      %792 = vmatpush1.bf16.msra.mxu0 0
      %793 = vmatprep.mubr.bf16.mxu0 0
      %794 = vmatmul.mubr.bf16.gmra.mrb[0].mxu0 %v747
      %v795 = vpop.f32.mrb[0].mxu0
      %v796 = vadd.f32 0.0, %v795
      %v797 = vpop.f32.mrb[0].mxu0
      %v798 = vpop.f32.mrb[0].mxu0
      %v799 = vadd.f32 0.0, %v798
      %v800 = vpop.f32.mrb[0].mxu0
      %801 = vmatprep.mubr.bf16.mxu0 0
      %802 = vmatmul.mubr.bf16.gmra.mrb[0].mxu0 %v750
      %v803 = vpop.f32.mrb[0].mxu0
      %v804 = vadd.f32 0.0, %v803
      %v805 = vpop.f32.mrb[0].mxu0
      %v806 = vpop.f32.mrb[0].mxu0
      %v807 = vadd.f32 0.0, %v806
      %v808 = vpop.f32.mrb[0].mxu0
      %809 = vmatprep.mubr.bf16.mxu0 0
      %810 = vmatmul.mubr.bf16.gmra.mrb[0].mxu0 %v753
      %v811 = vpop.f32.mrb[0].mxu0
      %v812 = vadd.f32 0.0, %v811
      %v813 = vpop.f32.mrb[0].mxu0
      %v814 = vpop.f32.mrb[0].mxu0
      %v815 = vadd.f32 0.0, %v814
      %v816 = vpop.f32.mrb[0].mxu0
      %817 = vmatprep.mubr.bf16.mxu0 0
      %818 = vmatmul.mubr.bf16.gmra.mrb[0].mxu0 %v756
      %v819 = vpop.f32.mrb[0].mxu0
      %v820 = vadd.f32 0.0, %v819
      %v821 = vpop.f32.mrb[0].mxu0
      %v822 = vpop.f32.mrb[0].mxu0
      %v823 = vadd.f32 0.0, %v822
      %v824 = vpop.f32.mrb[0].mxu0
      %825 = vdwg.mxu0
      %v826 = vadd.f32 %v709, %v796
      %v827 = vadd.f32 %v710, %v799
      %v828 = vadd.f32 %v711, %v804
      %v829 = vadd.f32 %v712, %v807
      %v830 = vadd.f32 %v713, %v812
      %v831 = vadd.f32 %v714, %v815
      %v832 = vadd.f32 %v715, %v820
      %v833 = vadd.f32 %v716, %v823
      %vm834 = vcmp.ge.f32.partialorder %v826, 0.0
      %vm835 = vcmp.ge.f32.partialorder %v827, 0.0
      %vm836 = vcmp.ge.f32.partialorder %v828, 0.0
      %vm837 = vcmp.ge.f32.partialorder %v829, 0.0
      %vm838 = vcmp.ge.f32.partialorder %v830, 0.0
      %vm839 = vcmp.ge.f32.partialorder %v831, 0.0
      %vm840 = vcmp.ge.f32.partialorder %v832, 0.0
      %vm841 = vcmp.ge.f32.partialorder %v833, 0.0
      %v842 = vmul.f32 %v826, 0.1
      %v843 = vmul.f32 %v827, 0.1
      %v844 = vmul.f32 %v828, 0.1
      %v845 = vmul.f32 %v829, 0.1
      %v846 = vmul.f32 %v830, 0.1
      %v847 = vmul.f32 %v831, 0.1
      %v848 = vmul.f32 %v832, 0.1
      %v849 = vmul.f32 %v833, 0.1
      %v850 = vsel %vm834, %v826, %v842
      %v851 = vsel %vm835, %v827, %v843
      %v852 = vsel %vm836, %v828, %v844
      %v853 = vsel %vm837, %v829, %v845
      %v854 = vsel %vm838, %v830, %v846
      %v855 = vsel %vm839, %v831, %v847
      %v856 = vsel %vm840, %v832, %v848
      %v857 = vsel %vm841, %v833, %v849
      %v858 = vpack.c.bf16 %v851, %v850
      %v859 = vpack.c.bf16 %v853, %v852
      %v860 = vpack.c.bf16 %v855, %v854
      %v861 = vpack.c.bf16 %v857, %v856
      %v866 = vunpack.c.l.b16 %v858
      %v867 = vunpack.c.h.b16 %v858
      %v868 = vunpack.c.l.b16 %v859
      %v869 = vunpack.c.h.b16 %v859
      %v870 = vunpack.c.l.b16 %v860
      %v871 = vunpack.c.h.b16 %v860
      %v872 = vunpack.c.l.b16 %v861
      %v873 = vunpack.c.h.b16 %v861
      %v874 = vpack.c.b16 %v866, %v866
      %v875 = vpack.c.b16 %v867, %v867
      %v876 = vpack.c.b16 %v868, %v868
      %v877 = vpack.c.b16 %v869, %v869
      %v878 = vpack.c.b16 %v870, %v870
      %v879 = vpack.c.b16 %v871, %v871
      %v880 = vpack.c.b16 %v872, %v872
      %v881 = vpack.c.b16 %v873, %v873
      %vm890 = vcmask 60416
      %891 = vst.msk [vmem:[%s373] sm:$0xf] %vm890, %v874
      %892 = vst.msk [vmem:[%s373 + $0x4] sm:$0xf] %vm890, %v875
      %893 = vst.msk [vmem:[%s373 + $0x8] sm:$0xf] %vm890, %v876
      %894 = vst.msk [vmem:[%s373 + $0xc] sm:$0xf] %vm890, %v877
      %895 = vst.msk [vmem:[%s373 + $0x10] sm:$0xf] %vm890, %v878
      %896 = vst.msk [vmem:[%s373 + $0x14] sm:$0xf] %vm890, %v879
      %897 = vst.msk [vmem:[%s373 + $0x18] sm:$0xf] %vm890, %v880
      %898 = vst.msk [vmem:[%s373 + $0x1c] sm:$0xf] %vm890, %v881
      %s899 = smul.u32 8, %s19
      %p900 = scmp.lt.s32.totalorder %s899, 15
      %s901 = scalar_select %p900, %s899, 15
      %s902 = smul.addr %s901, 4
      %s903 = scalar_lea.vmem %s8, %s902
      // Predicated region
      $region53: #{_lambda_.36} parent=51 // pred_check
        %p904 = pneg %p225
      $region54: #{_lambda_.36} parent=51 // pred_check_branch
        %906 = sbr.rel (%p904) target = $region56
      $region55: #{_lambda_.36} parent=51 // pred_region
        %s907 = smul.u32 8, %s19
      $region56: #{_lambda_.36} parent=51 // pred_fallthru
        _
    $region52: #{_lambda_.36} parent=5 // pred_fallthru
      _
    %p908 = scmp.le.s32.totalorder 2, %s14
    // Predicated region
    $region57: #{_lambda_.36} parent=5 // pred_check
      %p909 = pneg %p908
    $region58: #{_lambda_.36} parent=5 // pred_check_branch
      %911 = sbr.rel (%p909) target = $region60
    $region59: #{_lambda_.36} parent=5 // pred_region
      %s912 = ssub.s32 %s14, 2
      // Predicated region
      $region61: #{_lambda_.36} parent=59 // pred_check
        %p913 = pneg %p231
      $region62: #{_lambda_.36} parent=59 // pred_check_branch
        %915 = sbr.rel (%p913) target = $region64
      $region63: #{_lambda_.36} parent=59 // pred_region
        %s916 = smul.u32 8, %s20
        %p917 = scmp.lt.s32.totalorder %s916, 15
        %s918 = scalar_select %p917, %s916, 15
        %s919 = smul.addr %s918, 4
        %s920 = scalar_lea.vmem %s8, %s919
      $region64: #{_lambda_.36} parent=59 // pred_fallthru
        _
    $region60: #{_lambda_.36} parent=5 // pred_fallthru
      _
  $region6: #{_lambda_.36} parent=0 // loop_footer
    %s18 = sadd.s32 1, %s14
  $region7: #{_lambda_.36} parent=0 // loop_footer_branch
    %13 = sbr.rel target = $region3
  $region8: #{_lambda_.36} parent=0 // loop_exit
    _

// kernel: _lambda_.37
$region0: #{_lambda_.37}
  #allocation0 [shape = 'u32[]', space=smem, size = 0x4, offset = 0x4, fixed_abs, tag = 'smem constant byte address 0x4 - core index']
  #allocation1 [shape = 'u32[144,128]{1,0:T(1,128)}', space=vmem, size = 0x12000, scoped, tag = 'internal scratch']
  %s0 = inlined_call_operand.vmem [shape: bf16[2,12,12,8], index: 0, kind: input, shape index: {}]
  %s1 = inlined_call_operand.vmem [shape: bf16[9,8,8], index: 1, kind: input, shape index: {}]
  %s2 = inlined_call_operand.vmem [shape: f32[2,8,8,8], index: 2, kind: input, shape index: {}]
  %s3 = inlined_call_operand.vmem [shape: f32[2,8,8,8], index: 3, kind: output, shape index: {}]
  %s4 = sld [smem:[#allocation0]]
  $region45: #{_lambda_.37} parent=0
    _
  %s6 = ssub.s32 1, %s4
  %s7 = scalar_select 0, %s6, %s4
  loop: start=0, step=1, limit=4
  $region2: #{_lambda_.37} parent=0 // loop_pre_header
    _
  $region3: #{_lambda_.37} parent=0 // loop_header
    %s9 = sphi 0, %s13
    %p10 = scmp.ge.s32.totalorder %s9, 4
    %s16 = sphi 0, %s28
    %s17 = sphi 0, %s24
    %s18 = sphi 0, %s16
    %s19 = sphi 0, %s17
    %s20 = sphi 0, %s18
    %s21 = sphi 0, %s19
    %s31 = sphi 0, %s33
    %s34 = sphi 0, %s31
    %s35 = sphi 0, %s34
    %s51 = sphi 0, %s35
    %s55 = sphi 0, %s55
    %s57 = sphi 0, %s55
    %s58 = sphi 0, %s57
    %s72 = sphi 0, %s58
    %s80 = sphi 0, %s82
    %s83 = sphi 0, %s80
    %s84 = sphi 0, %s83
    %s100 = sphi 0, %s84
    %s108 = sphi 0, %s110
    %s111 = sphi 0, %s108
    %s112 = sphi 0, %s111
    %s128 = sphi 0, %s112
  $region4: #{_lambda_.37} parent=0 // loop_header_branch
    %12 = sbr.rel (%p10) target = $region8
  $region5: #{_lambda_.37} parent=0 // loop_body
    %s14 = ssub.s32 %s9, 1
    %s15 = ssub.s32 %s9, 2
    %s22 = sadd.s32 1, %s17
    %p23 = scmp.ge.s32.totalorder %s22, 1
    %s24 = scalar_select %p23, 0, %s22
    %s25 = sadd.s32 1, %s16
    %s26 = scalar_select %p23, %s25, %s16
    %p27 = scmp.ge.s32.totalorder %s26, 2
    %s28 = scalar_select %p27, 0, %s26
    %s29 = ssub.s32 %s16, %s28
    %p30 = scmp.eq.s32.totalorder %s29, 0
    %s32 = sadd.s32 %s31, 1
    %s33 = scalar_select %p30, %s31, %s32
    %p36 = pneg %p30
    %p37 = scmp.eq.s32.totalorder %s9, 1
    %p38 = por %p36, %p37
    %p39 = scmp.ne.s32.totalorder %s31, %s34
    %p40 = scmp.eq.s32.totalorder %s9, 0
    %p41 = por %p39, %p40
    %p42 = scmp.ne.s32.totalorder %s31, %s34
    %p43 = scmp.eq.s32.totalorder %s14, 1
    %p44 = por %p42, %p43
    %p45 = scmp.ne.s32.totalorder %s34, %s35
    %p46 = scmp.eq.s32.totalorder %s14, 0
    %p47 = por %p45, %p46
    %p48 = scmp.ne.s32.totalorder %s34, %s35
    %p49 = scmp.eq.s32.totalorder %s15, 1
    %p50 = por %p48, %p49
    %p52 = scmp.ne.s32.totalorder %s35, %s51
    %p53 = scmp.eq.s32.totalorder %s15, 0
    %p54 = por %p52, %p53
    %s56 = sadd.s32 %s55, 1
    %p59 = scmp.eq.s32.totalorder %s9, 1
    %p60 = scmp.ne.s32.totalorder %s55, %s57
    %p61 = scmp.eq.s32.totalorder %s9, 0
    %p62 = por %p60, %p61
    %p63 = scmp.ne.s32.totalorder %s55, %s57
    %p64 = scmp.eq.s32.totalorder %s14, 1
    %p65 = por %p63, %p64
    %p66 = scmp.ne.s32.totalorder %s57, %s58
    %p67 = scmp.eq.s32.totalorder %s14, 0
    %p68 = por %p66, %p67
    %p69 = scmp.ne.s32.totalorder %s57, %s58
    %p70 = scmp.eq.s32.totalorder %s15, 1
    %p71 = por %p69, %p70
    %p73 = scmp.ne.s32.totalorder %s58, %s72
    %p74 = scmp.eq.s32.totalorder %s15, 0
    %p75 = por %p73, %p74
    %s76 = ssub.s32 %s16, %s28
    %s77 = ssub.s32 %s17, %s24
    %s78 = sor.u32 %s76, %s77
    %p79 = scmp.eq.s32.totalorder %s78, 0
    %s81 = sadd.s32 %s80, 1
    %s82 = scalar_select %p79, %s80, %s81
    %p85 = pneg %p79
    %p86 = scmp.eq.s32.totalorder %s9, 1
    %p87 = por %p85, %p86
    %p88 = scmp.ne.s32.totalorder %s80, %s83
    %p89 = scmp.eq.s32.totalorder %s9, 0
    %p90 = por %p88, %p89
    %p91 = scmp.ne.s32.totalorder %s80, %s83
    %p92 = scmp.eq.s32.totalorder %s14, 1
    %p93 = por %p91, %p92
    %p94 = scmp.ne.s32.totalorder %s83, %s84
    %p95 = scmp.eq.s32.totalorder %s14, 0
    %p96 = por %p94, %p95
    %p97 = scmp.ne.s32.totalorder %s83, %s84
    %p98 = scmp.eq.s32.totalorder %s15, 1
    %p99 = por %p97, %p98
    %p101 = scmp.ne.s32.totalorder %s84, %s100
    %p102 = scmp.eq.s32.totalorder %s15, 0
    %p103 = por %p101, %p102
    %s104 = ssub.s32 %s16, %s28
    %s105 = ssub.s32 %s17, %s24
    %s106 = sor.u32 %s104, %s105
    %p107 = scmp.eq.s32.totalorder %s106, 0
    %s109 = sadd.s32 %s108, 1
    %s110 = scalar_select %p107, %s108, %s109
    %p113 = pneg %p107
    %p114 = scmp.eq.s32.totalorder %s9, 1
    %p115 = por %p113, %p114
    %p116 = scmp.ne.s32.totalorder %s108, %s111
    %p117 = scmp.eq.s32.totalorder %s9, 0
    %p118 = por %p116, %p117
    %p119 = scmp.ne.s32.totalorder %s108, %s111
    %p120 = scmp.eq.s32.totalorder %s14, 1
    %p121 = por %p119, %p120
    %p122 = scmp.ne.s32.totalorder %s111, %s112
    %p123 = scmp.eq.s32.totalorder %s14, 0
    %p124 = por %p122, %p123
    %p125 = scmp.ne.s32.totalorder %s111, %s112
    %p126 = scmp.eq.s32.totalorder %s15, 1
    %p127 = por %p125, %p126
    %p129 = scmp.ne.s32.totalorder %s112, %s128
    %p130 = scmp.eq.s32.totalorder %s15, 0
    %p131 = por %p129, %p130
    %p132 = scmp.le.s32.totalorder 1, %s9
    %p133 = scmp.lt.s32.totalorder %s9, 3
    %p134 = pnand %p132, %p133
    %p135 = pneg %p134
    // Predicated region
    $region9: #{_lambda_.37} parent=5 // pred_check
      _
    $region10: #{_lambda_.37} parent=5 // pred_check_branch
      %137 = sbr.rel (%p134) target = $region12
    $region11: #{_lambda_.37} parent=5 // pred_region
      %s138 = ssub.s32 %s9, 1
      // Predicated region
      $region13: #{_lambda_.37} parent=11 // pred_check
        %p139 = pneg %p68
      $region14: #{_lambda_.37} parent=11 // pred_check_branch
        %141 = sbr.rel (%p139) target = $region16
      $region15: #{_lambda_.37} parent=11 // pred_region
        _
      $region16: #{_lambda_.37} parent=11 // pred_fallthru
        _
    $region12: #{_lambda_.37} parent=5 // pred_fallthru
      _
    %p142 = scmp.lt.s32.totalorder %s9, 2
    // Predicated region
    $region17: #{_lambda_.37} parent=5 // pred_check
      %p143 = pneg %p142
    $region18: #{_lambda_.37} parent=5 // pred_check_branch
      %145 = sbr.rel (%p143) target = $region20
    $region19: #{_lambda_.37} parent=5 // pred_region
      // Predicated region
      $region21: #{_lambda_.37} parent=19 // pred_check
        %p146 = pneg %p41
      $region22: #{_lambda_.37} parent=19 // pred_check_branch
        %148 = sbr.rel (%p146) target = $region24
      $region23: #{_lambda_.37} parent=19 // pred_region
        %p149 = scmp.lt.s32.totalorder %s16, 1
        %s150 = scalar_select %p149, %s16, 1
        %s151 = smul.addr %s150, 24
        %s152 = smul.addr %s151, 4
        %s153 = scalar_lea.vmem %s0, %s152
      $region24: #{_lambda_.37} parent=19 // pred_fallthru
        _
      // Predicated region
      $region25: #{_lambda_.37} parent=19 // pred_check
        %p154 = pneg %p90
      $region26: #{_lambda_.37} parent=19 // pred_check_branch
        %156 = sbr.rel (%p154) target = $region28
      $region27: #{_lambda_.37} parent=19 // pred_region
        %s157 = smul.u32 8, %s17
        %p158 = scmp.lt.s32.totalorder %s16, 1
        %s159 = scalar_select %p158, %s16, 1
        %p160 = scmp.lt.s32.totalorder %s157, 7
        %s161 = scalar_select %p160, %s157, 7
        %s162 = smul.addr %s159, 8
        %s163 = sadd.s32 %s161, %s162
        %s164 = smul.addr %s163, 8
        %s165 = scalar_lea.vmem %s2, %s164
        %s166 = smul.u32 8, %s17
      $region28: #{_lambda_.37} parent=19 // pred_fallthru
        _
    $region20: #{_lambda_.37} parent=5 // pred_fallthru
      _
    %p167 = scmp.le.s32.totalorder 1, %s9
    %p168 = scmp.lt.s32.totalorder %s9, 3
    %p169 = pnand %p167, %p168
    %p170 = pneg %p169
    // Predicated region
    $region29: #{_lambda_.37} parent=5 // pred_check
      _
    $region30: #{_lambda_.37} parent=5 // pred_check_branch
      %172 = sbr.rel (%p169) target = $region32
    $region31: #{_lambda_.37} parent=5 // pred_region
      %s173 = ssub.s32 %s9, 1
      %p174 = scmp.lt.s32.totalorder %s18, 1
      %s175 = scalar_select %p174, %s18, 1
      %s176 = smul.addr %s175, 24
      %s177 = smul.addr %s176, 4
      %s178 = scalar_lea.vmem %s0, %s177
      %p179 = pneg %p47
      %p180 = pneg %p44
      %p181 = pneg %p68
      %p182 = pneg %p65
      %s183 = smul.u32 8, %s19
      %p184 = scmp.lt.s32.totalorder %s18, 1
      %s185 = scalar_select %p184, %s18, 1
      %p186 = scmp.lt.s32.totalorder %s183, 7
      %s187 = scalar_select %p186, %s183, 7
      %s188 = smul.addr %s185, 8
      %s189 = sadd.s32 %s187, %s188
      %s190 = smul.addr %s189, 8
      %s191 = scalar_lea.vmem %s2, %s190
      %p192 = pneg %p96
      %p193 = pneg %p93
      %p194 = pneg %p124
      %p195 = pneg %p121
      %s196 = smul.u32 8, %s19
      %p197 = scmp.lt.s32.totalorder %s18, 1
      %s198 = scalar_select %p197, %s18, 1
      %p199 = scmp.lt.s32.totalorder %s196, 7
      %s200 = scalar_select %p199, %s196, 7
      %s201 = smul.addr %s198, 8
      %s202 = sadd.s32 %s200, %s201
      %s203 = smul.addr %s202, 8
      %s204 = scalar_lea.vmem %s3, %s203
      %p205 = scmp.lt.s32.totalorder %s18, 1
      %s206 = scalar_select %p205, %s18, 1
      %s207 = smul.addr %s206, 24
      %s208 = smul.addr %s207, 4
      %s209 = scalar_lea.vmem %s0, %s208
      %s210 = smul.u32 8, %s19
      %p211 = scmp.lt.s32.totalorder %s18, 1
      %s212 = scalar_select %p211, %s18, 1
      %p213 = scmp.lt.s32.totalorder %s210, 7
      %s214 = scalar_select %p213, %s210, 7
      %s215 = smul.addr %s212, 8
      %s216 = sadd.s32 %s214, %s215
      %s217 = smul.addr %s216, 8
      %s218 = scalar_lea.vmem %s2, %s217
      %s219 = smul.u32 8, %s19
      %s220 = smul.u32 8, %s19
      %p221 = scmp.lt.s32.totalorder %s18, 1
      %s222 = scalar_select %p221, %s18, 1
      %p223 = scmp.lt.s32.totalorder %s220, 7
      %s224 = scalar_select %p223, %s220, 7
      %s225 = smul.addr %s222, 8
      %s226 = sadd.s32 %s224, %s225
      %s227 = smul.addr %s226, 8
      %s228 = scalar_lea.vmem %s3, %s227
      %s229 = smul.u32 8, %s19
      %s231 = smul.u32 %s19, 8
      %s232 = smul.u32 %s231, 2
      %s233 = smul.addr %s232, 4
      %s234 = scalar_lea.vmem %s209, %s233
      %v235 = vld [vmem:[%s234] sm:$0xf]
      %v236 = vld [vmem:[%s234 + $0x4] sm:$0x3]
      %v237 = vld [vmem:[%s234 + $0x8] sm:$0xf]
      %v238 = vld [vmem:[%s234 + $0xc] sm:$0x3]
      %v239 = vld [vmem:[%s234 + $0x10] sm:$0xf]
      %v240 = vld [vmem:[%s234 + $0x14] sm:$0x3]
      %v241 = vld [vmem:[%s234 + $0x18] sm:$0xf]
      %v242 = vld [vmem:[%s234 + $0x1c] sm:$0x3]
      %v243 = vld [vmem:[%s234 + $0x20] sm:$0xf]
      %v244 = vld [vmem:[%s234 + $0x24] sm:$0x3]
      %v245 = vld [vmem:[%s234 + $0x28] sm:$0xf]
      %v246 = vld [vmem:[%s234 + $0x2c] sm:$0x3]
      %v247 = vld [vmem:[%s234 + $0x30] sm:$0xf]
      %v248 = vld [vmem:[%s234 + $0x34] sm:$0x3]
      %v249 = vld [vmem:[%s234 + $0x38] sm:$0xf]
      %v250 = vld [vmem:[%s234 + $0x3c] sm:$0x3]
      %v251 = vld [vmem:[%s1] sm:$0xf]
      %vm268 = vcmask 1042432
      %vm269 = vcmask 1046532
      %vm270 = vmor %vm268, %vm269
      %v271 = vrot.slane %v235, 5
      %v272 = vrot.slane %v271, 4
      %v273 = vrot.slane %v236, 5
      %v274 = vsel %vm270, %v272, %v273
      %v275 = vrot.slane %v237, 5
      %v276 = vrot.slane %v275, 4
      %v277 = vrot.slane %v238, 5
      %v278 = vsel %vm270, %v276, %v277
      %v279 = vrot.slane %v239, 5
      %v280 = vrot.slane %v279, 4
      %v281 = vrot.slane %v240, 5
      %v282 = vsel %vm270, %v280, %v281
      %v283 = vrot.slane %v241, 5
      %v284 = vrot.slane %v283, 4
      %v285 = vrot.slane %v242, 5
      %v286 = vsel %vm270, %v284, %v285
      %v287 = vrot.slane %v243, 5
      %v288 = vrot.slane %v287, 4
      %v289 = vrot.slane %v244, 5
      %v290 = vsel %vm270, %v288, %v289
      %v291 = vrot.slane %v245, 5
      %v292 = vrot.slane %v291, 4
      %v293 = vrot.slane %v246, 5
      %v294 = vsel %vm270, %v292, %v293
      %v295 = vrot.slane %v247, 5
      %v296 = vrot.slane %v295, 4
      %v297 = vrot.slane %v248, 5
      %v298 = vsel %vm270, %v296, %v297
      %v299 = vrot.slane %v249, 5
      %v300 = vrot.slane %v299, 4
      %v301 = vrot.slane %v250, 5
      %v302 = vsel %vm270, %v300, %v301
      %s303 = scalar_lea.vmem %s1, 4
      %v304 = vld [vmem:[%s303] sm:$0xf]
      %v305 = vunpack.c.l.b16 %v274
      %v306 = vunpack.c.l.b16 %v278
      %v307 = vunpack.c.l.b16 %v282
      %v308 = vunpack.c.l.b16 %v286
      %v309 = vunpack.c.l.b16 %v290
      %v310 = vunpack.c.l.b16 %v294
      %v311 = vunpack.c.l.b16 %v298
      %v312 = vunpack.c.l.b16 %v302
      %v313 = vpack.c.b16 %v306, %v305
      %v314 = vpack.c.b16 %v308, %v307
      %v315 = vpack.c.b16 %v310, %v309
      %v316 = vpack.c.b16 %v312, %v311
      %vm317 = vcmask 64512
      %v319 = vsel %vm317, %v313, 0
      %v322 = vsel %vm317, %v314, 0
      %v325 = vsel %vm317, %v315, 0
      %v328 = vsel %vm317, %v316, 0
      %vm330 = vcmask 1043456
      %v332 = vsel %vm330, %v304, 0
      %334 = vmatprep.subr.bf16.mxu0 0
      %335 = vmatpush1.bf16.msra.mxu0 %v332
      %336 = vmatprep.subr.bf16.mxu0 0
      %337 = vmatpush1.bf16.msra.mxu0 0
      %338 = vmatprep.subr.bf16.mxu0 0
      %339 = vmatpush1.bf16.msra.mxu0 0
      %340 = vmatprep.subr.bf16.mxu0 0
      %341 = vmatpush1.bf16.msra.mxu0 0
      %342 = vmatprep.subr.bf16.mxu0 0
      %343 = vmatpush1.bf16.msra.mxu0 0
      %344 = vmatprep.subr.bf16.mxu0 0
      %345 = vmatpush1.bf16.msra.mxu0 0
      %346 = vmatprep.subr.bf16.mxu0 0
      %347 = vmatpush1.bf16.msra.mxu0 0
      %348 = vmatprep.subr.bf16.mxu0 0
      %349 = vmatpush1.bf16.msra.mxu0 0
      %350 = vmatprep.subr.bf16.mxu0 0
      %351 = vmatpush1.bf16.msra.mxu0 0
      %352 = vmatprep.subr.bf16.mxu0 0
      %353 = vmatpush1.bf16.msra.mxu0 0
      %354 = vmatprep.subr.bf16.mxu0 0
      %355 = vmatpush1.bf16.msra.mxu0 0
      %356 = vmatprep.subr.bf16.mxu0 0
      %357 = vmatpush1.bf16.msra.mxu0 0
      %358 = vmatprep.subr.bf16.mxu0 0
      %359 = vmatpush1.bf16.msra.mxu0 0
      %360 = vmatprep.subr.bf16.mxu0 0
      %361 = vmatpush1.bf16.msra.mxu0 0
      %362 = vmatprep.subr.bf16.mxu0 0
      %363 = vmatpush1.bf16.msra.mxu0 0
      %364 = vmatprep.subr.bf16.mxu0 0
      %365 = vmatpush1.bf16.msra.mxu0 0
      %366 = vmatprep.mubr.bf16.mxu0 0
      %367 = vmatmul.mubr.bf16.gmra.mrb[0].mxu0 %v319
      %v368 = vpop.f32.mrb[0].mxu0
      %v369 = vadd.f32 0.0, %v368
      %v370 = vpop.f32.mrb[0].mxu0
      %v371 = vpop.f32.mrb[0].mxu0
      %v372 = vadd.f32 0.0, %v371
      %v373 = vpop.f32.mrb[0].mxu0
      %374 = vmatprep.mubr.bf16.mxu0 0
      %375 = vmatmul.mubr.bf16.gmra.mrb[0].mxu0 %v322
      %v376 = vpop.f32.mrb[0].mxu0
      %v377 = vadd.f32 0.0, %v376
      %v378 = vpop.f32.mrb[0].mxu0
      %v379 = vpop.f32.mrb[0].mxu0
      %v380 = vadd.f32 0.0, %v379
      %v381 = vpop.f32.mrb[0].mxu0
      %382 = vmatprep.mubr.bf16.mxu0 0
      %383 = vmatmul.mubr.bf16.gmra.mrb[0].mxu0 %v325
      %v384 = vpop.f32.mrb[0].mxu0
      %v385 = vadd.f32 0.0, %v384
      %v386 = vpop.f32.mrb[0].mxu0
      %v387 = vpop.f32.mrb[0].mxu0
      %v388 = vadd.f32 0.0, %v387
      %v389 = vpop.f32.mrb[0].mxu0
      %390 = vmatprep.mubr.bf16.mxu0 0
      %391 = vmatmul.mubr.bf16.gmra.mrb[0].mxu0 %v328
      %v392 = vpop.f32.mrb[0].mxu0
      %v393 = vadd.f32 0.0, %v392
      %v394 = vpop.f32.mrb[0].mxu0
      %v395 = vpop.f32.mrb[0].mxu0
      %v396 = vadd.f32 0.0, %v395
      %v397 = vpop.f32.mrb[0].mxu0
      %398 = vdwg.mxu0
      %v399 = vunpack.c.l.b16 %v235
      %v400 = vunpack.c.l.b16 %v237
      %v401 = vunpack.c.l.b16 %v239
      %v402 = vunpack.c.l.b16 %v241
      %v403 = vunpack.c.l.b16 %v243
      %v404 = vunpack.c.l.b16 %v245
      %v405 = vunpack.c.l.b16 %v247
      %v406 = vunpack.c.l.b16 %v249
      %v407 = vpack.c.b16 %v400, %v399
      %v408 = vpack.c.b16 %v402, %v401
      %v409 = vpack.c.b16 %v404, %v403
      %v410 = vpack.c.b16 %v406, %v405
      %v412 = vsel %vm317, %v407, 0
      %v415 = vsel %vm317, %v408, 0
      %v418 = vsel %vm317, %v409, 0
      %v421 = vsel %vm317, %v410, 0
      %v424 = vsel %vm330, %v251, 0
      %426 = vmatprep.subr.bf16.mxu0 0
      %427 = vmatpush1.bf16.msra.mxu0 %v424
      %428 = vmatprep.subr.bf16.mxu0 0
      %429 = vmatpush1.bf16.msra.mxu0 0
      %430 = vmatprep.subr.bf16.mxu0 0
      %431 = vmatpush1.bf16.msra.mxu0 0
      %432 = vmatprep.subr.bf16.mxu0 0
      %433 = vmatpush1.bf16.msra.mxu0 0
      %434 = vmatprep.subr.bf16.mxu0 0
      %435 = vmatpush1.bf16.msra.mxu0 0
      %436 = vmatprep.subr.bf16.mxu0 0
      %437 = vmatpush1.bf16.msra.mxu0 0
      %438 = vmatprep.subr.bf16.mxu0 0
      %439 = vmatpush1.bf16.msra.mxu0 0
      %440 = vmatprep.subr.bf16.mxu0 0
      %441 = vmatpush1.bf16.msra.mxu0 0
      %442 = vmatprep.subr.bf16.mxu0 0
      %443 = vmatpush1.bf16.msra.mxu0 0
      %444 = vmatprep.subr.bf16.mxu0 0
      %445 = vmatpush1.bf16.msra.mxu0 0
      %446 = vmatprep.subr.bf16.mxu0 0
      %447 = vmatpush1.bf16.msra.mxu0 0
      %448 = vmatprep.subr.bf16.mxu0 0
      %449 = vmatpush1.bf16.msra.mxu0 0
      %450 = vmatprep.subr.bf16.mxu0 0
      %451 = vmatpush1.bf16.msra.mxu0 0
      %452 = vmatprep.subr.bf16.mxu0 0
      %453 = vmatpush1.bf16.msra.mxu0 0
      %454 = vmatprep.subr.bf16.mxu0 0
      %455 = vmatpush1.bf16.msra.mxu0 0
      %456 = vmatprep.subr.bf16.mxu0 0
      %457 = vmatpush1.bf16.msra.mxu0 0
      %458 = vmatprep.mubr.bf16.mxu0 0
      %459 = vmatmul.mubr.bf16.gmra.mrb[0].mxu0 %v412
      %v460 = vpop.f32.mrb[0].mxu0
      %v461 = vadd.f32 %v369, %v460
      %v462 = vpop.f32.mrb[0].mxu0
      %v463 = vpop.f32.mrb[0].mxu0
      %v464 = vadd.f32 %v372, %v463
      %v465 = vpop.f32.mrb[0].mxu0
      %466 = vmatprep.mubr.bf16.mxu0 0
      %467 = vmatmul.mubr.bf16.gmra.mrb[0].mxu0 %v415
      %v468 = vpop.f32.mrb[0].mxu0
      %v469 = vadd.f32 %v377, %v468
      %v470 = vpop.f32.mrb[0].mxu0
      %v471 = vpop.f32.mrb[0].mxu0
      %v472 = vadd.f32 %v380, %v471
      %v473 = vpop.f32.mrb[0].mxu0
      %474 = vmatprep.mubr.bf16.mxu0 0
      %475 = vmatmul.mubr.bf16.gmra.mrb[0].mxu0 %v418
      %v476 = vpop.f32.mrb[0].mxu0
      %v477 = vadd.f32 %v385, %v476
      %v478 = vpop.f32.mrb[0].mxu0
      %v479 = vpop.f32.mrb[0].mxu0
      %v480 = vadd.f32 %v388, %v479
      %v481 = vpop.f32.mrb[0].mxu0
      %482 = vmatprep.mubr.bf16.mxu0 0
      %483 = vmatmul.mubr.bf16.gmra.mrb[0].mxu0 %v421
      %v484 = vpop.f32.mrb[0].mxu0
      %v485 = vadd.f32 %v393, %v484
      %v486 = vpop.f32.mrb[0].mxu0
      %v487 = vpop.f32.mrb[0].mxu0
      %v488 = vadd.f32 %v396, %v487
      %v489 = vpop.f32.mrb[0].mxu0
      %490 = vdwg.mxu0
      %vm491 = vcmask 1041408
      %vm492 = vcmask 1045508
      %vm493 = vmor %vm491, %vm492
      %v494 = vrot.slane %v235, 6
      %v495 = vrot.slane %v494, 4
      %v496 = vrot.slane %v236, 6
      %v497 = vsel %vm493, %v495, %v496
      %v498 = vrot.slane %v237, 6
      %v499 = vrot.slane %v498, 4
      %v500 = vrot.slane %v238, 6
      %v501 = vsel %vm493, %v499, %v500
      %v502 = vrot.slane %v239, 6
      %v503 = vrot.slane %v502, 4
      %v504 = vrot.slane %v240, 6
      %v505 = vsel %vm493, %v503, %v504
      %v506 = vrot.slane %v241, 6
      %v507 = vrot.slane %v506, 4
      %v508 = vrot.slane %v242, 6
      %v509 = vsel %vm493, %v507, %v508
      %v510 = vrot.slane %v243, 6
      %v511 = vrot.slane %v510, 4
      %v512 = vrot.slane %v244, 6
      %v513 = vsel %vm493, %v511, %v512
      %v514 = vrot.slane %v245, 6
      %v515 = vrot.slane %v514, 4
      %v516 = vrot.slane %v246, 6
      %v517 = vsel %vm493, %v515, %v516
      %v518 = vrot.slane %v247, 6
      %v519 = vrot.slane %v518, 4
      %v520 = vrot.slane %v248, 6
      %v521 = vsel %vm493, %v519, %v520
      %v522 = vrot.slane %v249, 6
      %v523 = vrot.slane %v522, 4
      %v524 = vrot.slane %v250, 6
      %v525 = vsel %vm493, %v523, %v524
      %s526 = scalar_lea.vmem %s1, 8
      %v527 = vld [vmem:[%s526] sm:$0xf]
      %v528 = vunpack.c.l.b16 %v497
      %v529 = vunpack.c.l.b16 %v501
      %v530 = vunpack.c.l.b16 %v505
      %v531 = vunpack.c.l.b16 %v509
      %v532 = vunpack.c.l.b16 %v513
      %v533 = vunpack.c.l.b16 %v517
      %v534 = vunpack.c.l.b16 %v521
      %v535 = vunpack.c.l.b16 %v525
      %v536 = vpack.c.b16 %v529, %v528
      %v537 = vpack.c.b16 %v531, %v530
      %v538 = vpack.c.b16 %v533, %v532
      %v539 = vpack.c.b16 %v535, %v534
      %v541 = vsel %vm317, %v536, 0
      %v544 = vsel %vm317, %v537, 0
      %v547 = vsel %vm317, %v538, 0
      %v550 = vsel %vm317, %v539, 0
      %v553 = vsel %vm330, %v527, 0
      %555 = vmatprep.subr.bf16.mxu0 0
      %556 = vmatpush1.bf16.msra.mxu0 %v553
      %557 = vmatprep.subr.bf16.mxu0 0
      %558 = vmatpush1.bf16.msra.mxu0 0
      %559 = vmatprep.subr.bf16.mxu0 0
      %560 = vmatpush1.bf16.msra.mxu0 0
      %561 = vmatprep.subr.bf16.mxu0 0
      %562 = vmatpush1.bf16.msra.mxu0 0
      %563 = vmatprep.subr.bf16.mxu0 0
      %564 = vmatpush1.bf16.msra.mxu0 0
      %565 = vmatprep.subr.bf16.mxu0 0
      %566 = vmatpush1.bf16.msra.mxu0 0
      %567 = vmatprep.subr.bf16.mxu0 0
      %568 = vmatpush1.bf16.msra.mxu0 0
      %569 = vmatprep.subr.bf16.mxu0 0
      %570 = vmatpush1.bf16.msra.mxu0 0
      %571 = vmatprep.subr.bf16.mxu0 0
      %572 = vmatpush1.bf16.msra.mxu0 0
      %573 = vmatprep.subr.bf16.mxu0 0
      %574 = vmatpush1.bf16.msra.mxu0 0
      %575 = vmatprep.subr.bf16.mxu0 0
      %576 = vmatpush1.bf16.msra.mxu0 0
      %577 = vmatprep.subr.bf16.mxu0 0
      %578 = vmatpush1.bf16.msra.mxu0 0
      %579 = vmatprep.subr.bf16.mxu0 0
      %580 = vmatpush1.bf16.msra.mxu0 0
      %581 = vmatprep.subr.bf16.mxu0 0
      %582 = vmatpush1.bf16.msra.mxu0 0
      %583 = vmatprep.subr.bf16.mxu0 0
      %584 = vmatpush1.bf16.msra.mxu0 0
      %585 = vmatprep.subr.bf16.mxu0 0
      %586 = vmatpush1.bf16.msra.mxu0 0
      %587 = vmatprep.mubr.bf16.mxu0 0
      %588 = vmatmul.mubr.bf16.gmra.mrb[0].mxu0 %v541
      %v589 = vpop.f32.mrb[0].mxu0
      %v590 = vadd.f32 0.0, %v589
      %v591 = vpop.f32.mrb[0].mxu0
      %v592 = vpop.f32.mrb[0].mxu0
      %v593 = vadd.f32 0.0, %v592
      %v594 = vpop.f32.mrb[0].mxu0
      %595 = vmatprep.mubr.bf16.mxu0 0
      %596 = vmatmul.mubr.bf16.gmra.mrb[0].mxu0 %v544
      %v597 = vpop.f32.mrb[0].mxu0
      %v598 = vadd.f32 0.0, %v597
      %v599 = vpop.f32.mrb[0].mxu0
      %v600 = vpop.f32.mrb[0].mxu0
      %v601 = vadd.f32 0.0, %v600
      %v602 = vpop.f32.mrb[0].mxu0
      %603 = vmatprep.mubr.bf16.mxu0 0
      %604 = vmatmul.mubr.bf16.gmra.mrb[0].mxu0 %v547
      %v605 = vpop.f32.mrb[0].mxu0
      %v606 = vadd.f32 0.0, %v605
      %v607 = vpop.f32.mrb[0].mxu0
      %v608 = vpop.f32.mrb[0].mxu0
      %v609 = vadd.f32 0.0, %v608
      %v610 = vpop.f32.mrb[0].mxu0
      %611 = vmatprep.mubr.bf16.mxu0 0
      %612 = vmatmul.mubr.bf16.gmra.mrb[0].mxu0 %v550
      %v613 = vpop.f32.mrb[0].mxu0
      %v614 = vadd.f32 0.0, %v613
      %v615 = vpop.f32.mrb[0].mxu0
      %v616 = vpop.f32.mrb[0].mxu0
      %v617 = vadd.f32 0.0, %v616
      %v618 = vpop.f32.mrb[0].mxu0
      %619 = vdwg.mxu0
      %v620 = vadd.f32 %v461, %v590
      %v621 = vadd.f32 %v464, %v593
      %v622 = vadd.f32 %v469, %v598
      %v623 = vadd.f32 %v472, %v601
      %v624 = vadd.f32 %v477, %v606
      %v625 = vadd.f32 %v480, %v609
      %v626 = vadd.f32 %v485, %v614
      %v627 = vadd.f32 %v488, %v617
      %s628 = sadd.s32 %s231, 2
      %s629 = smul.u32 %s628, 2
      %s630 = smul.addr %s629, 4
      %s631 = scalar_lea.vmem %s209, %s630
      %v632 = vld [vmem:[%s631] sm:$0xf]
      %v633 = vld [vmem:[%s631 + $0x4] sm:$0x3]
      %v634 = vld [vmem:[%s631 + $0x8] sm:$0xf]
      %v635 = vld [vmem:[%s631 + $0xc] sm:$0x3]
      %v636 = vld [vmem:[%s631 + $0x10] sm:$0xf]
      %v637 = vld [vmem:[%s631 + $0x14] sm:$0x3]
      %v638 = vld [vmem:[%s631 + $0x18] sm:$0xf]
      %v639 = vld [vmem:[%s631 + $0x1c] sm:$0x3]
      %v640 = vld [vmem:[%s631 + $0x20] sm:$0xf]
      %v641 = vld [vmem:[%s631 + $0x24] sm:$0x3]
      %v642 = vld [vmem:[%s631 + $0x28] sm:$0xf]
      %v643 = vld [vmem:[%s631 + $0x2c] sm:$0x3]
      %v644 = vld [vmem:[%s631 + $0x30] sm:$0xf]
      %v645 = vld [vmem:[%s631 + $0x34] sm:$0x3]
      %v646 = vld [vmem:[%s631 + $0x38] sm:$0xf]
      %v647 = vld [vmem:[%s631 + $0x3c] sm:$0x3]
      %s648 = scalar_lea.vmem %s1, 12
      %v649 = vld [vmem:[%s648] sm:$0xf]
      %v658 = vunpack.c.l.b16 %v632
      %v659 = vunpack.c.l.b16 %v634
      %v660 = vunpack.c.l.b16 %v636
      %v661 = vunpack.c.l.b16 %v638
      %v662 = vunpack.c.l.b16 %v640
      %v663 = vunpack.c.l.b16 %v642
      %v664 = vunpack.c.l.b16 %v644
      %v665 = vunpack.c.l.b16 %v646
      %v666 = vpack.c.b16 %v659, %v658
      %v667 = vpack.c.b16 %v661, %v660
      %v668 = vpack.c.b16 %v663, %v662
      %v669 = vpack.c.b16 %v665, %v664
      %v671 = vsel %vm317, %v666, 0
      %v674 = vsel %vm317, %v667, 0
      %v677 = vsel %vm317, %v668, 0
      %v680 = vsel %vm317, %v669, 0
      %v683 = vsel %vm330, %v649, 0
      %685 = vmatprep.subr.bf16.mxu0 0
      %686 = vmatpush1.bf16.msra.mxu0 %v683
      %687 = vmatprep.subr.bf16.mxu0 0
      %688 = vmatpush1.bf16.msra.mxu0 0
      %689 = vmatprep.subr.bf16.mxu0 0
      %690 = vmatpush1.bf16.msra.mxu0 0
      %691 = vmatprep.subr.bf16.mxu0 0
      %692 = vmatpush1.bf16.msra.mxu0 0
      %693 = vmatprep.subr.bf16.mxu0 0
      %694 = vmatpush1.bf16.msra.mxu0 0
      %695 = vmatprep.subr.bf16.mxu0 0
      %696 = vmatpush1.bf16.msra.mxu0 0
      %697 = vmatprep.subr.bf16.mxu0 0
      %698 = vmatpush1.bf16.msra.mxu0 0
      %699 = vmatprep.subr.bf16.mxu0 0
      %700 = vmatpush1.bf16.msra.mxu0 0
      %701 = vmatprep.subr.bf16.mxu0 0
      %702 = vmatpush1.bf16.msra.mxu0 0
      %703 = vmatprep.subr.bf16.mxu0 0
      %704 = vmatpush1.bf16.msra.mxu0 0
      %705 = vmatprep.subr.bf16.mxu0 0
      %706 = vmatpush1.bf16.msra.mxu0 0
      %707 = vmatprep.subr.bf16.mxu0 0
      %708 = vmatpush1.bf16.msra.mxu0 0
      %709 = vmatprep.subr.bf16.mxu0 0
      %710 = vmatpush1.bf16.msra.mxu0 0
      %711 = vmatprep.subr.bf16.mxu0 0
      %712 = vmatpush1.bf16.msra.mxu0 0
      %713 = vmatprep.subr.bf16.mxu0 0
      %714 = vmatpush1.bf16.msra.mxu0 0
      %715 = vmatprep.subr.bf16.mxu0 0
      %716 = vmatpush1.bf16.msra.mxu0 0
      %717 = vmatprep.mubr.bf16.mxu0 0
      %718 = vmatmul.mubr.bf16.gmra.mrb[0].mxu0 %v671
      %v719 = vpop.f32.mrb[0].mxu0
      %v720 = vadd.f32 0.0, %v719
      %v721 = vpop.f32.mrb[0].mxu0
      %v722 = vpop.f32.mrb[0].mxu0
      %v723 = vadd.f32 0.0, %v722
      %v724 = vpop.f32.mrb[0].mxu0
      %725 = vmatprep.mubr.bf16.mxu0 0
      %726 = vmatmul.mubr.bf16.gmra.mrb[0].mxu0 %v674
      %v727 = vpop.f32.mrb[0].mxu0
      %v728 = vadd.f32 0.0, %v727
      %v729 = vpop.f32.mrb[0].mxu0
      %v730 = vpop.f32.mrb[0].mxu0
      %v731 = vadd.f32 0.0, %v730
      %v732 = vpop.f32.mrb[0].mxu0
      %733 = vmatprep.mubr.bf16.mxu0 0
      %734 = vmatmul.mubr.bf16.gmra.mrb[0].mxu0 %v677
      %v735 = vpop.f32.mrb[0].mxu0
      %v736 = vadd.f32 0.0, %v735
      %v737 = vpop.f32.mrb[0].mxu0
      %v738 = vpop.f32.mrb[0].mxu0
      %v739 = vadd.f32 0.0, %v738
      %v740 = vpop.f32.mrb[0].mxu0
      %741 = vmatprep.mubr.bf16.mxu0 0
      %742 = vmatmul.mubr.bf16.gmra.mrb[0].mxu0 %v680
      %v743 = vpop.f32.mrb[0].mxu0
      %v744 = vadd.f32 0.0, %v743
      %v745 = vpop.f32.mrb[0].mxu0
      %v746 = vpop.f32.mrb[0].mxu0
      %v747 = vadd.f32 0.0, %v746
      %v748 = vpop.f32.mrb[0].mxu0
      %749 = vdwg.mxu0
      %v750 = vadd.f32 %v620, %v720
      %v751 = vadd.f32 %v621, %v723
      %v752 = vadd.f32 %v622, %v728
      %v753 = vadd.f32 %v623, %v731
      %v754 = vadd.f32 %v624, %v736
      %v755 = vadd.f32 %v625, %v739
      %v756 = vadd.f32 %v626, %v744
      %v757 = vadd.f32 %v627, %v747
      %v766 = vrot.slane %v632, 5
      %v767 = vrot.slane %v766, 4
      %v768 = vrot.slane %v633, 5
      %v769 = vsel %vm270, %v767, %v768
      %v770 = vrot.slane %v634, 5
      %v771 = vrot.slane %v770, 4
      %v772 = vrot.slane %v635, 5
      %v773 = vsel %vm270, %v771, %v772
      %v774 = vrot.slane %v636, 5
      %v775 = vrot.slane %v774, 4
      %v776 = vrot.slane %v637, 5
      %v777 = vsel %vm270, %v775, %v776
      %v778 = vrot.slane %v638, 5
      %v779 = vrot.slane %v778, 4
      %v780 = vrot.slane %v639, 5
      %v781 = vsel %vm270, %v779, %v780
      %v782 = vrot.slane %v640, 5
      %v783 = vrot.slane %v782, 4
      %v784 = vrot.slane %v641, 5
      %v785 = vsel %vm270, %v783, %v784
      %v786 = vrot.slane %v642, 5
      %v787 = vrot.slane %v786, 4
      %v788 = vrot.slane %v643, 5
      %v789 = vsel %vm270, %v787, %v788
      %v790 = vrot.slane %v644, 5
      %v791 = vrot.slane %v790, 4
      %v792 = vrot.slane %v645, 5
      %v793 = vsel %vm270, %v791, %v792
      %v794 = vrot.slane %v646, 5
      %v795 = vrot.slane %v794, 4
      %v796 = vrot.slane %v647, 5
      %v797 = vsel %vm270, %v795, %v796
      %s798 = scalar_lea.vmem %s1, 16
      %v799 = vld [vmem:[%s798] sm:$0xf]
      %v800 = vunpack.c.l.b16 %v769
      %v801 = vunpack.c.l.b16 %v773
      %v802 = vunpack.c.l.b16 %v777
      %v803 = vunpack.c.l.b16 %v781
      %v804 = vunpack.c.l.b16 %v785
      %v805 = vunpack.c.l.b16 %v789
      %v806 = vunpack.c.l.b16 %v793
      %v807 = vunpack.c.l.b16 %v797
      %v808 = vpack.c.b16 %v801, %v800
      %v809 = vpack.c.b16 %v803, %v802
      %v810 = vpack.c.b16 %v805, %v804
      %v811 = vpack.c.b16 %v807, %v806
      %v813 = vsel %vm317, %v808, 0
      %v816 = vsel %vm317, %v809, 0
      %v819 = vsel %vm317, %v810, 0
      %v822 = vsel %vm317, %v811, 0
      %v825 = vsel %vm330, %v799, 0
      %827 = vmatprep.subr.bf16.mxu0 0
      %828 = vmatpush1.bf16.msra.mxu0 %v825
      %829 = vmatprep.subr.bf16.mxu0 0
      %830 = vmatpush1.bf16.msra.mxu0 0
      %831 = vmatprep.subr.bf16.mxu0 0
      %832 = vmatpush1.bf16.msra.mxu0 0
      %833 = vmatprep.subr.bf16.mxu0 0
      %834 = vmatpush1.bf16.msra.mxu0 0
      %835 = vmatprep.subr.bf16.mxu0 0
      %836 = vmatpush1.bf16.msra.mxu0 0
      %837 = vmatprep.subr.bf16.mxu0 0
      %838 = vmatpush1.bf16.msra.mxu0 0
      %839 = vmatprep.subr.bf16.mxu0 0
      %840 = vmatpush1.bf16.msra.mxu0 0
      %841 = vmatprep.subr.bf16.mxu0 0
      %842 = vmatpush1.bf16.msra.mxu0 0
      %843 = vmatprep.subr.bf16.mxu0 0
      %844 = vmatpush1.bf16.msra.mxu0 0
      %845 = vmatprep.subr.bf16.mxu0 0
      %846 = vmatpush1.bf16.msra.mxu0 0
      %847 = vmatprep.subr.bf16.mxu0 0
      %848 = vmatpush1.bf16.msra.mxu0 0
      %849 = vmatprep.subr.bf16.mxu0 0
      %850 = vmatpush1.bf16.msra.mxu0 0
      %851 = vmatprep.subr.bf16.mxu0 0
      %852 = vmatpush1.bf16.msra.mxu0 0
      %853 = vmatprep.subr.bf16.mxu0 0
      %854 = vmatpush1.bf16.msra.mxu0 0
      %855 = vmatprep.subr.bf16.mxu0 0
      %856 = vmatpush1.bf16.msra.mxu0 0
      %857 = vmatprep.subr.bf16.mxu0 0
      %858 = vmatpush1.bf16.msra.mxu0 0
      %859 = vmatprep.mubr.bf16.mxu0 0
      %860 = vmatmul.mubr.bf16.gmra.mrb[0].mxu0 %v813
      %v861 = vpop.f32.mrb[0].mxu0
      %v862 = vadd.f32 0.0, %v861
      %v863 = vpop.f32.mrb[0].mxu0
      %v864 = vpop.f32.mrb[0].mxu0
      %v865 = vadd.f32 0.0, %v864
      %v866 = vpop.f32.mrb[0].mxu0
      %867 = vmatprep.mubr.bf16.mxu0 0
      %868 = vmatmul.mubr.bf16.gmra.mrb[0].mxu0 %v816
      %v869 = vpop.f32.mrb[0].mxu0
      %v870 = vadd.f32 0.0, %v869
      %v871 = vpop.f32.mrb[0].mxu0
      %v872 = vpop.f32.mrb[0].mxu0
      %v873 = vadd.f32 0.0, %v872
      %v874 = vpop.f32.mrb[0].mxu0
      %875 = vmatprep.mubr.bf16.mxu0 0
      %876 = vmatmul.mubr.bf16.gmra.mrb[0].mxu0 %v819
      %v877 = vpop.f32.mrb[0].mxu0
      %v878 = vadd.f32 0.0, %v877
      %v879 = vpop.f32.mrb[0].mxu0
      %v880 = vpop.f32.mrb[0].mxu0
      %v881 = vadd.f32 0.0, %v880
      %v882 = vpop.f32.mrb[0].mxu0
      %883 = vmatprep.mubr.bf16.mxu0 0
      %884 = vmatmul.mubr.bf16.gmra.mrb[0].mxu0 %v822
      %v885 = vpop.f32.mrb[0].mxu0
      %v886 = vadd.f32 0.0, %v885
      %v887 = vpop.f32.mrb[0].mxu0
      %v888 = vpop.f32.mrb[0].mxu0
      %v889 = vadd.f32 0.0, %v888
      %v890 = vpop.f32.mrb[0].mxu0
      %891 = vdwg.mxu0
      %v892 = vadd.f32 %v750, %v862
      %v893 = vadd.f32 %v751, %v865
      %v894 = vadd.f32 %v752, %v870
      %v895 = vadd.f32 %v753, %v873
      %v896 = vadd.f32 %v754, %v878
      %v897 = vadd.f32 %v755, %v881
      %v898 = vadd.f32 %v756, %v886
      %v899 = vadd.f32 %v757, %v889
      %v900 = vrot.slane %v632, 6
      %v901 = vrot.slane %v900, 4
      %v902 = vrot.slane %v633, 6
      %v903 = vsel %vm493, %v901, %v902
      %v904 = vrot.slane %v634, 6
      %v905 = vrot.slane %v904, 4
      %v906 = vrot.slane %v635, 6
      %v907 = vsel %vm493, %v905, %v906
      %v908 = vrot.slane %v636, 6
      %v909 = vrot.slane %v908, 4
      %v910 = vrot.slane %v637, 6
      %v911 = vsel %vm493, %v909, %v910
      %v912 = vrot.slane %v638, 6
      %v913 = vrot.slane %v912, 4
      %v914 = vrot.slane %v639, 6
      %v915 = vsel %vm493, %v913, %v914
      %v916 = vrot.slane %v640, 6
      %v917 = vrot.slane %v916, 4
      %v918 = vrot.slane %v641, 6
      %v919 = vsel %vm493, %v917, %v918
      %v920 = vrot.slane %v642, 6
      %v921 = vrot.slane %v920, 4
      %v922 = vrot.slane %v643, 6
      %v923 = vsel %vm493, %v921, %v922
      %v924 = vrot.slane %v644, 6
      %v925 = vrot.slane %v924, 4
      %v926 = vrot.slane %v645, 6
      %v927 = vsel %vm493, %v925, %v926
      %v928 = vrot.slane %v646, 6
      %v929 = vrot.slane %v928, 4
      %v930 = vrot.slane %v647, 6
      %v931 = vsel %vm493, %v929, %v930
      %s932 = scalar_lea.vmem %s1, 20
      %v933 = vld [vmem:[%s932] sm:$0xf]
      %v934 = vunpack.c.l.b16 %v903
      %v935 = vunpack.c.l.b16 %v907
      %v936 = vunpack.c.l.b16 %v911
      %v937 = vunpack.c.l.b16 %v915
      %v938 = vunpack.c.l.b16 %v919
      %v939 = vunpack.c.l.b16 %v923
      %v940 = vunpack.c.l.b16 %v927
      %v941 = vunpack.c.l.b16 %v931
      %v942 = vpack.c.b16 %v935, %v934
      %v943 = vpack.c.b16 %v937, %v936
      %v944 = vpack.c.b16 %v939, %v938
      %v945 = vpack.c.b16 %v941, %v940
      %v947 = vsel %vm317, %v942, 0
      %v950 = vsel %vm317, %v943, 0
      %v953 = vsel %vm317, %v944, 0
      %v956 = vsel %vm317, %v945, 0
      %v959 = vsel %vm330, %v933, 0
      %961 = vmatprep.subr.bf16.mxu0 0
      %962 = vmatpush1.bf16.msra.mxu0 %v959
      %963 = vmatprep.subr.bf16.mxu0 0
      %964 = vmatpush1.bf16.msra.mxu0 0
      %965 = vmatprep.subr.bf16.mxu0 0
      %966 = vmatpush1.bf16.msra.mxu0 0
      %967 = vmatprep.subr.bf16.mxu0 0
      %968 = vmatpush1.bf16.msra.mxu0 0
      %969 = vmatprep.subr.bf16.mxu0 0
      %970 = vmatpush1.bf16.msra.mxu0 0
      %971 = vmatprep.subr.bf16.mxu0 0
      %972 = vmatpush1.bf16.msra.mxu0 0
      %973 = vmatprep.subr.bf16.mxu0 0
      %974 = vmatpush1.bf16.msra.mxu0 0
      %975 = vmatprep.subr.bf16.mxu0 0
      %976 = vmatpush1.bf16.msra.mxu0 0
      %977 = vmatprep.subr.bf16.mxu0 0
      %978 = vmatpush1.bf16.msra.mxu0 0
      %979 = vmatprep.subr.bf16.mxu0 0
      %980 = vmatpush1.bf16.msra.mxu0 0
      %981 = vmatprep.subr.bf16.mxu0 0
      %982 = vmatpush1.bf16.msra.mxu0 0
      %983 = vmatprep.subr.bf16.mxu0 0
      %984 = vmatpush1.bf16.msra.mxu0 0
      %985 = vmatprep.subr.bf16.mxu0 0
      %986 = vmatpush1.bf16.msra.mxu0 0
      %987 = vmatprep.subr.bf16.mxu0 0
      %988 = vmatpush1.bf16.msra.mxu0 0
      %989 = vmatprep.subr.bf16.mxu0 0
      %990 = vmatpush1.bf16.msra.mxu0 0
      %991 = vmatprep.subr.bf16.mxu0 0
      %992 = vmatpush1.bf16.msra.mxu0 0
      %993 = vmatprep.mubr.bf16.mxu0 0
      %994 = vmatmul.mubr.bf16.gmra.mrb[0].mxu0 %v947
      %v995 = vpop.f32.mrb[0].mxu0
      %v996 = vadd.f32 0.0, %v995
      %v997 = vpop.f32.mrb[0].mxu0
      %v998 = vpop.f32.mrb[0].mxu0
      %v999 = vadd.f32 0.0, %v998
      %v1000 = vpop.f32.mrb[0].mxu0
      %1001 = vmatprep.mubr.bf16.mxu0 0
      %1002 = vmatmul.mubr.bf16.gmra.mrb[0].mxu0 %v950
      %v1003 = vpop.f32.mrb[0].mxu0
      %v1004 = vadd.f32 0.0, %v1003
      %v1005 = vpop.f32.mrb[0].mxu0
      %v1006 = vpop.f32.mrb[0].mxu0
      %v1007 = vadd.f32 0.0, %v1006
      %v1008 = vpop.f32.mrb[0].mxu0
      %1009 = vmatprep.mubr.bf16.mxu0 0
      %1010 = vmatmul.mubr.bf16.gmra.mrb[0].mxu0 %v953
      %v1011 = vpop.f32.mrb[0].mxu0
      %v1012 = vadd.f32 0.0, %v1011
      %v1013 = vpop.f32.mrb[0].mxu0
      %v1014 = vpop.f32.mrb[0].mxu0
      %v1015 = vadd.f32 0.0, %v1014
      %v1016 = vpop.f32.mrb[0].mxu0
      %1017 = vmatprep.mubr.bf16.mxu0 0
      %1018 = vmatmul.mubr.bf16.gmra.mrb[0].mxu0 %v956
      %v1019 = vpop.f32.mrb[0].mxu0
      %v1020 = vadd.f32 0.0, %v1019
      %v1021 = vpop.f32.mrb[0].mxu0
      %v1022 = vpop.f32.mrb[0].mxu0
      %v1023 = vadd.f32 0.0, %v1022
      %v1024 = vpop.f32.mrb[0].mxu0
      %1025 = vdwg.mxu0
      %v1026 = vadd.f32 %v892, %v996
      %v1027 = vadd.f32 %v893, %v999
      %v1028 = vadd.f32 %v894, %v1004
      %v1029 = vadd.f32 %v895, %v1007
      %v1030 = vadd.f32 %v896, %v1012
      %v1031 = vadd.f32 %v897, %v1015
      %v1032 = vadd.f32 %v898, %v1020
      %v1033 = vadd.f32 %v899, %v1023
      %s1034 = sadd.s32 %s231, 4
      %s1035 = smul.u32 %s1034, 2
      %s1036 = smul.addr %s1035, 4
      %s1037 = scalar_lea.vmem %s209, %s1036
      %v1038 = vld [vmem:[%s1037] sm:$0xf]
      %v1039 = vld [vmem:[%s1037 + $0x4] sm:$0x3]
      %v1040 = vld [vmem:[%s1037 + $0x8] sm:$0xf]
      %v1041 = vld [vmem:[%s1037 + $0xc] sm:$0x3]
      %v1042 = vld [vmem:[%s1037 + $0x10] sm:$0xf]
      %v1043 = vld [vmem:[%s1037 + $0x14] sm:$0x3]
      %v1044 = vld [vmem:[%s1037 + $0x18] sm:$0xf]
      %v1045 = vld [vmem:[%s1037 + $0x1c] sm:$0x3]
      %v1046 = vld [vmem:[%s1037 + $0x20] sm:$0xf]
      %v1047 = vld [vmem:[%s1037 + $0x24] sm:$0x3]
      %v1048 = vld [vmem:[%s1037 + $0x28] sm:$0xf]
      %v1049 = vld [vmem:[%s1037 + $0x2c] sm:$0x3]
      %v1050 = vld [vmem:[%s1037 + $0x30] sm:$0xf]
      %v1051 = vld [vmem:[%s1037 + $0x34] sm:$0x3]
      %v1052 = vld [vmem:[%s1037 + $0x38] sm:$0xf]
      %v1053 = vld [vmem:[%s1037 + $0x3c] sm:$0x3]
      %s1054 = scalar_lea.vmem %s1, 24
      %v1055 = vld [vmem:[%s1054] sm:$0xf]
      %v1064 = vunpack.c.l.b16 %v1038
      %v1065 = vunpack.c.l.b16 %v1040
      %v1066 = vunpack.c.l.b16 %v1042
      %v1067 = vunpack.c.l.b16 %v1044
      %v1068 = vunpack.c.l.b16 %v1046
      %v1069 = vunpack.c.l.b16 %v1048
      %v1070 = vunpack.c.l.b16 %v1050
      %v1071 = vunpack.c.l.b16 %v1052
      %v1072 = vpack.c.b16 %v1065, %v1064
      %v1073 = vpack.c.b16 %v1067, %v1066
      %v1074 = vpack.c.b16 %v1069, %v1068
      %v1075 = vpack.c.b16 %v1071, %v1070
      %v1077 = vsel %vm317, %v1072, 0
      %v1080 = vsel %vm317, %v1073, 0
      %v1083 = vsel %vm317, %v1074, 0
      %v1086 = vsel %vm317, %v1075, 0
      %v1089 = vsel %vm330, %v1055, 0
      %1091 = vmatprep.subr.bf16.mxu0 0
      %1092 = vmatpush1.bf16.msra.mxu0 %v1089
      %1093 = vmatprep.subr.bf16.mxu0 0
      %1094 = vmatpush1.bf16.msra.mxu0 0
      %1095 = vmatprep.subr.bf16.mxu0 0
      %1096 = vmatpush1.bf16.msra.mxu0 0
      %1097 = vmatprep.subr.bf16.mxu0 0
      %1098 = vmatpush1.bf16.msra.mxu0 0
      %1099 = vmatprep.subr.bf16.mxu0 0
      %1100 = vmatpush1.bf16.msra.mxu0 0
      %1101 = vmatprep.subr.bf16.mxu0 0
      %1102 = vmatpush1.bf16.msra.mxu0 0
      %1103 = vmatprep.subr.bf16.mxu0 0
      %1104 = vmatpush1.bf16.msra.mxu0 0
      %1105 = vmatprep.subr.bf16.mxu0 0
      %1106 = vmatpush1.bf16.msra.mxu0 0
      %1107 = vmatprep.subr.bf16.mxu0 0
      %1108 = vmatpush1.bf16.msra.mxu0 0
      %1109 = vmatprep.subr.bf16.mxu0 0
      %1110 = vmatpush1.bf16.msra.mxu0 0
      %1111 = vmatprep.subr.bf16.mxu0 0
      %1112 = vmatpush1.bf16.msra.mxu0 0
      %1113 = vmatprep.subr.bf16.mxu0 0
      %1114 = vmatpush1.bf16.msra.mxu0 0
      %1115 = vmatprep.subr.bf16.mxu0 0
      %1116 = vmatpush1.bf16.msra.mxu0 0
      %1117 = vmatprep.subr.bf16.mxu0 0
      %1118 = vmatpush1.bf16.msra.mxu0 0
      %1119 = vmatprep.subr.bf16.mxu0 0
      %1120 = vmatpush1.bf16.msra.mxu0 0
      %1121 = vmatprep.subr.bf16.mxu0 0
      %1122 = vmatpush1.bf16.msra.mxu0 0
      %1123 = vmatprep.mubr.bf16.mxu0 0
      %1124 = vmatmul.mubr.bf16.gmra.mrb[0].mxu0 %v1077
      %v1125 = vpop.f32.mrb[0].mxu0
      %v1126 = vadd.f32 0.0, %v1125
      %v1127 = vpop.f32.mrb[0].mxu0
      %v1128 = vpop.f32.mrb[0].mxu0
      %v1129 = vadd.f32 0.0, %v1128
      %v1130 = vpop.f32.mrb[0].mxu0
      %1131 = vmatprep.mubr.bf16.mxu0 0
      %1132 = vmatmul.mubr.bf16.gmra.mrb[0].mxu0 %v1080
      %v1133 = vpop.f32.mrb[0].mxu0
      %v1134 = vadd.f32 0.0, %v1133
      %v1135 = vpop.f32.mrb[0].mxu0
      %v1136 = vpop.f32.mrb[0].mxu0
      %v1137 = vadd.f32 0.0, %v1136
      %v1138 = vpop.f32.mrb[0].mxu0
      %1139 = vmatprep.mubr.bf16.mxu0 0
      %1140 = vmatmul.mubr.bf16.gmra.mrb[0].mxu0 %v1083
      %v1141 = vpop.f32.mrb[0].mxu0
      %v1142 = vadd.f32 0.0, %v1141
      %v1143 = vpop.f32.mrb[0].mxu0
      %v1144 = vpop.f32.mrb[0].mxu0
      %v1145 = vadd.f32 0.0, %v1144
      %v1146 = vpop.f32.mrb[0].mxu0
      %1147 = vmatprep.mubr.bf16.mxu0 0
      %1148 = vmatmul.mubr.bf16.gmra.mrb[0].mxu0 %v1086
      %v1149 = vpop.f32.mrb[0].mxu0
      %v1150 = vadd.f32 0.0, %v1149
      %v1151 = vpop.f32.mrb[0].mxu0
      %v1152 = vpop.f32.mrb[0].mxu0
      %v1153 = vadd.f32 0.0, %v1152
      %v1154 = vpop.f32.mrb[0].mxu0
      %1155 = vdwg.mxu0
      %v1156 = vadd.f32 %v1026, %v1126
      %v1157 = vadd.f32 %v1027, %v1129
      %v1158 = vadd.f32 %v1028, %v1134
      %v1159 = vadd.f32 %v1029, %v1137
      %v1160 = vadd.f32 %v1030, %v1142
      %v1161 = vadd.f32 %v1031, %v1145
      %v1162 = vadd.f32 %v1032, %v1150
      %v1163 = vadd.f32 %v1033, %v1153
      %v1172 = vrot.slane %v1038, 5
      %v1173 = vrot.slane %v1172, 4
      %v1174 = vrot.slane %v1039, 5
      %v1175 = vsel %vm270, %v1173, %v1174
      %v1176 = vrot.slane %v1040, 5
      %v1177 = vrot.slane %v1176, 4
      %v1178 = vrot.slane %v1041, 5
      %v1179 = vsel %vm270, %v1177, %v1178
      %v1180 = vrot.slane %v1042, 5
      %v1181 = vrot.slane %v1180, 4
      %v1182 = vrot.slane %v1043, 5
      %v1183 = vsel %vm270, %v1181, %v1182
      %v1184 = vrot.slane %v1044, 5
      %v1185 = vrot.slane %v1184, 4
      %v1186 = vrot.slane %v1045, 5
      %v1187 = vsel %vm270, %v1185, %v1186
      %v1188 = vrot.slane %v1046, 5
      %v1189 = vrot.slane %v1188, 4
      %v1190 = vrot.slane %v1047, 5
      %v1191 = vsel %vm270, %v1189, %v1190
      %v1192 = vrot.slane %v1048, 5
      %v1193 = vrot.slane %v1192, 4
      %v1194 = vrot.slane %v1049, 5
      %v1195 = vsel %vm270, %v1193, %v1194
      %v1196 = vrot.slane %v1050, 5
      %v1197 = vrot.slane %v1196, 4
      %v1198 = vrot.slane %v1051, 5
      %v1199 = vsel %vm270, %v1197, %v1198
      %v1200 = vrot.slane %v1052, 5
      %v1201 = vrot.slane %v1200, 4
      %v1202 = vrot.slane %v1053, 5
      %v1203 = vsel %vm270, %v1201, %v1202
      %s1204 = scalar_lea.vmem %s1, 28
      %v1205 = vld [vmem:[%s1204] sm:$0xf]
      %v1206 = vunpack.c.l.b16 %v1175
      %v1207 = vunpack.c.l.b16 %v1179
      %v1208 = vunpack.c.l.b16 %v1183
      %v1209 = vunpack.c.l.b16 %v1187
      %v1210 = vunpack.c.l.b16 %v1191
      %v1211 = vunpack.c.l.b16 %v1195
      %v1212 = vunpack.c.l.b16 %v1199
      %v1213 = vunpack.c.l.b16 %v1203
      %v1214 = vpack.c.b16 %v1207, %v1206
      %v1215 = vpack.c.b16 %v1209, %v1208
      %v1216 = vpack.c.b16 %v1211, %v1210
      %v1217 = vpack.c.b16 %v1213, %v1212
      %v1219 = vsel %vm317, %v1214, 0
      %v1222 = vsel %vm317, %v1215, 0
      %v1225 = vsel %vm317, %v1216, 0
      %v1228 = vsel %vm317, %v1217, 0
      %v1231 = vsel %vm330, %v1205, 0
      %1233 = vmatprep.subr.bf16.mxu0 0
      %1234 = vmatpush1.bf16.msra.mxu0 %v1231
      %1235 = vmatprep.subr.bf16.mxu0 0
      %1236 = vmatpush1.bf16.msra.mxu0 0
      %1237 = vmatprep.subr.bf16.mxu0 0
      %1238 = vmatpush1.bf16.msra.mxu0 0
      %1239 = vmatprep.subr.bf16.mxu0 0
      %1240 = vmatpush1.bf16.msra.mxu0 0
      %1241 = vmatprep.subr.bf16.mxu0 0
      %1242 = vmatpush1.bf16.msra.mxu0 0
      %1243 = vmatprep.subr.bf16.mxu0 0
      %1244 = vmatpush1.bf16.msra.mxu0 0
      %1245 = vmatprep.subr.bf16.mxu0 0
      %1246 = vmatpush1.bf16.msra.mxu0 0
      %1247 = vmatprep.subr.bf16.mxu0 0
      %1248 = vmatpush1.bf16.msra.mxu0 0
      %1249 = vmatprep.subr.bf16.mxu0 0
      %1250 = vmatpush1.bf16.msra.mxu0 0
      %1251 = vmatprep.subr.bf16.mxu0 0
      %1252 = vmatpush1.bf16.msra.mxu0 0
      %1253 = vmatprep.subr.bf16.mxu0 0
      %1254 = vmatpush1.bf16.msra.mxu0 0
      %1255 = vmatprep.subr.bf16.mxu0 0
      %1256 = vmatpush1.bf16.msra.mxu0 0
      %1257 = vmatprep.subr.bf16.mxu0 0
      %1258 = vmatpush1.bf16.msra.mxu0 0
      %1259 = vmatprep.subr.bf16.mxu0 0
      %1260 = vmatpush1.bf16.msra.mxu0 0
      %1261 = vmatprep.subr.bf16.mxu0 0
      %1262 = vmatpush1.bf16.msra.mxu0 0
      %1263 = vmatprep.subr.bf16.mxu0 0
      %1264 = vmatpush1.bf16.msra.mxu0 0
      %1265 = vmatprep.mubr.bf16.mxu0 0
      %1266 = vmatmul.mubr.bf16.gmra.mrb[0].mxu0 %v1219
      %v1267 = vpop.f32.mrb[0].mxu0
      %v1268 = vadd.f32 0.0, %v1267
      %v1269 = vpop.f32.mrb[0].mxu0
      %v1270 = vpop.f32.mrb[0].mxu0
      %v1271 = vadd.f32 0.0, %v1270
      %v1272 = vpop.f32.mrb[0].mxu0
      %1273 = vmatprep.mubr.bf16.mxu0 0
      %1274 = vmatmul.mubr.bf16.gmra.mrb[0].mxu0 %v1222
      %v1275 = vpop.f32.mrb[0].mxu0
      %v1276 = vadd.f32 0.0, %v1275
      %v1277 = vpop.f32.mrb[0].mxu0
      %v1278 = vpop.f32.mrb[0].mxu0
      %v1279 = vadd.f32 0.0, %v1278
      %v1280 = vpop.f32.mrb[0].mxu0
      %1281 = vmatprep.mubr.bf16.mxu0 0
      %1282 = vmatmul.mubr.bf16.gmra.mrb[0].mxu0 %v1225
      %v1283 = vpop.f32.mrb[0].mxu0
      %v1284 = vadd.f32 0.0, %v1283
      %v1285 = vpop.f32.mrb[0].mxu0
      %v1286 = vpop.f32.mrb[0].mxu0
      %v1287 = vadd.f32 0.0, %v1286
      %v1288 = vpop.f32.mrb[0].mxu0
      %1289 = vmatprep.mubr.bf16.mxu0 0
      %1290 = vmatmul.mubr.bf16.gmra.mrb[0].mxu0 %v1228
      %v1291 = vpop.f32.mrb[0].mxu0
      %v1292 = vadd.f32 0.0, %v1291
      %v1293 = vpop.f32.mrb[0].mxu0
      %v1294 = vpop.f32.mrb[0].mxu0
      %v1295 = vadd.f32 0.0, %v1294
      %v1296 = vpop.f32.mrb[0].mxu0
      %1297 = vdwg.mxu0
      %v1298 = vadd.f32 %v1156, %v1268
      %v1299 = vadd.f32 %v1157, %v1271
      %v1300 = vadd.f32 %v1158, %v1276
      %v1301 = vadd.f32 %v1159, %v1279
      %v1302 = vadd.f32 %v1160, %v1284
      %v1303 = vadd.f32 %v1161, %v1287
      %v1304 = vadd.f32 %v1162, %v1292
      %v1305 = vadd.f32 %v1163, %v1295
      %v1306 = vrot.slane %v1038, 6
      %v1307 = vrot.slane %v1306, 4
      %v1308 = vrot.slane %v1039, 6
      %v1309 = vsel %vm493, %v1307, %v1308
      %v1310 = vrot.slane %v1040, 6
      %v1311 = vrot.slane %v1310, 4
      %v1312 = vrot.slane %v1041, 6
      %v1313 = vsel %vm493, %v1311, %v1312
      %v1314 = vrot.slane %v1042, 6
      %v1315 = vrot.slane %v1314, 4
      %v1316 = vrot.slane %v1043, 6
      %v1317 = vsel %vm493, %v1315, %v1316
      %v1318 = vrot.slane %v1044, 6
      %v1319 = vrot.slane %v1318, 4
      %v1320 = vrot.slane %v1045, 6
      %v1321 = vsel %vm493, %v1319, %v1320
      %v1322 = vrot.slane %v1046, 6
      %v1323 = vrot.slane %v1322, 4
      %v1324 = vrot.slane %v1047, 6
      %v1325 = vsel %vm493, %v1323, %v1324
      %v1326 = vrot.slane %v1048, 6
      %v1327 = vrot.slane %v1326, 4
      %v1328 = vrot.slane %v1049, 6
      %v1329 = vsel %vm493, %v1327, %v1328
      %v1330 = vrot.slane %v1050, 6
      %v1331 = vrot.slane %v1330, 4
      %v1332 = vrot.slane %v1051, 6
      %v1333 = vsel %vm493, %v1331, %v1332
      %v1334 = vrot.slane %v1052, 6
      %v1335 = vrot.slane %v1334, 4
      %v1336 = vrot.slane %v1053, 6
      %v1337 = vsel %vm493, %v1335, %v1336
      %s1338 = scalar_lea.vmem %s1, 32
      %v1339 = vld [vmem:[%s1338] sm:$0xf]
      %v1340 = vunpack.c.l.b16 %v1309
      %v1341 = vunpack.c.l.b16 %v1313
      %v1342 = vunpack.c.l.b16 %v1317
      %v1343 = vunpack.c.l.b16 %v1321
      %v1344 = vunpack.c.l.b16 %v1325
      %v1345 = vunpack.c.l.b16 %v1329
      %v1346 = vunpack.c.l.b16 %v1333
      %v1347 = vunpack.c.l.b16 %v1337
      %v1348 = vpack.c.b16 %v1341, %v1340
      %v1349 = vpack.c.b16 %v1343, %v1342
      %v1350 = vpack.c.b16 %v1345, %v1344
      %v1351 = vpack.c.b16 %v1347, %v1346
      %v1353 = vsel %vm317, %v1348, 0
      %v1356 = vsel %vm317, %v1349, 0
      %v1359 = vsel %vm317, %v1350, 0
      %v1362 = vsel %vm317, %v1351, 0
      %v1365 = vsel %vm330, %v1339, 0
      %1367 = vmatprep.subr.bf16.mxu0 0
      %1368 = vmatpush1.bf16.msra.mxu0 %v1365
      %1369 = vmatprep.subr.bf16.mxu0 0
      %1370 = vmatpush1.bf16.msra.mxu0 0
      %1371 = vmatprep.subr.bf16.mxu0 0
      %1372 = vmatpush1.bf16.msra.mxu0 0
      %1373 = vmatprep.subr.bf16.mxu0 0
      %1374 = vmatpush1.bf16.msra.mxu0 0
      %1375 = vmatprep.subr.bf16.mxu0 0
      %1376 = vmatpush1.bf16.msra.mxu0 0
      %1377 = vmatprep.subr.bf16.mxu0 0
      %1378 = vmatpush1.bf16.msra.mxu0 0
      %1379 = vmatprep.subr.bf16.mxu0 0
      %1380 = vmatpush1.bf16.msra.mxu0 0
      %1381 = vmatprep.subr.bf16.mxu0 0
      %1382 = vmatpush1.bf16.msra.mxu0 0
      %1383 = vmatprep.subr.bf16.mxu0 0
      %1384 = vmatpush1.bf16.msra.mxu0 0
      %1385 = vmatprep.subr.bf16.mxu0 0
      %1386 = vmatpush1.bf16.msra.mxu0 0
      %1387 = vmatprep.subr.bf16.mxu0 0
      %1388 = vmatpush1.bf16.msra.mxu0 0
      %1389 = vmatprep.subr.bf16.mxu0 0
      %1390 = vmatpush1.bf16.msra.mxu0 0
      %1391 = vmatprep.subr.bf16.mxu0 0
      %1392 = vmatpush1.bf16.msra.mxu0 0
      %1393 = vmatprep.subr.bf16.mxu0 0
      %1394 = vmatpush1.bf16.msra.mxu0 0
      %1395 = vmatprep.subr.bf16.mxu0 0
      %1396 = vmatpush1.bf16.msra.mxu0 0
      %1397 = vmatprep.subr.bf16.mxu0 0
      %1398 = vmatpush1.bf16.msra.mxu0 0
      %1399 = vmatprep.mubr.bf16.mxu0 0
      %1400 = vmatmul.mubr.bf16.gmra.mrb[0].mxu0 %v1353
      %v1401 = vpop.f32.mrb[0].mxu0
      %v1402 = vadd.f32 0.0, %v1401
      %v1403 = vpop.f32.mrb[0].mxu0
      %v1404 = vpop.f32.mrb[0].mxu0
      %v1405 = vadd.f32 0.0, %v1404
      %v1406 = vpop.f32.mrb[0].mxu0
      %1407 = vmatprep.mubr.bf16.mxu0 0
      %1408 = vmatmul.mubr.bf16.gmra.mrb[0].mxu0 %v1356
      %v1409 = vpop.f32.mrb[0].mxu0
      %v1410 = vadd.f32 0.0, %v1409
      %v1411 = vpop.f32.mrb[0].mxu0
      %v1412 = vpop.f32.mrb[0].mxu0
      %v1413 = vadd.f32 0.0, %v1412
      %v1414 = vpop.f32.mrb[0].mxu0
      %1415 = vmatprep.mubr.bf16.mxu0 0
      %1416 = vmatmul.mubr.bf16.gmra.mrb[0].mxu0 %v1359
      %v1417 = vpop.f32.mrb[0].mxu0
      %v1418 = vadd.f32 0.0, %v1417
      %v1419 = vpop.f32.mrb[0].mxu0
      %v1420 = vpop.f32.mrb[0].mxu0
      %v1421 = vadd.f32 0.0, %v1420
      %v1422 = vpop.f32.mrb[0].mxu0
      %1423 = vmatprep.mubr.bf16.mxu0 0
      %1424 = vmatmul.mubr.bf16.gmra.mrb[0].mxu0 %v1362
      %v1425 = vpop.f32.mrb[0].mxu0
      %v1426 = vadd.f32 0.0, %v1425
      %v1427 = vpop.f32.mrb[0].mxu0
      %v1428 = vpop.f32.mrb[0].mxu0
      %v1429 = vadd.f32 0.0, %v1428
      %v1430 = vpop.f32.mrb[0].mxu0
      %1431 = vdwg.mxu0
      %v1432 = vadd.f32 %v1298, %v1402
      %v1433 = vadd.f32 %v1299, %v1405
      %v1434 = vadd.f32 %v1300, %v1410
      %v1435 = vadd.f32 %v1301, %v1413
      %v1436 = vadd.f32 %v1302, %v1418
      %v1437 = vadd.f32 %v1303, %v1421
      %v1438 = vadd.f32 %v1304, %v1426
      %v1439 = vadd.f32 %v1305, %v1429
      %v1440 = vld [vmem:[%s218] sm:$0xff]
      %v1441 = vld [vmem:[%s218 + $0x8] sm:$0xff]
      %v1442 = vld [vmem:[%s218 + $0x10] sm:$0xff]
      %v1443 = vld [vmem:[%s218 + $0x18] sm:$0xff]
      %v1444 = vld [vmem:[%s218 + $0x20] sm:$0xff]
      %v1445 = vld [vmem:[%s218 + $0x28] sm:$0xff]
      %v1446 = vld [vmem:[%s218 + $0x30] sm:$0xff]
      %v1447 = vld [vmem:[%s218 + $0x38] sm:$0xff]
      %v1448 = vadd.f32 %v1432, %v1440
      %v1449 = vadd.f32 %v1433, %v1441
      %v1450 = vadd.f32 %v1434, %v1442
      %v1451 = vadd.f32 %v1435, %v1443
      %v1452 = vadd.f32 %v1436, %v1444
      %v1453 = vadd.f32 %v1437, %v1445
      %v1454 = vadd.f32 %v1438, %v1446
      %v1455 = vadd.f32 %v1439, %v1447
      %1456 = vst.msk [vmem:[%s228] sm:$0xff] %vm317, %v1448
      %1457 = vst.msk [vmem:[%s228 + $0x8] sm:$0xff] %vm317, %v1449
      %1458 = vst.msk [vmem:[%s228 + $0x10] sm:$0xff] %vm317, %v1450
      %1459 = vst.msk [vmem:[%s228 + $0x18] sm:$0xff] %vm317, %v1451
      %1460 = vst.msk [vmem:[%s228 + $0x20] sm:$0xff] %vm317, %v1452
      %1461 = vst.msk [vmem:[%s228 + $0x28] sm:$0xff] %vm317, %v1453
      %1462 = vst.msk [vmem:[%s228 + $0x30] sm:$0xff] %vm317, %v1454
      %1463 = vst.msk [vmem:[%s228 + $0x38] sm:$0xff] %vm317, %v1455
      %s1464 = smul.u32 8, %s19
      %p1465 = scmp.lt.s32.totalorder %s18, 1
      %s1466 = scalar_select %p1465, %s18, 1
      %p1467 = scmp.lt.s32.totalorder %s1464, 7
      %s1468 = scalar_select %p1467, %s1464, 7
      %s1469 = smul.addr %s1466, 8
      %s1470 = sadd.s32 %s1468, %s1469
      %s1471 = smul.addr %s1470, 8
      %s1472 = scalar_lea.vmem %s3, %s1471
      // Predicated region
      $region33: #{_lambda_.37} parent=31 // pred_check
        %p1473 = pneg %p121
      $region34: #{_lambda_.37} parent=31 // pred_check_branch
        %1475 = sbr.rel (%p1473) target = $region36
      $region35: #{_lambda_.37} parent=31 // pred_region
        %s1476 = smul.u32 8, %s19
      $region36: #{_lambda_.37} parent=31 // pred_fallthru
        _
    $region32: #{_lambda_.37} parent=5 // pred_fallthru
      _
    %p1477 = scmp.le.s32.totalorder 2, %s9
    // Predicated region
    $region37: #{_lambda_.37} parent=5 // pred_check
      %p1478 = pneg %p1477
    $region38: #{_lambda_.37} parent=5 // pred_check_branch
      %1480 = sbr.rel (%p1478) target = $region40
    $region39: #{_lambda_.37} parent=5 // pred_region
      %s1481 = ssub.s32 %s9, 2
      // Predicated region
      $region41: #{_lambda_.37} parent=39 // pred_check
        %p1482 = pneg %p127
      $region42: #{_lambda_.37} parent=39 // pred_check_branch
        %1484 = sbr.rel (%p1482) target = $region44
      $region43: #{_lambda_.37} parent=39 // pred_region
        %s1485 = smul.u32 8, %s21
        %p1486 = scmp.lt.s32.totalorder %s20, 1
        %s1487 = scalar_select %p1486, %s20, 1
        %p1488 = scmp.lt.s32.totalorder %s1485, 7
        %s1489 = scalar_select %p1488, %s1485, 7
        %s1490 = smul.addr %s1487, 8
        %s1491 = sadd.s32 %s1489, %s1490
        %s1492 = smul.addr %s1491, 8
        %s1493 = scalar_lea.vmem %s3, %s1492
      $region44: #{_lambda_.37} parent=39 // pred_fallthru
        _
    $region40: #{_lambda_.37} parent=5 // pred_fallthru
      _
  $region6: #{_lambda_.37} parent=0 // loop_footer
    %s13 = sadd.s32 1, %s9
  $region7: #{_lambda_.37} parent=0 // loop_footer_branch
    %8 = sbr.rel target = $region3
  $region8: #{_lambda_.37} parent=0 // loop_exit
    _

</llo_original>
